<compile_context>
chip_gen: v5e
topology: v5e:2x2
jax: 0.10.0
libtpu: 0.0.40
codegen_flags: <defaults>
</compile_context>

<pallas_src>
import functools

import jax
import jax.numpy as jnp
from jax import lax
from jax.experimental import pallas as pl
from jax.experimental.pallas import tpu as pltpu

EPS = 1e-5


def _round_up(a, b):
    return ((a + b - 1) // b) * b


def _tap_groups(c, n_taps=27, k_target=256, max_taps=9):
    """Split the 27 conv taps into groups with K = taps*c close to k_target."""
    g = max(1, min(max_taps, k_target // max(c, 1)))
    sizes, left = [], n_taps
    while left > 0:
        sizes.append(min(g, left))
        left -= sizes[-1]
    return tuple(sizes)


def _conv3d_block_kernel(x_ref, mask_ref, w1_ref, t1_ref, w2_ref, t2_ref,
                         *rest, ext, ts, th, cin, cout, offsets,
                         groups1, groups2, residual):
    """One (batch, lane-slab) grid point.

    x_ref    : (1, 1, Cin, Ts+4*ext) bf16  x slab incl. 2*ext halo each side
    mask_ref : (1, 1, Ts+2*ext)      f32   interior-voxel indicator (h window)
    w1_ref   : (Cout, 27*Cin)        bf16  conv1 taps, BN scale pre-folded
    w2_ref   : (Cout, 27*Cout)       bf16  conv2 taps, BN scale pre-folded
    t*_ref   : (Cout, 1)             f32   folded (conv bias + BN) shift
    o_ref    : (1, Cout, Ts)         f32   output lanes of this slab
    h_ref    : (Cout, Ts+2*ext)      bf16  conv1 activation (recomputed halo)
    """
    if residual:
        wr_ref, tr_ref, o_ref, h_ref = rest
    else:
        o_ref, h_ref = rest

    xs = x_ref[0, 0]                       # (Cin, Tx)  bf16
    mask = mask_ref[0]                     # (1, Th)    f32

    # ---- conv1 (+bias+BN shift, scale folded into w1), grouped tap accum ---
    acc = None
    t0 = 0
    for g in groups1:
        views = [xs[:, ext + offsets[t]: ext + offsets[t] + th]
                 for t in range(t0, t0 + g)]
        rhs = views[0] if g == 1 else jnp.concatenate(views, axis=0)
        part = jnp.dot(w1_ref[:, t0 * cin:(t0 + g) * cin], rhs,
                       preferred_element_type=jnp.float32)
        acc = part if acc is None else acc + part
        t0 += g
    h = jnp.maximum(acc + t1_ref[...], 0.0) * mask        # (Cout, Th) f32
    h_ref[...] = h.astype(h_ref.dtype)

    # ---- conv2 (+bias+BN shift), grouped tap accumulation -------------------
    hs = h_ref[...]                                        # (Cout, Th) bf16
    acc = None
    t0 = 0
    for g in groups2:
        views = [hs[:, ext + offsets[t]: ext + offsets[t] + ts]
                 for t in range(t0, t0 + g)]
        rhs = views[0] if g == 1 else jnp.concatenate(views, axis=0)
        part = jnp.dot(w2_ref[:, t0 * cout:(t0 + g) * cout], rhs,
                       preferred_element_type=jnp.float32)
        acc = part if acc is None else acc + part
        t0 += g
    y = acc + t2_ref[...]                                  # (Cout, Ts) f32

    if residual:
        # 1x1x1 conv (BN scale folded into wr) + shift on the output window.
        r = jnp.dot(wr_ref[...], xs[:, 2 * ext: 2 * ext + ts],
                    preferred_element_type=jnp.float32)
        y = jnp.maximum(y + r + tr_ref[...], 0.0)

    o_ref[...] = y.reshape(1, cout, ts)


def _fold_bn(p, tag, bias=None):
    scale = p[f'gamma{tag}'] / jnp.sqrt(p[f'var{tag}'] + EPS)
    shift = p[f'beta{tag}'] - p[f'mean{tag}'] * scale
    if bias is not None:
        shift = shift + bias * scale          # fold the conv bias into the shift
    return scale, shift


def _vmem_capacity_bytes():
    try:
        return int(pltpu.get_tpu_info().vmem_capacity_bytes)
    except Exception:
        return 64 * 1024 * 1024               # conservative (v7x-sized) fallback


def _pick_slab(lout, cin, cout, ext, g1, g2, budget, max_slab_lanes=None):
    """Largest 128-multiple slab (in output lanes) whose working set fits."""
    hi = _round_up(lout, 128)
    if max_slab_lanes is not None:
        hi = min(hi, _round_up(max(int(max_slab_lanes), 128), 128))

    def need(ts_):
        tx, th = ts_ + 4 * ext, ts_ + 2 * ext
        return (2 * cin * tx * 2              # x slab, double-buffered, bf16
                + 2 * th * 4                  # mask slab, double-buffered, f32
                + 2 * cout * ts_ * 4          # out slab, double-buffered, f32
                + cout * th * 2               # h scratch (bf16)
                + cout * th * 4               # conv1 f32 accumulator
                + cout * ts_ * 4              # conv2 f32 accumulator
                + 2 * g1 * cin * th * 2       # conv1 group rhs (2 in flight)
                + 2 * g2 * cout * ts_ * 2)    # conv2 group rhs (2 in flight)

    ts = hi
    while ts > 128 and need(ts) > budget:
        ts -= 128
    s = -(-lout // ts)                        # cdiv
    ts = _round_up(-(-lout // s), 128)        # rebalance slabs, keep 128-aligned
    return ts, s


def conv3d_block_forward(x_ncdhw, params, residual=False, max_slab_lanes=None):
    N, Cin, D, H, W = x_ncdhw.shape
    Cout = params['w1'].shape[-1]
    Dp, Hp, Wp = D + 2, H + 2, W + 2
    HpWp = Hp * Wp
    lp = Dp * HpWp                            # padded flat volume
    lout = D * HpWp                           # interior-D flat output window
    max_off = HpWp + Wp + 1                   # 3x3x3 tap reach in flat lanes
    ext = _round_up(max_off, 128)             # per-conv halo, 128-aligned

    groups1 = _tap_groups(Cin)
    groups2 = _tap_groups(Cout)

    phys = _vmem_capacity_bytes()
    vmem_limit = (phys * 3) // 4              # ~96 MiB on v5e/v6e, ~48 MiB on v7x
    budget = (vmem_limit * 3) // 4            # headroom for weights / temps
    ts, S = _pick_slab(lout, Cin, Cout, ext, max(groups1), max(groups2),
                       budget, max_slab_lanes)
    lout_pad = S * ts
    tx, th = ts + 4 * ext, ts + 2 * ext

    # tap lane offsets; (kd, kh, kw) row-major == the weight reshape order
    offsets = tuple((kd - 1) * HpWp + (kh - 1) * Wp + (kw - 1)
                    for kd in range(3) for kh in range(3) for kw in range(3))

    # ---- host-side layout prep (all conv math runs in the kernel) ----------
    # bf16 FIRST, then one pad chain into the zero-extended flat buffer.
    x_pad = jnp.pad(x_ncdhw.astype(jnp.bfloat16),
                    ((0, 0), (0, 0), (1, 1), (1, 1), (1, 1)))
    Lx = HpWp + lout_pad + 4 * ext
    x_buf = jnp.pad(x_pad.reshape(N, Cin, lp),
                    ((0, 0), (0, 0), (2 * ext, Lx - 2 * ext - lp)))
    # Overlapping lane slabs (halo = 2*ext); a single plain slice when S == 1.
    # TODO(synk): express the overlapping windows with pl.Element lane indexing
    # (or an in-kernel DMA) so the halos are not duplicated in HBM when S > 1.
    x_slabs = jnp.stack(
        [x_buf[:, :, HpWp + s * ts: HpWp + s * ts + tx] for s in range(S)],
        axis=1)                                           # (N, S, Cin, Tx)

    mask3d = jnp.zeros((Dp, Hp, Wp), jnp.float32)
    mask3d = mask3d.at[1:1 + D, 1:1 + H, 1:1 + W].set(1.0)
    Lm = HpWp + lout_pad + 2 * ext
    mask_buf = jnp.pad(mask3d.reshape(lp), (ext, Lm - ext - lp))
    mask_slabs = jnp.stack(
        [mask_buf[HpWp + s * ts: HpWp + s * ts + th] for s in range(S)],
        axis=0).reshape(S, 1, th)                         # (S, 1, Th)

    # weights: BN scale folded in f32, THEN bf16 cast; (3,3,3,I,O) -> (O, 27*I)
    s1, t1 = _fold_bn(params, '1', params['b1'])
    s2, t2 = _fold_bn(params, '2', params['b2'])
    w1t = (params['w1'] * s1).reshape(27 * Cin, Cout).T.astype(jnp.bfloat16)
    w2t = (params['w2'] * s2).reshape(27 * Cout, Cout).T.astype(jnp.bfloat16)
    col = lambda v: v.reshape(Cout, 1).astype(jnp.float32)

    def full(shp):
        return pl.BlockSpec(shp, lambda n, s: (0,) * len(shp))

    in_specs = [
        pl.BlockSpec((1, 1, Cin, tx), lambda n, s: (n, s, 0, 0)),   # x slab
        pl.BlockSpec((1, 1, th), lambda n, s: (s, 0, 0)),           # mask slab
        full((Cout, 27 * Cin)), full((Cout, 1)),
        full((Cout, 27 * Cout)), full((Cout, 1)),
    ]
    args = [x_slabs, mask_slabs, w1t, col(t1), w2t, col(t2)]

    if residual:
        sr, tr = _fold_bn(params, 'r')
        in_specs += [full((Cout, Cin)), full((Cout, 1))]
        args += [(params['wr'] * sr).T.astype(jnp.bfloat16), col(tr)]

    kernel = functools.partial(
        _conv3d_block_kernel, ext=ext, ts=ts, th=th, cin=Cin, cout=Cout,
        offsets=offsets, groups1=groups1, groups2=groups2, residual=residual)

    y_flat = pl.pallas_call(
        kernel,
        out_shape=jax.ShapeDtypeStruct((N, Cout, lout_pad), jnp.float32),
        grid=(N, S),
        in_specs=in_specs,
        out_specs=pl.BlockSpec((1, Cout, ts), lambda n, s: (n, 0, s)),
        scratch_shapes=[pltpu.VMEM((Cout, th), jnp.bfloat16)],
        compiler_params=pltpu.CompilerParams(
            dimension_semantics=("parallel", "parallel"),
            vmem_limit_bytes=int(vmem_limit)),
    )(*args)

    # back to PyTorch NCDHW: only interior D-planes were stored; drop the
    # padded H/W borders and the 128-alignment tail.
    # TODO(synk): emit bf16 here when the downstream consumer accepts it
    # (halves the HBM writeback; largest relative win on v5e).
    y = y_flat[:, :, :lout].reshape(N, Cout, D, Hp, Wp)
    return y[:, :, :, 1:1 + H, 1:1 + W]


def ref_forward(x_ncdhw, params, residual=False):
    """Plain-JAX reference with the same bf16 operand rounding as the kernel."""
    bf = lambda a: a.astype(jnp.bfloat16).astype(jnp.float32)
    x = bf(jnp.transpose(x_ncdhw, (0, 2, 3, 4, 1)))              # NDHWC
    conv = lambda a, w: lax.conv_general_dilated(
        a, w, (1, 1, 1), ((1, 1), (1, 1), (1, 1)),
        dimension_numbers=('NDHWC', 'DHWIO', 'NDHWC'),
        precision=lax.Precision.HIGHEST)
    s1, t1 = _fold_bn(params, '1', params['b1'])
    s2, t2 = _fold_bn(params, '2', params['b2'])
    h = jnp.maximum(conv(x, bf(params['w1'] * s1)) + t1, 0.0)
    y = conv(bf(h), bf(params['w2'] * s2)) + t2
    if residual:
        sr, tr = _fold_bn(params, 'r')
        r = jnp.einsum('ndhwi,io->ndhwo', x, bf(params['wr'] * sr),
                       precision=lax.Precision.HIGHEST)
        y = jnp.maximum(y + r + tr, 0.0)
    return jnp.transpose(y, (0, 4, 1, 2, 3))


def init_params(key, Cin, Cout):
    ks = jax.random.split(key, 16)
    f32 = jnp.float32
    return {
        'w1': 0.1 * jax.random.normal(ks[0], (3, 3, 3, Cin, Cout), f32),
        'b1': 0.1 * jax.random.normal(ks[1], (Cout,), f32),
        'gamma1': 1.0 + 0.1 * jax.random.normal(ks[2], (Cout,), f32),
        'beta1': 0.1 * jax.random.normal(ks[3], (Cout,), f32),
        'mean1': 0.05 * jax.random.normal(ks[4], (Cout,), f32),
        'var1': 1.0 + 0.1 * jax.random.uniform(ks[5], (Cout,), f32),
        'w2': 0.1 * jax.random.normal(ks[6], (3, 3, 3, Cout, Cout), f32),
        'b2': 0.1 * jax.random.normal(ks[7], (Cout,), f32),
        'gamma2': 1.0 + 0.1 * jax.random.normal(ks[8], (Cout,), f32),
        'beta2': 0.1 * jax.random.normal(ks[9], (Cout,), f32),
        'mean2': 0.05 * jax.random.normal(ks[10], (Cout,), f32),
        'var2': 1.0 + 0.1 * jax.random.uniform(ks[11], (Cout,), f32),
        # residual_upsampler: 1x1x1 conv (bias=False) + BN
        'wr': 0.1 * jax.random.normal(ks[12], (Cin, Cout), f32),
        'gammar': 1.0 + 0.1 * jax.random.normal(ks[13], (Cout,), f32),
        'betar': 0.1 * jax.random.normal(ks[14], (Cout,), f32),
        'meanr': 0.05 * jax.random.normal(ks[15], (Cout,), f32),
        'varr': jnp.ones((Cout,), f32),
    }


if __name__ == "__main__":
    key = jax.random.PRNGKey(0)
    kx, kp = jax.random.split(key)

    N, Cin, Cout, D, H, W = 2, 4, 8, 8, 8, 8
    x = jax.random.normal(kx, (N, Cin, D, H, W), jnp.float32)   # NCDHW (PyTorch)
    params = init_params(kp, Cin, Cout)

    for residual in (False, True):
        ref = jax.block_until_ready(ref_forward(x, params, residual))
        # exercise both the single-slab and the multi-slab (spatial tiling) paths
        for slab in (None, 256):
            out = jax.block_until_ready(
                conv3d_block_forward(x, params, residual, max_slab_lanes=slab))
            assert out.shape == (N, Cout, D, H, W), out.shape
            if not jnp.allclose(out, ref, atol=5e-3, rtol=5e-3):
                raise AssertionError(
                    f"mismatch (residual={residual}, slab={slab}): "
                    f"max abs err {float(jnp.max(jnp.abs(out - ref)))}")

    print("KERNEL_OK")
</pallas_src>

<mosaic_0001>
module attributes {stable_mosaic.version = 11 : i64} {
  func.func @_conv3d_block_kernel(%arg0: i32, %arg1: i32, %arg2: memref<1x1x4x1408xbf16, #tpu.memory_space<vmem>>, %arg3: memref<1x1x1152xf32, #tpu.memory_space<vmem>>, %arg4: memref<8x108xbf16, #tpu.memory_space<vmem>>, %arg5: memref<8x1xf32, #tpu.memory_space<vmem>>, %arg6: memref<8x216xbf16, #tpu.memory_space<vmem>>, %arg7: memref<8x1xf32, #tpu.memory_space<vmem>>, %arg8: memref<1x8x896xf32, #tpu.memory_space<vmem>>, %arg9: memref<8x1152xbf16, #tpu.memory_space<vmem>>) attributes {dimension_semantics = [#tpu.dimension_semantics<parallel>, #tpu.dimension_semantics<parallel>], iteration_bounds = array<i64: 2, 1>, scalar_prefetch = 0 : i64, scratch_operands = 1 : i64, tpu.core_type = #tpu.core_type<tc>, window_params = [{transform_indices = @transform_0, window_bounds = array<i64: 1, 1, 4, 1408>}, {transform_indices = @transform_1, window_bounds = array<i64: 1, 1, 1152>}, {pipeline_mode = #tpu.pipeline_mode<synchronous>, transform_indices = @transform_2, window_bounds = array<i64: 8, 108>}, {pipeline_mode = #tpu.pipeline_mode<synchronous>, transform_indices = @transform_3, window_bounds = array<i64: 8, 1>}, {pipeline_mode = #tpu.pipeline_mode<synchronous>, transform_indices = @transform_4, window_bounds = array<i64: 8, 216>}, {pipeline_mode = #tpu.pipeline_mode<synchronous>, transform_indices = @transform_5, window_bounds = array<i64: 8, 1>}, {transform_indices = @transform_6, window_bounds = array<i64: 1, 8, 896>}]} {
    %c0 = arith.constant 0 : index
    %c0_0 = arith.constant 0 : index
    %c0_1 = arith.constant 0 : index
    %c0_2 = arith.constant 0 : index
    %0 = vector.load %arg2[%c0, %c0_0, %c0_1, %c0_2] : memref<1x1x4x1408xbf16, #tpu.memory_space<vmem>>, vector<1x1x4x1408xbf16>
    %1 = vector.shape_cast %0 : vector<1x1x4x1408xbf16> to vector<4x1408xbf16>
    %c0_3 = arith.constant 0 : index
    %c0_4 = arith.constant 0 : index
    %c0_5 = arith.constant 0 : index
    %2 = vector.load %arg3[%c0_3, %c0_4, %c0_5] : memref<1x1x1152xf32, #tpu.memory_space<vmem>>, vector<1x1x1152xf32>
    %3 = vector.shape_cast %2 : vector<1x1x1152xf32> to vector<1x1152xf32>
    %4 = vector.extract_strided_slice %1 {offsets = [0, 17], sizes = [4, 1152], strides = [1, 1]} : vector<4x1408xbf16> to vector<4x1152xbf16>
    %5 = vector.extract_strided_slice %1 {offsets = [0, 18], sizes = [4, 1152], strides = [1, 1]} : vector<4x1408xbf16> to vector<4x1152xbf16>
    %6 = vector.extract_strided_slice %1 {offsets = [0, 19], sizes = [4, 1152], strides = [1, 1]} : vector<4x1408xbf16> to vector<4x1152xbf16>
    %7 = vector.extract_strided_slice %1 {offsets = [0, 27], sizes = [4, 1152], strides = [1, 1]} : vector<4x1408xbf16> to vector<4x1152xbf16>
    %8 = vector.extract_strided_slice %1 {offsets = [0, 28], sizes = [4, 1152], strides = [1, 1]} : vector<4x1408xbf16> to vector<4x1152xbf16>
    %9 = vector.extract_strided_slice %1 {offsets = [0, 29], sizes = [4, 1152], strides = [1, 1]} : vector<4x1408xbf16> to vector<4x1152xbf16>
    %10 = vector.extract_strided_slice %1 {offsets = [0, 37], sizes = [4, 1152], strides = [1, 1]} : vector<4x1408xbf16> to vector<4x1152xbf16>
    %11 = vector.extract_strided_slice %1 {offsets = [0, 38], sizes = [4, 1152], strides = [1, 1]} : vector<4x1408xbf16> to vector<4x1152xbf16>
    %12 = vector.extract_strided_slice %1 {offsets = [0, 39], sizes = [4, 1152], strides = [1, 1]} : vector<4x1408xbf16> to vector<4x1152xbf16>
    %13 = tpu.concatenate %4, %5, %6, %7, %8, %9, %10, %11, %12 in 0 : vector<4x1152xbf16>, vector<4x1152xbf16>, vector<4x1152xbf16>, vector<4x1152xbf16>, vector<4x1152xbf16>, vector<4x1152xbf16>, vector<4x1152xbf16>, vector<4x1152xbf16>, vector<4x1152xbf16> -> vector<36x1152xbf16>
    %c0_6 = arith.constant 0 : index
    %c0_7 = arith.constant 0 : index
    %14 = vector.load %arg4[%c0_6, %c0_7] : memref<8x108xbf16, #tpu.memory_space<vmem>>, vector<8x36xbf16>
    %cst = arith.constant dense<0.000000e+00> : vector<8x1152xf32>
    %15 = tpu.matmul %14, %13, %cst {dimension_numbers = #tpu.dot_dimension_numbers<[1], [0], [0], [1], [0, 0, 1, 1], [], []>} : vector<8x36xbf16>, vector<36x1152xbf16>, vector<8x1152xf32> -> vector<8x1152xf32>
    %16 = vector.extract_strided_slice %1 {offsets = [0, 117], sizes = [4, 1152], strides = [1, 1]} : vector<4x1408xbf16> to vector<4x1152xbf16>
    %17 = vector.extract_strided_slice %1 {offsets = [0, 118], sizes = [4, 1152], strides = [1, 1]} : vector<4x1408xbf16> to vector<4x1152xbf16>
    %18 = vector.extract_strided_slice %1 {offsets = [0, 119], sizes = [4, 1152], strides = [1, 1]} : vector<4x1408xbf16> to vector<4x1152xbf16>
    %19 = vector.extract_strided_slice %1 {offsets = [0, 127], sizes = [4, 1152], strides = [1, 1]} : vector<4x1408xbf16> to vector<4x1152xbf16>
    %20 = vector.extract_strided_slice %1 {offsets = [0, 128], sizes = [4, 1152], strides = [1, 1]} : vector<4x1408xbf16> to vector<4x1152xbf16>
    %21 = vector.extract_strided_slice %1 {offsets = [0, 129], sizes = [4, 1152], strides = [1, 1]} : vector<4x1408xbf16> to vector<4x1152xbf16>
    %22 = vector.extract_strided_slice %1 {offsets = [0, 137], sizes = [4, 1152], strides = [1, 1]} : vector<4x1408xbf16> to vector<4x1152xbf16>
    %23 = vector.extract_strided_slice %1 {offsets = [0, 138], sizes = [4, 1152], strides = [1, 1]} : vector<4x1408xbf16> to vector<4x1152xbf16>
    %24 = vector.extract_strided_slice %1 {offsets = [0, 139], sizes = [4, 1152], strides = [1, 1]} : vector<4x1408xbf16> to vector<4x1152xbf16>
    %25 = tpu.concatenate %16, %17, %18, %19, %20, %21, %22, %23, %24 in 0 : vector<4x1152xbf16>, vector<4x1152xbf16>, vector<4x1152xbf16>, vector<4x1152xbf16>, vector<4x1152xbf16>, vector<4x1152xbf16>, vector<4x1152xbf16>, vector<4x1152xbf16>, vector<4x1152xbf16> -> vector<36x1152xbf16>
    %c0_8 = arith.constant 0 : index
    %c36 = arith.constant 36 : index
    %26 = vector.load %arg4[%c0_8, %c36] : memref<8x108xbf16, #tpu.memory_space<vmem>>, vector<8x36xbf16>
    %cst_9 = arith.constant dense<0.000000e+00> : vector<8x1152xf32>
    %27 = tpu.matmul %26, %25, %cst_9 {dimension_numbers = #tpu.dot_dimension_numbers<[1], [0], [0], [1], [0, 0, 1, 1], [], []>} : vector<8x36xbf16>, vector<36x1152xbf16>, vector<8x1152xf32> -> vector<8x1152xf32>
    %28 = arith.addf %15, %27 : vector<8x1152xf32>
    %29 = vector.extract_strided_slice %1 {offsets = [0, 217], sizes = [4, 1152], strides = [1, 1]} : vector<4x1408xbf16> to vector<4x1152xbf16>
    %30 = vector.extract_strided_slice %1 {offsets = [0, 218], sizes = [4, 1152], strides = [1, 1]} : vector<4x1408xbf16> to vector<4x1152xbf16>
    %31 = vector.extract_strided_slice %1 {offsets = [0, 219], sizes = [4, 1152], strides = [1, 1]} : vector<4x1408xbf16> to vector<4x1152xbf16>
    %32 = vector.extract_strided_slice %1 {offsets = [0, 227], sizes = [4, 1152], strides = [1, 1]} : vector<4x1408xbf16> to vector<4x1152xbf16>
    %33 = vector.extract_strided_slice %1 {offsets = [0, 228], sizes = [4, 1152], strides = [1, 1]} : vector<4x1408xbf16> to vector<4x1152xbf16>
    %34 = vector.extract_strided_slice %1 {offsets = [0, 229], sizes = [4, 1152], strides = [1, 1]} : vector<4x1408xbf16> to vector<4x1152xbf16>
    %35 = vector.extract_strided_slice %1 {offsets = [0, 237], sizes = [4, 1152], strides = [1, 1]} : vector<4x1408xbf16> to vector<4x1152xbf16>
    %36 = vector.extract_strided_slice %1 {offsets = [0, 238], sizes = [4, 1152], strides = [1, 1]} : vector<4x1408xbf16> to vector<4x1152xbf16>
    %37 = vector.extract_strided_slice %1 {offsets = [0, 239], sizes = [4, 1152], strides = [1, 1]} : vector<4x1408xbf16> to vector<4x1152xbf16>
    %38 = tpu.concatenate %29, %30, %31, %32, %33, %34, %35, %36, %37 in 0 : vector<4x1152xbf16>, vector<4x1152xbf16>, vector<4x1152xbf16>, vector<4x1152xbf16>, vector<4x1152xbf16>, vector<4x1152xbf16>, vector<4x1152xbf16>, vector<4x1152xbf16>, vector<4x1152xbf16> -> vector<36x1152xbf16>
    %c0_10 = arith.constant 0 : index
    %c72 = arith.constant 72 : index
    %39 = vector.load %arg4[%c0_10, %c72] : memref<8x108xbf16, #tpu.memory_space<vmem>>, vector<8x36xbf16>
    %cst_11 = arith.constant dense<0.000000e+00> : vector<8x1152xf32>
    %40 = tpu.matmul %39, %38, %cst_11 {dimension_numbers = #tpu.dot_dimension_numbers<[1], [0], [0], [1], [0, 0, 1, 1], [], []>} : vector<8x36xbf16>, vector<36x1152xbf16>, vector<8x1152xf32> -> vector<8x1152xf32>
    %41 = arith.addf %28, %40 : vector<8x1152xf32>
    %c0_12 = arith.constant 0 : index
    %c0_13 = arith.constant 0 : index
    %42 = vector.load %arg5[%c0_12, %c0_13] : memref<8x1xf32, #tpu.memory_space<vmem>>, vector<8x1xf32>
    %43 = vector.broadcast %42 : vector<8x1xf32> to vector<8x1152xf32>
    %44 = arith.addf %41, %43 : vector<8x1152xf32>
    %cst_14 = arith.constant 0.000000e+00 : f32
    %45 = vector.broadcast %cst_14 : f32 to vector<8x1152xf32>
    %46 = arith.maximumf %44, %45 : vector<8x1152xf32>
    %47 = vector.broadcast %3 : vector<1x1152xf32> to vector<8x1152xf32>
    %48 = arith.mulf %46, %47 : vector<8x1152xf32>
    %49 = arith.truncf %48 : vector<8x1152xf32> to vector<8x1152xbf16>
    %c0_15 = arith.constant 0 : index
    %c0_16 = arith.constant 0 : index
    %50 = vector.load %arg9[%c0_15, %c0_16] : memref<8x1152xbf16, #tpu.memory_space<vmem>>, vector<8x1152xbf16>
    tpu.vector_store %arg9[%c0_15, %c0_16], %49 {strides = array<i32>} : memref<8x1152xbf16, #tpu.memory_space<vmem>>, vector<8x1152xbf16>,
    %c0_17 = arith.constant 0 : index
    %c0_18 = arith.constant 0 : index
    %51 = vector.load %arg9[%c0_17, %c0_18] : memref<8x1152xbf16, #tpu.memory_space<vmem>>, vector<8x1152xbf16>
    %52 = vector.extract_strided_slice %51 {offsets = [0, 17], sizes = [8, 896], strides = [1, 1]} : vector<8x1152xbf16> to vector<8x896xbf16>
    %53 = vector.extract_strided_slice %51 {offsets = [0, 18], sizes = [8, 896], strides = [1, 1]} : vector<8x1152xbf16> to vector<8x896xbf16>
    %54 = vector.extract_strided_slice %51 {offsets = [0, 19], sizes = [8, 896], strides = [1, 1]} : vector<8x1152xbf16> to vector<8x896xbf16>
    %55 = vector.extract_strided_slice %51 {offsets = [0, 27], sizes = [8, 896], strides = [1, 1]} : vector<8x1152xbf16> to vector<8x896xbf16>
    %56 = vector.extract_strided_slice %51 {offsets = [0, 28], sizes = [8, 896], strides = [1, 1]} : vector<8x1152xbf16> to vector<8x896xbf16>
    %57 = vector.extract_strided_slice %51 {offsets = [0, 29], sizes = [8, 896], strides = [1, 1]} : vector<8x1152xbf16> to vector<8x896xbf16>
    %58 = vector.extract_strided_slice %51 {offsets = [0, 37], sizes = [8, 896], strides = [1, 1]} : vector<8x1152xbf16> to vector<8x896xbf16>
    %59 = vector.extract_strided_slice %51 {offsets = [0, 38], sizes = [8, 896], strides = [1, 1]} : vector<8x1152xbf16> to vector<8x896xbf16>
    %60 = vector.extract_strided_slice %51 {offsets = [0, 39], sizes = [8, 896], strides = [1, 1]} : vector<8x1152xbf16> to vector<8x896xbf16>
    %61 = tpu.concatenate %52, %53, %54, %55, %56, %57, %58, %59, %60 in 0 : vector<8x896xbf16>, vector<8x896xbf16>, vector<8x896xbf16>, vector<8x896xbf16>, vector<8x896xbf16>, vector<8x896xbf16>, vector<8x896xbf16>, vector<8x896xbf16>, vector<8x896xbf16> -> vector<72x896xbf16>
    %c0_19 = arith.constant 0 : index
    %c0_20 = arith.constant 0 : index
    %62 = vector.load %arg6[%c0_19, %c0_20] : memref<8x216xbf16, #tpu.memory_space<vmem>>, vector<8x72xbf16>
    %cst_21 = arith.constant dense<0.000000e+00> : vector<8x896xf32>
    %63 = tpu.matmul %62, %61, %cst_21 {dimension_numbers = #tpu.dot_dimension_numbers<[1], [0], [0], [1], [0, 0, 1, 1], [], []>} : vector<8x72xbf16>, vector<72x896xbf16>, vector<8x896xf32> -> vector<8x896xf32>
    %64 = vector.extract_strided_slice %51 {offsets = [0, 117], sizes = [8, 896], strides = [1, 1]} : vector<8x1152xbf16> to vector<8x896xbf16>
    %65 = vector.extract_strided_slice %51 {offsets = [0, 118], sizes = [8, 896], strides = [1, 1]} : vector<8x1152xbf16> to vector<8x896xbf16>
    %66 = vector.extract_strided_slice %51 {offsets = [0, 119], sizes = [8, 896], strides = [1, 1]} : vector<8x1152xbf16> to vector<8x896xbf16>
    %67 = vector.extract_strided_slice %51 {offsets = [0, 127], sizes = [8, 896], strides = [1, 1]} : vector<8x1152xbf16> to vector<8x896xbf16>
    %68 = vector.extract_strided_slice %51 {offsets = [0, 128], sizes = [8, 896], strides = [1, 1]} : vector<8x1152xbf16> to vector<8x896xbf16>
    %69 = vector.extract_strided_slice %51 {offsets = [0, 129], sizes = [8, 896], strides = [1, 1]} : vector<8x1152xbf16> to vector<8x896xbf16>
    %70 = vector.extract_strided_slice %51 {offsets = [0, 137], sizes = [8, 896], strides = [1, 1]} : vector<8x1152xbf16> to vector<8x896xbf16>
    %71 = vector.extract_strided_slice %51 {offsets = [0, 138], sizes = [8, 896], strides = [1, 1]} : vector<8x1152xbf16> to vector<8x896xbf16>
    %72 = vector.extract_strided_slice %51 {offsets = [0, 139], sizes = [8, 896], strides = [1, 1]} : vector<8x1152xbf16> to vector<8x896xbf16>
    %73 = tpu.concatenate %64, %65, %66, %67, %68, %69, %70, %71, %72 in 0 : vector<8x896xbf16>, vector<8x896xbf16>, vector<8x896xbf16>, vector<8x896xbf16>, vector<8x896xbf16>, vector<8x896xbf16>, vector<8x896xbf16>, vector<8x896xbf16>, vector<8x896xbf16> -> vector<72x896xbf16>
    %c0_22 = arith.constant 0 : index
    %c72_23 = arith.constant 72 : index
    %74 = vector.load %arg6[%c0_22, %c72_23] : memref<8x216xbf16, #tpu.memory_space<vmem>>, vector<8x72xbf16>
    %cst_24 = arith.constant dense<0.000000e+00> : vector<8x896xf32>
    %75 = tpu.matmul %74, %73, %cst_24 {dimension_numbers = #tpu.dot_dimension_numbers<[1], [0], [0], [1], [0, 0, 1, 1], [], []>} : vector<8x72xbf16>, vector<72x896xbf16>, vector<8x896xf32> -> vector<8x896xf32>
    %76 = arith.addf %63, %75 : vector<8x896xf32>
    %77 = vector.extract_strided_slice %51 {offsets = [0, 217], sizes = [8, 896], strides = [1, 1]} : vector<8x1152xbf16> to vector<8x896xbf16>
    %78 = vector.extract_strided_slice %51 {offsets = [0, 218], sizes = [8, 896], strides = [1, 1]} : vector<8x1152xbf16> to vector<8x896xbf16>
    %79 = vector.extract_strided_slice %51 {offsets = [0, 219], sizes = [8, 896], strides = [1, 1]} : vector<8x1152xbf16> to vector<8x896xbf16>
    %80 = vector.extract_strided_slice %51 {offsets = [0, 227], sizes = [8, 896], strides = [1, 1]} : vector<8x1152xbf16> to vector<8x896xbf16>
    %81 = vector.extract_strided_slice %51 {offsets = [0, 228], sizes = [8, 896], strides = [1, 1]} : vector<8x1152xbf16> to vector<8x896xbf16>
    %82 = vector.extract_strided_slice %51 {offsets = [0, 229], sizes = [8, 896], strides = [1, 1]} : vector<8x1152xbf16> to vector<8x896xbf16>
    %83 = vector.extract_strided_slice %51 {offsets = [0, 237], sizes = [8, 896], strides = [1, 1]} : vector<8x1152xbf16> to vector<8x896xbf16>
    %84 = vector.extract_strided_slice %51 {offsets = [0, 238], sizes = [8, 896], strides = [1, 1]} : vector<8x1152xbf16> to vector<8x896xbf16>
    %85 = vector.extract_strided_slice %51 {offsets = [0, 239], sizes = [8, 896], strides = [1, 1]} : vector<8x1152xbf16> to vector<8x896xbf16>
    %86 = tpu.concatenate %77, %78, %79, %80, %81, %82, %83, %84, %85 in 0 : vector<8x896xbf16>, vector<8x896xbf16>, vector<8x896xbf16>, vector<8x896xbf16>, vector<8x896xbf16>, vector<8x896xbf16>, vector<8x896xbf16>, vector<8x896xbf16>, vector<8x896xbf16> -> vector<72x896xbf16>
    %c0_25 = arith.constant 0 : index
    %c144 = arith.constant 144 : index
    %87 = vector.load %arg6[%c0_25, %c144] : memref<8x216xbf16, #tpu.memory_space<vmem>>, vector<8x72xbf16>
    %cst_26 = arith.constant dense<0.000000e+00> : vector<8x896xf32>
    %88 = tpu.matmul %87, %86, %cst_26 {dimension_numbers = #tpu.dot_dimension_numbers<[1], [0], [0], [1], [0, 0, 1, 1], [], []>} : vector<8x72xbf16>, vector<72x896xbf16>, vector<8x896xf32> -> vector<8x896xf32>
    %89 = arith.addf %76, %88 : vector<8x896xf32>
    %c0_27 = arith.constant 0 : index
    %c0_28 = arith.constant 0 : index
    %90 = vector.load %arg7[%c0_27, %c0_28] : memref<8x1xf32, #tpu.memory_space<vmem>>, vector<8x1xf32>
    %91 = vector.broadcast %90 : vector<8x1xf32> to vector<8x896xf32>
    %92 = arith.addf %89, %91 : vector<8x896xf32>
    %93 = vector.shape_cast %92 : vector<8x896xf32> to vector<1x8x896xf32>
    %c0_29 = arith.constant 0 : index
    %c0_30 = arith.constant 0 : index
    %c0_31 = arith.constant 0 : index
    %94 = vector.load %arg8[%c0_29, %c0_30, %c0_31] : memref<1x8x896xf32, #tpu.memory_space<vmem>>, vector<1x8x896xf32>
    tpu.vector_store %arg8[%c0_29, %c0_30, %c0_31], %93 {strides = array<i32>} : memref<1x8x896xf32, #tpu.memory_space<vmem>>, vector<1x8x896xf32>,
    return
  }
  func.func @transform_0(%arg0: i32, %arg1: i32) -> (i32, i32, i32, i32) {
    %c0_i32 = arith.constant 0 : i32
    %c0_i32_0 = arith.constant 0 : i32
    %c0_i32_1 = arith.constant 0 : i32
    return %arg0, %arg1, %c0_i32, %c0_i32_0 : i32, i32, i32, i32
  }
  func.func @transform_1(%arg0: i32, %arg1: i32) -> (i32, i32, i32) {
    %c0_i32 = arith.constant 0 : i32
    %c0_i32_0 = arith.constant 0 : i32
    %c0_i32_1 = arith.constant 0 : i32
    return %arg1, %c0_i32, %c0_i32_0 : i32, i32, i32
  }
  func.func @transform_2(%arg0: i32, %arg1: i32) -> (i32, i32) {
    %c0_i32 = arith.constant 0 : i32
    %c0_i32_0 = arith.constant 0 : i32
    %c0_i32_1 = arith.constant 0 : i32
    return %c0_i32, %c0_i32_0 : i32, i32
  }
  func.func @transform_3(%arg0: i32, %arg1: i32) -> (i32, i32) {
    %c0_i32 = arith.constant 0 : i32
    %c0_i32_0 = arith.constant 0 : i32
    %c0_i32_1 = arith.constant 0 : i32
    return %c0_i32, %c0_i32_0 : i32, i32
  }
  func.func @transform_4(%arg0: i32, %arg1: i32) -> (i32, i32) {
    %c0_i32 = arith.constant 0 : i32
    %c0_i32_0 = arith.constant 0 : i32
    %c0_i32_1 = arith.constant 0 : i32
    return %c0_i32, %c0_i32_0 : i32, i32
  }
  func.func @transform_5(%arg0: i32, %arg1: i32) -> (i32, i32) {
    %c0_i32 = arith.constant 0 : i32
    %c0_i32_0 = arith.constant 0 : i32
    %c0_i32_1 = arith.constant 0 : i32
    return %c0_i32, %c0_i32_0 : i32, i32
  }
  func.func @transform_6(%arg0: i32, %arg1: i32) -> (i32, i32, i32) {
    %c0_i32 = arith.constant 0 : i32
    %c0_i32_0 = arith.constant 0 : i32
    return %arg0, %c0_i32, %arg1 : i32, i32, i32
  }
}

</mosaic_0001>

<llo_original>
// kernel: tpu_custom_call.1
$region0: #{tpu_custom_call.1}
  #allocation0 [shape = 'u32[]', space=smem, size = 0x4, offset = 0x4, fixed_abs, tag = 'smem constant byte address 0x4 - core index']
  #allocation1 [shape = 'u32[72,128]{1,0:T(1,128)}', space=vmem, size = 0x9000, scoped, tag = 'internal scratch']
  #allocation2 [shape = 'bf16[8,1152]{1,0:T(8,128)(2,1)}', space=vmem, size = 0x4800, scoped, tag = 'scratch operand']
  %s0 = inlined_call_operand.hbm [shape: bf16[2,1,4,1408], index: 0, kind: input, shape index: {}]
  %s1 = inlined_call_operand.vmem [shape: f32[1,1,1152], index: 1, kind: input, shape index: {}]
  %s2 = inlined_call_operand.hbm [shape: bf16[8,108], index: 2, kind: input, shape index: {}]
  %s3 = inlined_call_operand.vmem [shape: f32[8,1], index: 3, kind: input, shape index: {}]
  %s4 = inlined_call_operand.vmem [shape: bf16[8,216], index: 4, kind: input, shape index: {}]
  %s5 = inlined_call_operand.vmem [shape: f32[8,1], index: 5, kind: input, shape index: {}]
  %s6 = inlined_call_operand.hbm [shape: f32[2,8,896], index: 6, kind: output, shape index: {}]
  %s7 = sld [smem:[#allocation0]]
  $region65: #{tpu_custom_call.1} parent=0
    _
  %s9 = ssub.s32 1, %s7
  %s10 = scalar_select 0, %s9, %s7
  $region1: #{tpu_custom_call.1} parent=0
    #allocation3 [shape = 'u8[22528]{0}', space=vmem, size = 0x5800, scoped, tag = 'input window, operand 0']
    #allocation4 [shape = 's32[2]{0}', space=sflag, size = 0x8, scoped, tag = 'scoped memory for tpu_custom_call.1']
    #allocation5 [shape = 's32[2]{0}', space=sflag, size = 0x8, scoped, tag = 'scoped memory for tpu_custom_call.1']
    #allocation6 [shape = 'u8[2048]{0}', space=vmem, size = 0x800, scoped, tag = 'input window, operand 2, single buffered']
    #allocation7 [shape = 's32[1]{0}', space=sflag, size = 0x4, scoped, tag = 'scoped memory for tpu_custom_call.1']
    #allocation8 [shape = 'u8[57344]{0}', space=vmem, size = 0xe000, scoped, tag = 'output window, operand 0']
    %11 = vsyncpa [#allocation4], 0
    %s12 = scalar_lea.sflag [#allocation4], 1
    %13 = vsyncpa %s12, 0
    %14 = vsyncpa [#allocation7], 0
    %15 = vsyncpa [#allocation5], 0
    %s16 = scalar_lea.sflag [#allocation5], 1
    %17 = vsyncpa %s16, 0
    loop: start=0, step=1, limit=4
    $region2: #{tpu_custom_call.1} parent=1 // loop_pre_header
      _
    $region3: #{tpu_custom_call.1} parent=1 // loop_header
      %s19 = sphi 0, %s23
      %p20 = scmp.ge.s32.totalorder %s19, 4
      %s26 = sphi 0, %s38
      %s27 = sphi 0, %s34
      %s28 = sphi 0, %s26
      %s29 = sphi 0, %s27
      %s30 = sphi 0, %s28
      %s31 = sphi 0, %s29
      %s43 = sphi 0, %s45
      %s46 = sphi 0, %s43
      %s47 = sphi 0, %s46
      %s63 = sphi 0, %s47
      %s69 = sphi 0, %s71
      %s72 = sphi 0, %s69
      %s73 = sphi 0, %s72
      %s89 = sphi 0, %s73
      %s93 = sphi 0, %s93
      %s95 = sphi 0, %s93
      %s96 = sphi 0, %s95
      %s110 = sphi 0, %s96
      %s114 = sphi 0, %s114
      %s116 = sphi 0, %s114
      %s117 = sphi 0, %s116
      %s131 = sphi 0, %s117
      %s135 = sphi 0, %s135
      %s137 = sphi 0, %s135
      %s138 = sphi 0, %s137
      %s152 = sphi 0, %s138
      %s156 = sphi 0, %s156
      %s158 = sphi 0, %s156
      %s159 = sphi 0, %s158
      %s173 = sphi 0, %s159
      %s181 = sphi 0, %s183
      %s184 = sphi 0, %s181
      %s185 = sphi 0, %s184
      %s201 = sphi 0, %s185
    $region4: #{tpu_custom_call.1} parent=1 // loop_header_branch
      %22 = sbr.rel (%p20) target = $region8
    $region5: #{tpu_custom_call.1} parent=1 // loop_body
      %s24 = ssub.s32 %s19, 1
      %s25 = ssub.s32 %s19, 2
      %s32 = sadd.s32 1, %s27
      %p33 = scmp.ge.s32.totalorder %s32, 1
      %s34 = scalar_select %p33, 0, %s32
      %s35 = sadd.s32 1, %s26
      %s36 = scalar_select %p33, %s35, %s26
      %p37 = scmp.ge.s32.totalorder %s36, 2
      %s38 = scalar_select %p37, 0, %s36
      %s39 = ssub.s32 %s26, %s38
      %s40 = ssub.s32 %s27, %s34
      %s41 = sor.u32 %s39, %s40
      %p42 = scmp.eq.s32.totalorder %s41, 0
      %s44 = sadd.s32 %s43, 1
      %s45 = scalar_select %p42, %s43, %s44
      %p48 = pneg %p42
      %p49 = scmp.eq.s32.totalorder %s19, 1
      %p50 = por %p48, %p49
      %p51 = scmp.ne.s32.totalorder %s43, %s46
      %p52 = scmp.eq.s32.totalorder %s19, 0
      %p53 = por %p51, %p52
      %p54 = scmp.ne.s32.totalorder %s43, %s46
      %p55 = scmp.eq.s32.totalorder %s24, 1
      %p56 = por %p54, %p55
      %p57 = scmp.ne.s32.totalorder %s46, %s47
      %p58 = scmp.eq.s32.totalorder %s24, 0
      %p59 = por %p57, %p58
      %p60 = scmp.ne.s32.totalorder %s46, %s47
      %p61 = scmp.eq.s32.totalorder %s25, 1
      %p62 = por %p60, %p61
      %p64 = scmp.ne.s32.totalorder %s47, %s63
      %p65 = scmp.eq.s32.totalorder %s25, 0
      %p66 = por %p64, %p65
      %s67 = ssub.s32 %s27, %s34
      %p68 = scmp.eq.s32.totalorder %s67, 0
      %s70 = sadd.s32 %s69, 1
      %s71 = scalar_select %p68, %s69, %s70
      %p74 = pneg %p68
      %p75 = scmp.eq.s32.totalorder %s19, 1
      %p76 = por %p74, %p75
      %p77 = scmp.ne.s32.totalorder %s69, %s72
      %p78 = scmp.eq.s32.totalorder %s19, 0
      %p79 = por %p77, %p78
      %p80 = scmp.ne.s32.totalorder %s69, %s72
      %p81 = scmp.eq.s32.totalorder %s24, 1
      %p82 = por %p80, %p81
      %p83 = scmp.ne.s32.totalorder %s72, %s73
      %p84 = scmp.eq.s32.totalorder %s24, 0
      %p85 = por %p83, %p84
      %p86 = scmp.ne.s32.totalorder %s72, %s73
      %p87 = scmp.eq.s32.totalorder %s25, 1
      %p88 = por %p86, %p87
      %p90 = scmp.ne.s32.totalorder %s73, %s89
      %p91 = scmp.eq.s32.totalorder %s25, 0
      %p92 = por %p90, %p91
      %s94 = sadd.s32 %s93, 1
      %p97 = scmp.eq.s32.totalorder %s19, 1
      %p98 = scmp.ne.s32.totalorder %s93, %s95
      %p99 = scmp.eq.s32.totalorder %s19, 0
      %p100 = por %p98, %p99
      %p101 = scmp.ne.s32.totalorder %s93, %s95
      %p102 = scmp.eq.s32.totalorder %s24, 1
      %p103 = por %p101, %p102
      %p104 = scmp.ne.s32.totalorder %s95, %s96
      %p105 = scmp.eq.s32.totalorder %s24, 0
      %p106 = por %p104, %p105
      %p107 = scmp.ne.s32.totalorder %s95, %s96
      %p108 = scmp.eq.s32.totalorder %s25, 1
      %p109 = por %p107, %p108
      %p111 = scmp.ne.s32.totalorder %s96, %s110
      %p112 = scmp.eq.s32.totalorder %s25, 0
      %p113 = por %p111, %p112
      %s115 = sadd.s32 %s114, 1
      %p118 = scmp.eq.s32.totalorder %s19, 1
      %p119 = scmp.ne.s32.totalorder %s114, %s116
      %p120 = scmp.eq.s32.totalorder %s19, 0
      %p121 = por %p119, %p120
      %p122 = scmp.ne.s32.totalorder %s114, %s116
      %p123 = scmp.eq.s32.totalorder %s24, 1
      %p124 = por %p122, %p123
      %p125 = scmp.ne.s32.totalorder %s116, %s117
      %p126 = scmp.eq.s32.totalorder %s24, 0
      %p127 = por %p125, %p126
      %p128 = scmp.ne.s32.totalorder %s116, %s117
      %p129 = scmp.eq.s32.totalorder %s25, 1
      %p130 = por %p128, %p129
      %p132 = scmp.ne.s32.totalorder %s117, %s131
      %p133 = scmp.eq.s32.totalorder %s25, 0
      %p134 = por %p132, %p133
      %s136 = sadd.s32 %s135, 1
      %p139 = scmp.eq.s32.totalorder %s19, 1
      %p140 = scmp.ne.s32.totalorder %s135, %s137
      %p141 = scmp.eq.s32.totalorder %s19, 0
      %p142 = por %p140, %p141
      %p143 = scmp.ne.s32.totalorder %s135, %s137
      %p144 = scmp.eq.s32.totalorder %s24, 1
      %p145 = por %p143, %p144
      %p146 = scmp.ne.s32.totalorder %s137, %s138
      %p147 = scmp.eq.s32.totalorder %s24, 0
      %p148 = por %p146, %p147
      %p149 = scmp.ne.s32.totalorder %s137, %s138
      %p150 = scmp.eq.s32.totalorder %s25, 1
      %p151 = por %p149, %p150
      %p153 = scmp.ne.s32.totalorder %s138, %s152
      %p154 = scmp.eq.s32.totalorder %s25, 0
      %p155 = por %p153, %p154
      %s157 = sadd.s32 %s156, 1
      %p160 = scmp.eq.s32.totalorder %s19, 1
      %p161 = scmp.ne.s32.totalorder %s156, %s158
      %p162 = scmp.eq.s32.totalorder %s19, 0
      %p163 = por %p161, %p162
      %p164 = scmp.ne.s32.totalorder %s156, %s158
      %p165 = scmp.eq.s32.totalorder %s24, 1
      %p166 = por %p164, %p165
      %p167 = scmp.ne.s32.totalorder %s158, %s159
      %p168 = scmp.eq.s32.totalorder %s24, 0
      %p169 = por %p167, %p168
      %p170 = scmp.ne.s32.totalorder %s158, %s159
      %p171 = scmp.eq.s32.totalorder %s25, 1
      %p172 = por %p170, %p171
      %p174 = scmp.ne.s32.totalorder %s159, %s173
      %p175 = scmp.eq.s32.totalorder %s25, 0
      %p176 = por %p174, %p175
      %s177 = ssub.s32 %s26, %s38
      %s178 = ssub.s32 %s27, %s34
      %s179 = sor.u32 %s177, %s178
      %p180 = scmp.eq.s32.totalorder %s179, 0
      %s182 = sadd.s32 %s181, 1
      %s183 = scalar_select %p180, %s181, %s182
      %p186 = pneg %p180
      %p187 = scmp.eq.s32.totalorder %s19, 1
      %p188 = por %p186, %p187
      %p189 = scmp.ne.s32.totalorder %s181, %s184
      %p190 = scmp.eq.s32.totalorder %s19, 0
      %p191 = por %p189, %p190
      %p192 = scmp.ne.s32.totalorder %s181, %s184
      %p193 = scmp.eq.s32.totalorder %s24, 1
      %p194 = por %p192, %p193
      %p195 = scmp.ne.s32.totalorder %s184, %s185
      %p196 = scmp.eq.s32.totalorder %s24, 0
      %p197 = por %p195, %p196
      %p198 = scmp.ne.s32.totalorder %s184, %s185
      %p199 = scmp.eq.s32.totalorder %s25, 1
      %p200 = por %p198, %p199
      %p202 = scmp.ne.s32.totalorder %s185, %s201
      %p203 = scmp.eq.s32.totalorder %s25, 0
      %p204 = por %p202, %p203
      %p205 = scmp.le.s32.totalorder 1, %s19
      %p206 = scmp.lt.s32.totalorder %s19, 3
      %p207 = pnand %p205, %p206
      %p208 = pneg %p207
      // Predicated region
      $region9: #{tpu_custom_call.1} parent=5 // pred_check
        _
      $region10: #{tpu_custom_call.1} parent=5 // pred_check_branch
        %210 = sbr.rel (%p207) target = $region12
      $region11: #{tpu_custom_call.1} parent=5 // pred_region
        %s211 = ssub.s32 %s19, 1
        // Predicated region
        $region13: #{tpu_custom_call.1} parent=11 // pred_check
          %p212 = pneg %p85
        $region14: #{tpu_custom_call.1} parent=11 // pred_check_branch
          %214 = sbr.rel (%p212) target = $region16
        $region15: #{tpu_custom_call.1} parent=11 // pred_region
          %p215 = scmp.lt.s32.totalorder %s29, 0
          %s216 = scalar_select %p215, %s29, 0
          %s217 = smul.addr %s216, 9
          %s218 = scalar_lea.vmem %s1, %s217
        $region16: #{tpu_custom_call.1} parent=11 // pred_fallthru
          _
        // Predicated region
        $region17: #{tpu_custom_call.1} parent=11 // pred_check
          %p219 = pneg %p106
        $region18: #{tpu_custom_call.1} parent=11 // pred_check_branch
          %221 = sbr.rel (%p219) target = $region20
        $region19: #{tpu_custom_call.1} parent=11 // pred_region
          %223 = vsyncadd [#allocation7], 0
          %s225 = sshll.u32 %s2, 4
          %s226 = int_to_ptr.hbm [resolvable:$true] %s225
          %s227 = sshll.u32 [#allocation6], 4
          %s228 = int_to_ptr.vmem [resolvable:$true] %s227
          %230 = dma.hbm_to_vmem [thread:$0]  %s226, 64, %s228, [#allocation7]
        $region20: #{tpu_custom_call.1} parent=11 // pred_fallthru
          _
        // Predicated region
        $region21: #{tpu_custom_call.1} parent=11 // pred_check
          %p231 = pneg %p127
        $region22: #{tpu_custom_call.1} parent=11 // pred_check_branch
          %233 = sbr.rel (%p231) target = $region24
        $region23: #{tpu_custom_call.1} parent=11 // pred_region
          _
        $region24: #{tpu_custom_call.1} parent=11 // pred_fallthru
          _
        // Predicated region
        $region25: #{tpu_custom_call.1} parent=11 // pred_check
          %p234 = pneg %p148
        $region26: #{tpu_custom_call.1} parent=11 // pred_check_branch
          %236 = sbr.rel (%p234) target = $region28
        $region27: #{tpu_custom_call.1} parent=11 // pred_region
          _
        $region28: #{tpu_custom_call.1} parent=11 // pred_fallthru
          _
        // Predicated region
        $region29: #{tpu_custom_call.1} parent=11 // pred_check
          %p237 = pneg %p169
        $region30: #{tpu_custom_call.1} parent=11 // pred_check_branch
          %239 = sbr.rel (%p237) target = $region32
        $region31: #{tpu_custom_call.1} parent=11 // pred_region
          _
        $region32: #{tpu_custom_call.1} parent=11 // pred_fallthru
          _
      $region12: #{tpu_custom_call.1} parent=5 // pred_fallthru
        _
      %p240 = scmp.lt.s32.totalorder %s19, 2
      // Predicated region
      $region33: #{tpu_custom_call.1} parent=5 // pred_check
        %p241 = pneg %p240
      $region34: #{tpu_custom_call.1} parent=5 // pred_check_branch
        %243 = sbr.rel (%p241) target = $region36
      $region35: #{tpu_custom_call.1} parent=5 // pred_region
        // Predicated region
        $region37: #{tpu_custom_call.1} parent=35 // pred_check
          %p244 = pneg %p53
        $region38: #{tpu_custom_call.1} parent=35 // pred_check_branch
          %246 = sbr.rel (%p244) target = $region40
        $region39: #{tpu_custom_call.1} parent=35 // pred_region
          %s247 = sand.u32 %s43, 1
          %s248 = scalar_lea.sflag [#allocation4], %s247
          %s249 = sand.u32 %s43, 1
          %s250 = smul.addr %s249, 22
          %s251 = scalar_lea.vmem [#allocation3], %s250
          %253 = vsyncadd %s248, 0
          %s254 = smul.addr %s27, 11
          %s255 = smul.addr %s26, 11
          %s256 = sadd.s32 %s254, %s255
          %s257 = smul.addr %s256, 2
          %s258 = scalar_lea.hbm %s0, %s257
          %s260 = sshll.u32 %s258, 4
          %s261 = int_to_ptr.hbm [resolvable:$true] %s260
          %s262 = sshll.u32 %s251, 4
          %s263 = int_to_ptr.vmem [resolvable:$true] %s262
          %265 = dma.hbm_to_vmem [thread:$0]  %s261, 352, %s263, %s248
        $region40: #{tpu_custom_call.1} parent=35 // pred_fallthru
          _
      $region36: #{tpu_custom_call.1} parent=5 // pred_fallthru
        _
      %p266 = scmp.le.s32.totalorder 1, %s19
      %p267 = scmp.lt.s32.totalorder %s19, 3
      %p268 = pnand %p266, %p267
      %p269 = pneg %p268
      // Predicated region
      $region41: #{tpu_custom_call.1} parent=5 // pred_check
        _
      $region42: #{tpu_custom_call.1} parent=5 // pred_check_branch
        %271 = sbr.rel (%p268) target = $region44
      $region43: #{tpu_custom_call.1} parent=5 // pred_region
        %s272 = ssub.s32 %s19, 1
        %s273 = sand.u32 %s46, 1
        %s274 = scalar_lea.sflag [#allocation4], %s273
        %s275 = sand.u32 %s46, 1
        %s276 = smul.addr %s275, 22
        %s277 = scalar_lea.vmem [#allocation3], %s276
        // Predicated region
        $region45: #{tpu_custom_call.1} parent=43 // pred_check
          %p278 = pneg %p59
        $region46: #{tpu_custom_call.1} parent=43 // pred_check_branch
          %280 = sbr.rel (%p278) target = $region48
        $region47: #{tpu_custom_call.1} parent=43 // pred_region
          %282 = dma.done %s274, 352
        $region48: #{tpu_custom_call.1} parent=43 // pred_fallthru
          _
        // Predicated region
        $region49: #{tpu_custom_call.1} parent=43 // pred_check
          %p283 = pneg %p106
        $region50: #{tpu_custom_call.1} parent=43 // pred_check_branch
          %285 = sbr.rel (%p283) target = $region52
        $region51: #{tpu_custom_call.1} parent=43 // pred_region
          %287 = dma.done [#allocation7], 64
        $region52: #{tpu_custom_call.1} parent=43 // pred_fallthru
          _
        %s288 = sand.u32 %s46, 1
        %s289 = scalar_lea.sflag [#allocation4], %s288
        %s290 = sand.u32 %s46, 1
        %s291 = smul.addr %s290, 22
        %s292 = scalar_lea.vmem [#allocation3], %s291
        %p293 = pneg %p59
        %p294 = pneg %p56
        %p295 = scmp.lt.s32.totalorder %s29, 0
        %s296 = scalar_select %p295, %s29, 0
        %s297 = smul.addr %s296, 9
        %s298 = scalar_lea.vmem %s1, %s297
        %p299 = pneg %p85
        %p300 = pneg %p82
        %p301 = pneg %p106
        %p302 = pneg %p103
        %p303 = pneg %p127
        %p304 = pneg %p124
        %p305 = pneg %p148
        %p306 = pneg %p145
        %p307 = pneg %p169
        %p308 = pneg %p166
        %p309 = pneg %p197
        %p310 = pneg %p194
        %s311 = sand.u32 %s184, 1
        %s312 = scalar_lea.sflag [#allocation5], %s311
        %s313 = sand.u32 %s184, 1
        %s314 = smul.addr %s313, 56
        %s315 = scalar_lea.vmem [#allocation8], %s314
        %p316 = scmp.lt.s32.totalorder %s29, 0
        %s317 = scalar_select %p316, %s29, 0
        %s318 = smul.addr %s317, 9
        %s319 = scalar_lea.vmem %s1, %s318
        %s320 = smul.u32 7, %s29
        %v322 = vld [vmem:[%s277] sm:$0xff]
        %v323 = vld [vmem:[%s277 + $0x8] sm:$0xff]
        %v324 = vld [vmem:[%s277 + $0x10] sm:$0x3f]
        %v325 = vld [vmem:[%s319] sm:$0xff]
        %v326 = vld [vmem:[%s319 + $0x8] sm:$0x1]
        %328 = vst [vmem:[#allocation1] ss:$4 sm:$0xff] %v322
        %s330 = scalar_lea.vmem [#allocation1], 32
        %331 = vst [vmem:[%s330] ss:$4 sm:$0xff] %v323
        %v332 = vld.sshfl [vmem:[#allocation1] sm:$0xff pattern:$0x73625140]
        %v333 = vld.sshfl [vmem:[#allocation1 + $0x8] sm:$0xff pattern:$0x73625140]
        %v334 = vld.sshfl [vmem:[#allocation1 + $0x10] sm:$0xff pattern:$0x73625140]
        %v335 = vld.sshfl [vmem:[#allocation1 + $0x18] sm:$0xff pattern:$0x73625140]
        %v336 = vld.sshfl [vmem:[#allocation1 + $0x20] sm:$0xff pattern:$0x73625140]
        %v337 = vld.sshfl [vmem:[#allocation1 + $0x28] sm:$0xff pattern:$0x73625140]
        %v338 = vld.sshfl [vmem:[#allocation1 + $0x30] sm:$0xff pattern:$0x73625140]
        %v339 = vld.sshfl [vmem:[#allocation1 + $0x38] sm:$0xff pattern:$0x73625140]
        %341 = vst [vmem:[#allocation1] ss:$4 sm:$0xff] %v324
        %v342 = vld.sshfl [vmem:[#allocation1] sm:$0xff pattern:$0x73625140]
        %v343 = vld.sshfl [vmem:[#allocation1 + $0x8] sm:$0xff pattern:$0x73625140]
        %s344 = scalar_lea.vmem [#allocation1], 1
        %345 = vst [vmem:[%s344] ss:$4 sm:$0xff] %v322
        %s346 = scalar_lea.vmem [#allocation1], 33
        %347 = vst [vmem:[%s346] ss:$4 sm:$0xff] %v323
        %v348 = vld.sshfl [vmem:[#allocation1] sm:$0xff pattern:$0x73625140]
        %v350 = vld.sshfl [vmem:[#allocation1 + $0x8] sm:$0xff pattern:$0x73625140]
        %v352 = vld.sshfl [vmem:[#allocation1 + $0x10] sm:$0xff pattern:$0x73625140]
        %v354 = vld.sshfl [vmem:[#allocation1 + $0x18] sm:$0xff pattern:$0x73625140]
        %v356 = vld.sshfl [vmem:[#allocation1 + $0x20] sm:$0xff pattern:$0x73625140]
        %v358 = vld.sshfl [vmem:[#allocation1 + $0x28] sm:$0xff pattern:$0x73625140]
        %v360 = vld.sshfl [vmem:[#allocation1 + $0x30] sm:$0xff pattern:$0x73625140]
        %v362 = vld.sshfl [vmem:[#allocation1 + $0x38] sm:$0xff pattern:$0x73625140]
        %364 = vst [vmem:[%s344] ss:$4 sm:$0xff] %v324
        %v365 = vld.sshfl [vmem:[#allocation1] sm:$0xff pattern:$0x73625140]
        %v367 = vld.sshfl [vmem:[#allocation1 + $0x8] sm:$0xff pattern:$0x73625140]
        %369 = vrot.lane.b32.xlu0 %v348, 127
        %v370 = vpop.permute.xlu0 %369
        %371 = vrot.lane.b32.xlu0 %v350, 127
        %v372 = vpop.permute.xlu0 %371
        %373 = vrot.lane.b32.xlu0 %v352, 127
        %v374 = vpop.permute.xlu0 %373
        %375 = vrot.lane.b32.xlu0 %v354, 127
        %v376 = vpop.permute.xlu0 %375
        %377 = vrot.lane.b32.xlu0 %v356, 127
        %v378 = vpop.permute.xlu0 %377
        %379 = vrot.lane.b32.xlu0 %v358, 127
        %v380 = vpop.permute.xlu0 %379
        %381 = vrot.lane.b32.xlu0 %v360, 127
        %v382 = vpop.permute.xlu0 %381
        %383 = vrot.lane.b32.xlu0 %v362, 127
        %v384 = vpop.permute.xlu0 %383
        %385 = vrot.lane.b32.xlu0 %v365, 127
        %v386 = vpop.permute.xlu0 %385
        %387 = vrot.lane.b32.xlu0 %v367, 127
        %v388 = vpop.permute.xlu0 %387
        %vm389 = vcmask 1039360
        %v390 = vsel %vm389, %v370, %v372
        %v391 = vsel %vm389, %v372, %v374
        %v392 = vsel %vm389, %v374, %v376
        %v393 = vsel %vm389, %v376, %v378
        %v394 = vsel %vm389, %v378, %v380
        %v395 = vsel %vm389, %v380, %v382
        %v396 = vsel %vm389, %v382, %v384
        %v397 = vsel %vm389, %v384, %v386
        %v398 = vsel %vm389, %v386, %v388
        %s399 = scalar_lea.vmem [#allocation1], 2
        %400 = vst [vmem:[%s399] ss:$4 sm:$0xff] %v322
        %s401 = scalar_lea.vmem [#allocation1], 34
        %402 = vst [vmem:[%s401] ss:$4 sm:$0xff] %v323
        %v403 = vld.sshfl [vmem:[#allocation1] sm:$0xff pattern:$0x73625140]
        %v405 = vld.sshfl [vmem:[#allocation1 + $0x8] sm:$0xff pattern:$0x73625140]
        %v407 = vld.sshfl [vmem:[#allocation1 + $0x10] sm:$0xff pattern:$0x73625140]
        %v409 = vld.sshfl [vmem:[#allocation1 + $0x18] sm:$0xff pattern:$0x73625140]
        %v411 = vld.sshfl [vmem:[#allocation1 + $0x20] sm:$0xff pattern:$0x73625140]
        %v413 = vld.sshfl [vmem:[#allocation1 + $0x28] sm:$0xff pattern:$0x73625140]
        %v415 = vld.sshfl [vmem:[#allocation1 + $0x30] sm:$0xff pattern:$0x73625140]
        %v417 = vld.sshfl [vmem:[#allocation1 + $0x38] sm:$0xff pattern:$0x73625140]
        %419 = vst [vmem:[%s399] ss:$4 sm:$0xff] %v324
        %v420 = vld.sshfl [vmem:[#allocation1] sm:$0xff pattern:$0x73625140]
        %v422 = vld.sshfl [vmem:[#allocation1 + $0x8] sm:$0xff pattern:$0x73625140]
        %424 = vrot.lane.b32.xlu0 %v403, 126
        %v425 = vpop.permute.xlu0 %424
        %426 = vrot.lane.b32.xlu0 %v405, 126
        %v427 = vpop.permute.xlu0 %426
        %428 = vrot.lane.b32.xlu0 %v407, 126
        %v429 = vpop.permute.xlu0 %428
        %430 = vrot.lane.b32.xlu0 %v409, 126
        %v431 = vpop.permute.xlu0 %430
        %432 = vrot.lane.b32.xlu0 %v411, 126
        %v433 = vpop.permute.xlu0 %432
        %434 = vrot.lane.b32.xlu0 %v413, 126
        %v435 = vpop.permute.xlu0 %434
        %436 = vrot.lane.b32.xlu0 %v415, 126
        %v437 = vpop.permute.xlu0 %436
        %438 = vrot.lane.b32.xlu0 %v417, 126
        %v439 = vpop.permute.xlu0 %438
        %440 = vrot.lane.b32.xlu0 %v420, 126
        %v441 = vpop.permute.xlu0 %440
        %442 = vrot.lane.b32.xlu0 %v422, 126
        %v443 = vpop.permute.xlu0 %442
        %vm444 = vcmask 1031168
        %v445 = vsel %vm444, %v425, %v427
        %v446 = vsel %vm444, %v427, %v429
        %v447 = vsel %vm444, %v429, %v431
        %v448 = vsel %vm444, %v431, %v433
        %v449 = vsel %vm444, %v433, %v435
        %v450 = vsel %vm444, %v435, %v437
        %v451 = vsel %vm444, %v437, %v439
        %v452 = vsel %vm444, %v439, %v441
        %v453 = vsel %vm444, %v441, %v443
        %s454 = scalar_lea.vmem [#allocation1], 3
        %455 = vst [vmem:[%s454] ss:$4 sm:$0xff] %v322
        %s456 = scalar_lea.vmem [#allocation1], 35
        %457 = vst [vmem:[%s456] ss:$4 sm:$0xff] %v323
        %v458 = vld.sshfl [vmem:[#allocation1] sm:$0xff pattern:$0x73625140]
        %v460 = vld.sshfl [vmem:[#allocation1 + $0x8] sm:$0xff pattern:$0x73625140]
        %v462 = vld.sshfl [vmem:[#allocation1 + $0x10] sm:$0xff pattern:$0x73625140]
        %v464 = vld.sshfl [vmem:[#allocation1 + $0x18] sm:$0xff pattern:$0x73625140]
        %v466 = vld.sshfl [vmem:[#allocation1 + $0x20] sm:$0xff pattern:$0x73625140]
        %v468 = vld.sshfl [vmem:[#allocation1 + $0x28] sm:$0xff pattern:$0x73625140]
        %v470 = vld.sshfl [vmem:[#allocation1 + $0x30] sm:$0xff pattern:$0x73625140]
        %v472 = vld.sshfl [vmem:[#allocation1 + $0x38] sm:$0xff pattern:$0x73625140]
        %474 = vst [vmem:[%s454] ss:$4 sm:$0xff] %v324
        %v475 = vld.sshfl [vmem:[#allocation1] sm:$0xff pattern:$0x73625140]
        %v477 = vld.sshfl [vmem:[#allocation1 + $0x8] sm:$0xff pattern:$0x73625140]
        %479 = vrot.lane.b32.xlu0 %v458, 118
        %v480 = vpop.permute.xlu0 %479
        %481 = vrot.lane.b32.xlu0 %v460, 118
        %v482 = vpop.permute.xlu0 %481
        %483 = vrot.lane.b32.xlu0 %v462, 118
        %v484 = vpop.permute.xlu0 %483
        %485 = vrot.lane.b32.xlu0 %v464, 118
        %v486 = vpop.permute.xlu0 %485
        %487 = vrot.lane.b32.xlu0 %v466, 118
        %v488 = vpop.permute.xlu0 %487
        %489 = vrot.lane.b32.xlu0 %v468, 118
        %v490 = vpop.permute.xlu0 %489
        %491 = vrot.lane.b32.xlu0 %v470, 118
        %v492 = vpop.permute.xlu0 %491
        %493 = vrot.lane.b32.xlu0 %v472, 118
        %v494 = vpop.permute.xlu0 %493
        %495 = vrot.lane.b32.xlu0 %v475, 118
        %v496 = vpop.permute.xlu0 %495
        %497 = vrot.lane.b32.xlu0 %v477, 118
        %v498 = vpop.permute.xlu0 %497
        %vm499 = vcmask 965632
        %v500 = vsel %vm499, %v480, %v482
        %v501 = vsel %vm499, %v482, %v484
        %v502 = vsel %vm499, %v484, %v486
        %v503 = vsel %vm499, %v486, %v488
        %v504 = vsel %vm499, %v488, %v490
        %v505 = vsel %vm499, %v490, %v492
        %v506 = vsel %vm499, %v492, %v494
        %v507 = vsel %vm499, %v494, %v496
        %v508 = vsel %vm499, %v496, %v498
        %509 = vst [vmem:[#allocation1] ss:$4 sm:$0xff] %v322
        %s510 = scalar_lea.vmem [#allocation1], 32
        %511 = vst [vmem:[%s510] ss:$4 sm:$0xff] %v323
        %v512 = vld.sshfl [vmem:[#allocation1] sm:$0xff pattern:$0x73625140]
        %v514 = vld.sshfl [vmem:[#allocation1 + $0x8] sm:$0xff pattern:$0x73625140]
        %v516 = vld.sshfl [vmem:[#allocation1 + $0x10] sm:$0xff pattern:$0x73625140]
        %v518 = vld.sshfl [vmem:[#allocation1 + $0x18] sm:$0xff pattern:$0x73625140]
        %v520 = vld.sshfl [vmem:[#allocation1 + $0x20] sm:$0xff pattern:$0x73625140]
        %v522 = vld.sshfl [vmem:[#allocation1 + $0x28] sm:$0xff pattern:$0x73625140]
        %v524 = vld.sshfl [vmem:[#allocation1 + $0x30] sm:$0xff pattern:$0x73625140]
        %v526 = vld.sshfl [vmem:[#allocation1 + $0x38] sm:$0xff pattern:$0x73625140]
        %528 = vst [vmem:[#allocation1] ss:$4 sm:$0xff] %v324
        %v529 = vld.sshfl [vmem:[#allocation1] sm:$0xff pattern:$0x73625140]
        %v531 = vld.sshfl [vmem:[#allocation1 + $0x8] sm:$0xff pattern:$0x73625140]
        %533 = vrot.lane.b32.xlu0 %v512, 117
        %v534 = vpop.permute.xlu0 %533
        %535 = vrot.lane.b32.xlu0 %v514, 117
        %v536 = vpop.permute.xlu0 %535
        %537 = vrot.lane.b32.xlu0 %v516, 117
        %v538 = vpop.permute.xlu0 %537
        %539 = vrot.lane.b32.xlu0 %v518, 117
        %v540 = vpop.permute.xlu0 %539
        %541 = vrot.lane.b32.xlu0 %v520, 117
        %v542 = vpop.permute.xlu0 %541
        %543 = vrot.lane.b32.xlu0 %v522, 117
        %v544 = vpop.permute.xlu0 %543
        %545 = vrot.lane.b32.xlu0 %v524, 117
        %v546 = vpop.permute.xlu0 %545
        %547 = vrot.lane.b32.xlu0 %v526, 117
        %v548 = vpop.permute.xlu0 %547
        %549 = vrot.lane.b32.xlu0 %v529, 117
        %v550 = vpop.permute.xlu0 %549
        %551 = vrot.lane.b32.xlu0 %v531, 117
        %v552 = vpop.permute.xlu0 %551
        %vm553 = vcmask 957440
        %v554 = vsel %vm553, %v534, %v536
        %v555 = vsel %vm553, %v536, %v538
        %v556 = vsel %vm553, %v538, %v540
        %v557 = vsel %vm553, %v540, %v542
        %v558 = vsel %vm553, %v542, %v544
        %v559 = vsel %vm553, %v544, %v546
        %v560 = vsel %vm553, %v546, %v548
        %v561 = vsel %vm553, %v548, %v550
        %v562 = vsel %vm553, %v550, %v552
        %s563 = scalar_lea.vmem [#allocation1], 1
        %564 = vst [vmem:[%s563] ss:$4 sm:$0xff] %v322
        %s565 = scalar_lea.vmem [#allocation1], 33
        %566 = vst [vmem:[%s565] ss:$4 sm:$0xff] %v323
        %v567 = vld.sshfl [vmem:[#allocation1] sm:$0xff pattern:$0x73625140]
        %v569 = vld.sshfl [vmem:[#allocation1 + $0x8] sm:$0xff pattern:$0x73625140]
        %v571 = vld.sshfl [vmem:[#allocation1 + $0x10] sm:$0xff pattern:$0x73625140]
        %v573 = vld.sshfl [vmem:[#allocation1 + $0x18] sm:$0xff pattern:$0x73625140]
        %v575 = vld.sshfl [vmem:[#allocation1 + $0x20] sm:$0xff pattern:$0x73625140]
        %v577 = vld.sshfl [vmem:[#allocation1 + $0x28] sm:$0xff pattern:$0x73625140]
        %v579 = vld.sshfl [vmem:[#allocation1 + $0x30] sm:$0xff pattern:$0x73625140]
        %v581 = vld.sshfl [vmem:[#allocation1 + $0x38] sm:$0xff pattern:$0x73625140]
        %583 = vst [vmem:[%s563] ss:$4 sm:$0xff] %v324
        %v584 = vld.sshfl [vmem:[#allocation1] sm:$0xff pattern:$0x73625140]
        %v586 = vld.sshfl [vmem:[#allocation1 + $0x8] sm:$0xff pattern:$0x73625140]
        %588 = vrot.lane.b32.xlu0 %v567, 116
        %v589 = vpop.permute.xlu0 %588
        %590 = vrot.lane.b32.xlu0 %v569, 116
        %v591 = vpop.permute.xlu0 %590
        %592 = vrot.lane.b32.xlu0 %v571, 116
        %v593 = vpop.permute.xlu0 %592
        %594 = vrot.lane.b32.xlu0 %v573, 116
        %v595 = vpop.permute.xlu0 %594
        %596 = vrot.lane.b32.xlu0 %v575, 116
        %v597 = vpop.permute.xlu0 %596
        %598 = vrot.lane.b32.xlu0 %v577, 116
        %v599 = vpop.permute.xlu0 %598
        %600 = vrot.lane.b32.xlu0 %v579, 116
        %v601 = vpop.permute.xlu0 %600
        %602 = vrot.lane.b32.xlu0 %v581, 116
        %v603 = vpop.permute.xlu0 %602
        %604 = vrot.lane.b32.xlu0 %v584, 116
        %v605 = vpop.permute.xlu0 %604
        %606 = vrot.lane.b32.xlu0 %v586, 116
        %v607 = vpop.permute.xlu0 %606
        %vm608 = vcmask 949248
        %v609 = vsel %vm608, %v589, %v591
        %v610 = vsel %vm608, %v591, %v593
        %v611 = vsel %vm608, %v593, %v595
        %v612 = vsel %vm608, %v595, %v597
        %v613 = vsel %vm608, %v597, %v599
        %v614 = vsel %vm608, %v599, %v601
        %v615 = vsel %vm608, %v601, %v603
        %v616 = vsel %vm608, %v603, %v605
        %v617 = vsel %vm608, %v605, %v607
        %s618 = scalar_lea.vmem [#allocation1], 2
        %619 = vst [vmem:[%s618] ss:$4 sm:$0xff] %v322
        %s620 = scalar_lea.vmem [#allocation1], 34
        %621 = vst [vmem:[%s620] ss:$4 sm:$0xff] %v323
        %v622 = vld.sshfl [vmem:[#allocation1] sm:$0xff pattern:$0x73625140]
        %v624 = vld.sshfl [vmem:[#allocation1 + $0x8] sm:$0xff pattern:$0x73625140]
        %v626 = vld.sshfl [vmem:[#allocation1 + $0x10] sm:$0xff pattern:$0x73625140]
        %v628 = vld.sshfl [vmem:[#allocation1 + $0x18] sm:$0xff pattern:$0x73625140]
        %v630 = vld.sshfl [vmem:[#allocation1 + $0x20] sm:$0xff pattern:$0x73625140]
        %v632 = vld.sshfl [vmem:[#allocation1 + $0x28] sm:$0xff pattern:$0x73625140]
        %v634 = vld.sshfl [vmem:[#allocation1 + $0x30] sm:$0xff pattern:$0x73625140]
        %v636 = vld.sshfl [vmem:[#allocation1 + $0x38] sm:$0xff pattern:$0x73625140]
        %638 = vst [vmem:[%s618] ss:$4 sm:$0xff] %v324
        %v639 = vld.sshfl [vmem:[#allocation1] sm:$0xff pattern:$0x73625140]
        %v641 = vld.sshfl [vmem:[#allocation1 + $0x8] sm:$0xff pattern:$0x73625140]
        %643 = vrot.lane.b32.xlu0 %v622, 108
        %v644 = vpop.permute.xlu0 %643
        %645 = vrot.lane.b32.xlu0 %v624, 108
        %v646 = vpop.permute.xlu0 %645
        %647 = vrot.lane.b32.xlu0 %v626, 108
        %v648 = vpop.permute.xlu0 %647
        %649 = vrot.lane.b32.xlu0 %v628, 108
        %v650 = vpop.permute.xlu0 %649
        %651 = vrot.lane.b32.xlu0 %v630, 108
        %v652 = vpop.permute.xlu0 %651
        %653 = vrot.lane.b32.xlu0 %v632, 108
        %v654 = vpop.permute.xlu0 %653
        %655 = vrot.lane.b32.xlu0 %v634, 108
        %v656 = vpop.permute.xlu0 %655
        %657 = vrot.lane.b32.xlu0 %v636, 108
        %v658 = vpop.permute.xlu0 %657
        %659 = vrot.lane.b32.xlu0 %v639, 108
        %v660 = vpop.permute.xlu0 %659
        %661 = vrot.lane.b32.xlu0 %v641, 108
        %v662 = vpop.permute.xlu0 %661
        %vm663 = vcmask 883712
        %v664 = vsel %vm663, %v644, %v646
        %v665 = vsel %vm663, %v646, %v648
        %v666 = vsel %vm663, %v648, %v650
        %v667 = vsel %vm663, %v650, %v652
        %v668 = vsel %vm663, %v652, %v654
        %v669 = vsel %vm663, %v654, %v656
        %v670 = vsel %vm663, %v656, %v658
        %v671 = vsel %vm663, %v658, %v660
        %v672 = vsel %vm663, %v660, %v662
        %s673 = scalar_lea.vmem [#allocation1], 3
        %674 = vst [vmem:[%s673] ss:$4 sm:$0xff] %v322
        %s675 = scalar_lea.vmem [#allocation1], 35
        %676 = vst [vmem:[%s675] ss:$4 sm:$0xff] %v323
        %v677 = vld.sshfl [vmem:[#allocation1] sm:$0xff pattern:$0x73625140]
        %v679 = vld.sshfl [vmem:[#allocation1 + $0x8] sm:$0xff pattern:$0x73625140]
        %v681 = vld.sshfl [vmem:[#allocation1 + $0x10] sm:$0xff pattern:$0x73625140]
        %v683 = vld.sshfl [vmem:[#allocation1 + $0x18] sm:$0xff pattern:$0x73625140]
        %v685 = vld.sshfl [vmem:[#allocation1 + $0x20] sm:$0xff pattern:$0x73625140]
        %v687 = vld.sshfl [vmem:[#allocation1 + $0x28] sm:$0xff pattern:$0x73625140]
        %v689 = vld.sshfl [vmem:[#allocation1 + $0x30] sm:$0xff pattern:$0x73625140]
        %v691 = vld.sshfl [vmem:[#allocation1 + $0x38] sm:$0xff pattern:$0x73625140]
        %693 = vst [vmem:[%s673] ss:$4 sm:$0xff] %v324
        %v694 = vld.sshfl [vmem:[#allocation1] sm:$0xff pattern:$0x73625140]
        %v696 = vld.sshfl [vmem:[#allocation1 + $0x8] sm:$0xff pattern:$0x73625140]
        %698 = vrot.lane.b32.xlu0 %v677, 107
        %v699 = vpop.permute.xlu0 %698
        %700 = vrot.lane.b32.xlu0 %v679, 107
        %v701 = vpop.permute.xlu0 %700
        %702 = vrot.lane.b32.xlu0 %v681, 107
        %v703 = vpop.permute.xlu0 %702
        %704 = vrot.lane.b32.xlu0 %v683, 107
        %v705 = vpop.permute.xlu0 %704
        %706 = vrot.lane.b32.xlu0 %v685, 107
        %v707 = vpop.permute.xlu0 %706
        %708 = vrot.lane.b32.xlu0 %v687, 107
        %v709 = vpop.permute.xlu0 %708
        %710 = vrot.lane.b32.xlu0 %v689, 107
        %v711 = vpop.permute.xlu0 %710
        %712 = vrot.lane.b32.xlu0 %v691, 107
        %v713 = vpop.permute.xlu0 %712
        %714 = vrot.lane.b32.xlu0 %v694, 107
        %v715 = vpop.permute.xlu0 %714
        %716 = vrot.lane.b32.xlu0 %v696, 107
        %v717 = vpop.permute.xlu0 %716
        %vm718 = vcmask 875520
        %v719 = vsel %vm718, %v699, %v701
        %v720 = vsel %vm718, %v701, %v703
        %v721 = vsel %vm718, %v703, %v705
        %v722 = vsel %vm718, %v705, %v707
        %v723 = vsel %vm718, %v707, %v709
        %v724 = vsel %vm718, %v709, %v711
        %v725 = vsel %vm718, %v711, %v713
        %v726 = vsel %vm718, %v713, %v715
        %v727 = vsel %vm718, %v715, %v717
        %728 = vst [vmem:[#allocation1] ss:$4 sm:$0xff] %v322
        %s729 = scalar_lea.vmem [#allocation1], 32
        %730 = vst [vmem:[%s729] ss:$4 sm:$0xff] %v323
        %v731 = vld.sshfl [vmem:[#allocation1] sm:$0xff pattern:$0x73625140]
        %v733 = vld.sshfl [vmem:[#allocation1 + $0x8] sm:$0xff pattern:$0x73625140]
        %v735 = vld.sshfl [vmem:[#allocation1 + $0x10] sm:$0xff pattern:$0x73625140]
        %v737 = vld.sshfl [vmem:[#allocation1 + $0x18] sm:$0xff pattern:$0x73625140]
        %v739 = vld.sshfl [vmem:[#allocation1 + $0x20] sm:$0xff pattern:$0x73625140]
        %v741 = vld.sshfl [vmem:[#allocation1 + $0x28] sm:$0xff pattern:$0x73625140]
        %v743 = vld.sshfl [vmem:[#allocation1 + $0x30] sm:$0xff pattern:$0x73625140]
        %v745 = vld.sshfl [vmem:[#allocation1 + $0x38] sm:$0xff pattern:$0x73625140]
        %747 = vst [vmem:[#allocation1] ss:$4 sm:$0xff] %v324
        %v748 = vld.sshfl [vmem:[#allocation1] sm:$0xff pattern:$0x73625140]
        %v750 = vld.sshfl [vmem:[#allocation1 + $0x8] sm:$0xff pattern:$0x73625140]
        %752 = vrot.lane.b32.xlu0 %v731, 106
        %v753 = vpop.permute.xlu0 %752
        %754 = vrot.lane.b32.xlu0 %v733, 106
        %v755 = vpop.permute.xlu0 %754
        %756 = vrot.lane.b32.xlu0 %v735, 106
        %v757 = vpop.permute.xlu0 %756
        %758 = vrot.lane.b32.xlu0 %v737, 106
        %v759 = vpop.permute.xlu0 %758
        %760 = vrot.lane.b32.xlu0 %v739, 106
        %v761 = vpop.permute.xlu0 %760
        %762 = vrot.lane.b32.xlu0 %v741, 106
        %v763 = vpop.permute.xlu0 %762
        %764 = vrot.lane.b32.xlu0 %v743, 106
        %v765 = vpop.permute.xlu0 %764
        %766 = vrot.lane.b32.xlu0 %v745, 106
        %v767 = vpop.permute.xlu0 %766
        %768 = vrot.lane.b32.xlu0 %v748, 106
        %v769 = vpop.permute.xlu0 %768
        %770 = vrot.lane.b32.xlu0 %v750, 106
        %v771 = vpop.permute.xlu0 %770
        %vm772 = vcmask 867328
        %v773 = vsel %vm772, %v753, %v755
        %v774 = vsel %vm772, %v755, %v757
        %v775 = vsel %vm772, %v757, %v759
        %v776 = vsel %vm772, %v759, %v761
        %v777 = vsel %vm772, %v761, %v763
        %v778 = vsel %vm772, %v763, %v765
        %v779 = vsel %vm772, %v765, %v767
        %v780 = vsel %vm772, %v767, %v769
        %v781 = vsel %vm772, %v769, %v771
        %vm782 = vcmask 1041408
        %v784 = vsel %vm782, %v332, %v390
        %v786 = vsel %vm782, %v333, %v391
        %v788 = vsel %vm782, %v334, %v392
        %v790 = vsel %vm782, %v335, %v393
        %v792 = vsel %vm782, %v336, %v394
        %v794 = vsel %vm782, %v337, %v395
        %v796 = vsel %vm782, %v338, %v396
        %v798 = vsel %vm782, %v339, %v397
        %v800 = vsel %vm782, %v342, %v398
        %v802 = vsel %vm782, %v343, %v388
        %vm803 = vcmask 1043456
        %v805 = vsel %vm803, %v784, %v445
        %v807 = vsel %vm803, %v786, %v446
        %v809 = vsel %vm803, %v788, %v447
        %v811 = vsel %vm803, %v790, %v448
        %v813 = vsel %vm803, %v792, %v449
        %v815 = vsel %vm803, %v794, %v450
        %v817 = vsel %vm803, %v796, %v451
        %v819 = vsel %vm803, %v798, %v452
        %v821 = vsel %vm803, %v800, %v453
        %v823 = vsel %vm803, %v802, %v443
        %vm824 = vcmask 1045504
        %v826 = vsel %vm824, %v805, %v500
        %v828 = vsel %vm824, %v807, %v501
        %v830 = vsel %vm824, %v809, %v502
        %v832 = vsel %vm824, %v811, %v503
        %v834 = vsel %vm824, %v813, %v504
        %v836 = vsel %vm824, %v815, %v505
        %v838 = vsel %vm824, %v817, %v506
        %v840 = vsel %vm824, %v819, %v507
        %v842 = vsel %vm824, %v821, %v508
        %v844 = vsel %vm824, %v823, %v498
        %v847 = vsel %vm782, %v554, %v609
        %v850 = vsel %vm782, %v555, %v610
        %v853 = vsel %vm782, %v556, %v611
        %v856 = vsel %vm782, %v557, %v612
        %v859 = vsel %vm782, %v558, %v613
        %v862 = vsel %vm782, %v559, %v614
        %v865 = vsel %vm782, %v560, %v615
        %v868 = vsel %vm782, %v561, %v616
        %v871 = vsel %vm782, %v562, %v617
        %v874 = vsel %vm782, %v552, %v607
        %v876 = vsel %vm803, %v847, %v664
        %v878 = vsel %vm803, %v850, %v665
        %v880 = vsel %vm803, %v853, %v666
        %v882 = vsel %vm803, %v856, %v667
        %v884 = vsel %vm803, %v859, %v668
        %v886 = vsel %vm803, %v862, %v669
        %v888 = vsel %vm803, %v865, %v670
        %v890 = vsel %vm803, %v868, %v671
        %v892 = vsel %vm803, %v871, %v672
        %v894 = vsel %vm803, %v874, %v662
        %v896 = vsel %vm824, %v876, %v719
        %v898 = vsel %vm824, %v878, %v720
        %v900 = vsel %vm824, %v880, %v721
        %v902 = vsel %vm824, %v882, %v722
        %v904 = vsel %vm824, %v884, %v723
        %v906 = vsel %vm824, %v886, %v724
        %v908 = vsel %vm824, %v888, %v725
        %v910 = vsel %vm824, %v890, %v726
        %v912 = vsel %vm824, %v892, %v727
        %v914 = vsel %vm824, %v894, %v717
        %v915 = vld [vmem:[#allocation6] sm:$0xf]
        %916 = vst [vmem:[#allocation1] ss:$4 sm:$0xff] %v322
        %s917 = scalar_lea.vmem [#allocation1], 32
        %918 = vst [vmem:[%s917] ss:$4 sm:$0xff] %v323
        %v919 = vld.sshfl [vmem:[#allocation1] sm:$0xff pattern:$0x73625140]
        %v920 = vld.sshfl [vmem:[#allocation1 + $0x8] sm:$0xff pattern:$0x73625140]
        %v921 = vld.sshfl [vmem:[#allocation1 + $0x10] sm:$0xff pattern:$0x73625140]
        %v922 = vld.sshfl [vmem:[#allocation1 + $0x18] sm:$0xff pattern:$0x73625140]
        %v923 = vld.sshfl [vmem:[#allocation1 + $0x20] sm:$0xff pattern:$0x73625140]
        %v924 = vld.sshfl [vmem:[#allocation1 + $0x28] sm:$0xff pattern:$0x73625140]
        %v925 = vld.sshfl [vmem:[#allocation1 + $0x30] sm:$0xff pattern:$0x73625140]
        %v926 = vld.sshfl [vmem:[#allocation1 + $0x38] sm:$0xff pattern:$0x73625140]
        %927 = vst [vmem:[#allocation1] ss:$4 sm:$0xff] %v324
        %v928 = vld.sshfl [vmem:[#allocation1] sm:$0xff pattern:$0x73625140]
        %v929 = vld.sshfl [vmem:[#allocation1 + $0x8] sm:$0xff pattern:$0x73625140]
        %s930 = scalar_lea.vmem [#allocation1], 1
        %931 = vst [vmem:[%s930] ss:$4 sm:$0xff] %v322
        %s932 = scalar_lea.vmem [#allocation1], 33
        %933 = vst [vmem:[%s932] ss:$4 sm:$0xff] %v323
        %v934 = vld.sshfl [vmem:[#allocation1] sm:$0xff pattern:$0x73625140]
        %v936 = vld.sshfl [vmem:[#allocation1 + $0x8] sm:$0xff pattern:$0x73625140]
        %v938 = vld.sshfl [vmem:[#allocation1 + $0x10] sm:$0xff pattern:$0x73625140]
        %v940 = vld.sshfl [vmem:[#allocation1 + $0x18] sm:$0xff pattern:$0x73625140]
        %v942 = vld.sshfl [vmem:[#allocation1 + $0x20] sm:$0xff pattern:$0x73625140]
        %v944 = vld.sshfl [vmem:[#allocation1 + $0x28] sm:$0xff pattern:$0x73625140]
        %v946 = vld.sshfl [vmem:[#allocation1 + $0x30] sm:$0xff pattern:$0x73625140]
        %v948 = vld.sshfl [vmem:[#allocation1 + $0x38] sm:$0xff pattern:$0x73625140]
        %950 = vst [vmem:[%s930] ss:$4 sm:$0xff] %v324
        %v951 = vld.sshfl [vmem:[#allocation1] sm:$0xff pattern:$0x73625140]
        %v953 = vld.sshfl [vmem:[#allocation1 + $0x8] sm:$0xff pattern:$0x73625140]
        %955 = vrot.lane.b32.xlu0 %v934, 127
        %v956 = vpop.permute.xlu0 %955
        %957 = vrot.lane.b32.xlu0 %v936, 127
        %v958 = vpop.permute.xlu0 %957
        %959 = vrot.lane.b32.xlu0 %v938, 127
        %v960 = vpop.permute.xlu0 %959
        %961 = vrot.lane.b32.xlu0 %v940, 127
        %v962 = vpop.permute.xlu0 %961
        %963 = vrot.lane.b32.xlu0 %v942, 127
        %v964 = vpop.permute.xlu0 %963
        %965 = vrot.lane.b32.xlu0 %v944, 127
        %v966 = vpop.permute.xlu0 %965
        %967 = vrot.lane.b32.xlu0 %v946, 127
        %v968 = vpop.permute.xlu0 %967
        %969 = vrot.lane.b32.xlu0 %v948, 127
        %v970 = vpop.permute.xlu0 %969
        %971 = vrot.lane.b32.xlu0 %v951, 127
        %v972 = vpop.permute.xlu0 %971
        %973 = vrot.lane.b32.xlu0 %v953, 127
        %v974 = vpop.permute.xlu0 %973
        %v975 = vsel %vm389, %v956, %v958
        %v976 = vsel %vm389, %v958, %v960
        %v977 = vsel %vm389, %v960, %v962
        %v978 = vsel %vm389, %v962, %v964
        %v979 = vsel %vm389, %v964, %v966
        %v980 = vsel %vm389, %v966, %v968
        %v981 = vsel %vm389, %v968, %v970
        %v982 = vsel %vm389, %v970, %v972
        %v983 = vsel %vm389, %v972, %v974
        %s984 = scalar_lea.vmem [#allocation1], 2
        %985 = vst [vmem:[%s984] ss:$4 sm:$0xff] %v322
        %s986 = scalar_lea.vmem [#allocation1], 34
        %987 = vst [vmem:[%s986] ss:$4 sm:$0xff] %v323
        %v988 = vld.sshfl [vmem:[#allocation1] sm:$0xff pattern:$0x73625140]
        %v990 = vld.sshfl [vmem:[#allocation1 + $0x8] sm:$0xff pattern:$0x73625140]
        %v992 = vld.sshfl [vmem:[#allocation1 + $0x10] sm:$0xff pattern:$0x73625140]
        %v994 = vld.sshfl [vmem:[#allocation1 + $0x18] sm:$0xff pattern:$0x73625140]
        %v996 = vld.sshfl [vmem:[#allocation1 + $0x20] sm:$0xff pattern:$0x73625140]
        %v998 = vld.sshfl [vmem:[#allocation1 + $0x28] sm:$0xff pattern:$0x73625140]
        %v1000 = vld.sshfl [vmem:[#allocation1 + $0x30] sm:$0xff pattern:$0x73625140]
        %v1002 = vld.sshfl [vmem:[#allocation1 + $0x38] sm:$0xff pattern:$0x73625140]
        %1004 = vst [vmem:[%s984] ss:$4 sm:$0xff] %v324
        %v1005 = vld.sshfl [vmem:[#allocation1] sm:$0xff pattern:$0x73625140]
        %v1007 = vld.sshfl [vmem:[#allocation1 + $0x8] sm:$0xff pattern:$0x73625140]
        %1009 = vrot.lane.b32.xlu0 %v988, 126
        %v1010 = vpop.permute.xlu0 %1009
        %1011 = vrot.lane.b32.xlu0 %v990, 126
        %v1012 = vpop.permute.xlu0 %1011
        %1013 = vrot.lane.b32.xlu0 %v992, 126
        %v1014 = vpop.permute.xlu0 %1013
        %1015 = vrot.lane.b32.xlu0 %v994, 126
        %v1016 = vpop.permute.xlu0 %1015
        %1017 = vrot.lane.b32.xlu0 %v996, 126
        %v1018 = vpop.permute.xlu0 %1017
        %1019 = vrot.lane.b32.xlu0 %v998, 126
        %v1020 = vpop.permute.xlu0 %1019
        %1021 = vrot.lane.b32.xlu0 %v1000, 126
        %v1022 = vpop.permute.xlu0 %1021
        %1023 = vrot.lane.b32.xlu0 %v1002, 126
        %v1024 = vpop.permute.xlu0 %1023
        %1025 = vrot.lane.b32.xlu0 %v1005, 126
        %v1026 = vpop.permute.xlu0 %1025
        %1027 = vrot.lane.b32.xlu0 %v1007, 126
        %v1028 = vpop.permute.xlu0 %1027
        %v1029 = vsel %vm444, %v1010, %v1012
        %v1030 = vsel %vm444, %v1012, %v1014
        %v1031 = vsel %vm444, %v1014, %v1016
        %v1032 = vsel %vm444, %v1016, %v1018
        %v1033 = vsel %vm444, %v1018, %v1020
        %v1034 = vsel %vm444, %v1020, %v1022
        %v1035 = vsel %vm444, %v1022, %v1024
        %v1036 = vsel %vm444, %v1024, %v1026
        %v1037 = vsel %vm444, %v1026, %v1028
        %s1038 = scalar_lea.vmem [#allocation1], 3
        %1039 = vst [vmem:[%s1038] ss:$4 sm:$0xff] %v322
        %s1040 = scalar_lea.vmem [#allocation1], 35
        %1041 = vst [vmem:[%s1040] ss:$4 sm:$0xff] %v323
        %v1042 = vld.sshfl [vmem:[#allocation1] sm:$0xff pattern:$0x73625140]
        %v1044 = vld.sshfl [vmem:[#allocation1 + $0x8] sm:$0xff pattern:$0x73625140]
        %v1046 = vld.sshfl [vmem:[#allocation1 + $0x10] sm:$0xff pattern:$0x73625140]
        %v1048 = vld.sshfl [vmem:[#allocation1 + $0x18] sm:$0xff pattern:$0x73625140]
        %v1050 = vld.sshfl [vmem:[#allocation1 + $0x20] sm:$0xff pattern:$0x73625140]
        %v1052 = vld.sshfl [vmem:[#allocation1 + $0x28] sm:$0xff pattern:$0x73625140]
        %v1054 = vld.sshfl [vmem:[#allocation1 + $0x30] sm:$0xff pattern:$0x73625140]
        %v1056 = vld.sshfl [vmem:[#allocation1 + $0x38] sm:$0xff pattern:$0x73625140]
        %1058 = vst [vmem:[%s1038] ss:$4 sm:$0xff] %v324
        %v1059 = vld.sshfl [vmem:[#allocation1] sm:$0xff pattern:$0x73625140]
        %v1061 = vld.sshfl [vmem:[#allocation1 + $0x8] sm:$0xff pattern:$0x73625140]
        %1063 = vrot.lane.b32.xlu0 %v1042, 118
        %v1064 = vpop.permute.xlu0 %1063
        %1065 = vrot.lane.b32.xlu0 %v1044, 118
        %v1066 = vpop.permute.xlu0 %1065
        %1067 = vrot.lane.b32.xlu0 %v1046, 118
        %v1068 = vpop.permute.xlu0 %1067
        %1069 = vrot.lane.b32.xlu0 %v1048, 118
        %v1070 = vpop.permute.xlu0 %1069
        %1071 = vrot.lane.b32.xlu0 %v1050, 118
        %v1072 = vpop.permute.xlu0 %1071
        %1073 = vrot.lane.b32.xlu0 %v1052, 118
        %v1074 = vpop.permute.xlu0 %1073
        %1075 = vrot.lane.b32.xlu0 %v1054, 118
        %v1076 = vpop.permute.xlu0 %1075
        %1077 = vrot.lane.b32.xlu0 %v1056, 118
        %v1078 = vpop.permute.xlu0 %1077
        %1079 = vrot.lane.b32.xlu0 %v1059, 118
        %v1080 = vpop.permute.xlu0 %1079
        %1081 = vrot.lane.b32.xlu0 %v1061, 118
        %v1082 = vpop.permute.xlu0 %1081
        %v1083 = vsel %vm499, %v1064, %v1066
        %v1084 = vsel %vm499, %v1066, %v1068
        %v1085 = vsel %vm499, %v1068, %v1070
        %v1086 = vsel %vm499, %v1070, %v1072
        %v1087 = vsel %vm499, %v1072, %v1074
        %v1088 = vsel %vm499, %v1074, %v1076
        %v1089 = vsel %vm499, %v1076, %v1078
        %v1090 = vsel %vm499, %v1078, %v1080
        %v1091 = vsel %vm499, %v1080, %v1082
        %1092 = vst [vmem:[#allocation1] ss:$4 sm:$0xff] %v322
        %s1093 = scalar_lea.vmem [#allocation1], 32
        %1094 = vst [vmem:[%s1093] ss:$4 sm:$0xff] %v323
        %v1095 = vld.sshfl [vmem:[#allocation1 + $0x8] sm:$0xff pattern:$0x73625140]
        %v1097 = vld.sshfl [vmem:[#allocation1 + $0x10] sm:$0xff pattern:$0x73625140]
        %v1099 = vld.sshfl [vmem:[#allocation1 + $0x18] sm:$0xff pattern:$0x73625140]
        %v1101 = vld.sshfl [vmem:[#allocation1 + $0x20] sm:$0xff pattern:$0x73625140]
        %v1103 = vld.sshfl [vmem:[#allocation1 + $0x28] sm:$0xff pattern:$0x73625140]
        %v1105 = vld.sshfl [vmem:[#allocation1 + $0x30] sm:$0xff pattern:$0x73625140]
        %v1107 = vld.sshfl [vmem:[#allocation1 + $0x38] sm:$0xff pattern:$0x73625140]
        %1109 = vst [vmem:[#allocation1] ss:$4 sm:$0xff] %v324
        %v1110 = vld.sshfl [vmem:[#allocation1] sm:$0xff pattern:$0x73625140]
        %v1112 = vld.sshfl [vmem:[#allocation1 + $0x8] sm:$0xff pattern:$0x73625140]
        %1114 = vrot.lane.b32.xlu0 %v1095, 117
        %v1115 = vpop.permute.xlu0 %1114
        %1116 = vrot.lane.b32.xlu0 %v1097, 117
        %v1117 = vpop.permute.xlu0 %1116
        %1118 = vrot.lane.b32.xlu0 %v1099, 117
        %v1119 = vpop.permute.xlu0 %1118
        %1120 = vrot.lane.b32.xlu0 %v1101, 117
        %v1121 = vpop.permute.xlu0 %1120
        %1122 = vrot.lane.b32.xlu0 %v1103, 117
        %v1123 = vpop.permute.xlu0 %1122
        %1124 = vrot.lane.b32.xlu0 %v1105, 117
        %v1125 = vpop.permute.xlu0 %1124
        %1126 = vrot.lane.b32.xlu0 %v1107, 117
        %v1127 = vpop.permute.xlu0 %1126
        %1128 = vrot.lane.b32.xlu0 %v1110, 117
        %v1129 = vpop.permute.xlu0 %1128
        %1130 = vrot.lane.b32.xlu0 %v1112, 117
        %v1131 = vpop.permute.xlu0 %1130
        %v1132 = vsel %vm553, %v1115, %v1117
        %v1133 = vsel %vm553, %v1117, %v1119
        %v1134 = vsel %vm553, %v1119, %v1121
        %v1135 = vsel %vm553, %v1121, %v1123
        %v1136 = vsel %vm553, %v1123, %v1125
        %v1137 = vsel %vm553, %v1125, %v1127
        %v1138 = vsel %vm553, %v1127, %v1129
        %v1139 = vsel %vm553, %v1129, %v1131
        %s1140 = scalar_lea.vmem [#allocation1], 1
        %1141 = vst [vmem:[%s1140] ss:$4 sm:$0xff] %v322
        %s1142 = scalar_lea.vmem [#allocation1], 33
        %1143 = vst [vmem:[%s1142] ss:$4 sm:$0xff] %v323
        %v1144 = vld.sshfl [vmem:[#allocation1 + $0x8] sm:$0xff pattern:$0x73625140]
        %v1146 = vld.sshfl [vmem:[#allocation1 + $0x10] sm:$0xff pattern:$0x73625140]
        %v1148 = vld.sshfl [vmem:[#allocation1 + $0x18] sm:$0xff pattern:$0x73625140]
        %v1150 = vld.sshfl [vmem:[#allocation1 + $0x20] sm:$0xff pattern:$0x73625140]
        %v1152 = vld.sshfl [vmem:[#allocation1 + $0x28] sm:$0xff pattern:$0x73625140]
        %v1154 = vld.sshfl [vmem:[#allocation1 + $0x30] sm:$0xff pattern:$0x73625140]
        %v1156 = vld.sshfl [vmem:[#allocation1 + $0x38] sm:$0xff pattern:$0x73625140]
        %1158 = vst [vmem:[%s1140] ss:$4 sm:$0xff] %v324
        %v1159 = vld.sshfl [vmem:[#allocation1] sm:$0xff pattern:$0x73625140]
        %v1161 = vld.sshfl [vmem:[#allocation1 + $0x8] sm:$0xff pattern:$0x73625140]
        %v1163 = vld.sshfl [vmem:[#allocation1 + $0x10] sm:$0xff pattern:$0x73625140]
        %1165 = vrot.lane.b32.xlu0 %v1144, 116
        %v1166 = vpop.permute.xlu0 %1165
        %1167 = vrot.lane.b32.xlu0 %v1146, 116
        %v1168 = vpop.permute.xlu0 %1167
        %1169 = vrot.lane.b32.xlu0 %v1148, 116
        %v1170 = vpop.permute.xlu0 %1169
        %1171 = vrot.lane.b32.xlu0 %v1150, 116
        %v1172 = vpop.permute.xlu0 %1171
        %1173 = vrot.lane.b32.xlu0 %v1152, 116
        %v1174 = vpop.permute.xlu0 %1173
        %1175 = vrot.lane.b32.xlu0 %v1154, 116
        %v1176 = vpop.permute.xlu0 %1175
        %1177 = vrot.lane.b32.xlu0 %v1156, 116
        %v1178 = vpop.permute.xlu0 %1177
        %1179 = vrot.lane.b32.xlu0 %v1159, 116
        %v1180 = vpop.permute.xlu0 %1179
        %1181 = vrot.lane.b32.xlu0 %v1161, 116
        %v1182 = vpop.permute.xlu0 %1181
        %1183 = vrot.lane.b32.xlu0 %v1163, 116
        %v1184 = vpop.permute.xlu0 %1183
        %v1185 = vsel %vm608, %v1166, %v1168
        %v1186 = vsel %vm608, %v1168, %v1170
        %v1187 = vsel %vm608, %v1170, %v1172
        %v1188 = vsel %vm608, %v1172, %v1174
        %v1189 = vsel %vm608, %v1174, %v1176
        %v1190 = vsel %vm608, %v1176, %v1178
        %v1191 = vsel %vm608, %v1178, %v1180
        %v1192 = vsel %vm608, %v1180, %v1182
        %v1193 = vsel %vm608, %v1182, %v1184
        %s1194 = scalar_lea.vmem [#allocation1], 2
        %1195 = vst [vmem:[%s1194] ss:$4 sm:$0xff] %v322
        %s1196 = scalar_lea.vmem [#allocation1], 34
        %1197 = vst [vmem:[%s1196] ss:$4 sm:$0xff] %v323
        %v1198 = vld.sshfl [vmem:[#allocation1 + $0x8] sm:$0xff pattern:$0x73625140]
        %v1200 = vld.sshfl [vmem:[#allocation1 + $0x10] sm:$0xff pattern:$0x73625140]
        %v1202 = vld.sshfl [vmem:[#allocation1 + $0x18] sm:$0xff pattern:$0x73625140]
        %v1204 = vld.sshfl [vmem:[#allocation1 + $0x20] sm:$0xff pattern:$0x73625140]
        %v1206 = vld.sshfl [vmem:[#allocation1 + $0x28] sm:$0xff pattern:$0x73625140]
        %v1208 = vld.sshfl [vmem:[#allocation1 + $0x30] sm:$0xff pattern:$0x73625140]
        %v1210 = vld.sshfl [vmem:[#allocation1 + $0x38] sm:$0xff pattern:$0x73625140]
        %1212 = vst [vmem:[%s1194] ss:$4 sm:$0xff] %v324
        %v1213 = vld.sshfl [vmem:[#allocation1] sm:$0xff pattern:$0x73625140]
        %v1215 = vld.sshfl [vmem:[#allocation1 + $0x8] sm:$0xff pattern:$0x73625140]
        %v1217 = vld.sshfl [vmem:[#allocation1 + $0x10] sm:$0xff pattern:$0x73625140]
        %1219 = vrot.lane.b32.xlu0 %v1198, 108
        %v1220 = vpop.permute.xlu0 %1219
        %1221 = vrot.lane.b32.xlu0 %v1200, 108
        %v1222 = vpop.permute.xlu0 %1221
        %1223 = vrot.lane.b32.xlu0 %v1202, 108
        %v1224 = vpop.permute.xlu0 %1223
        %1225 = vrot.lane.b32.xlu0 %v1204, 108
        %v1226 = vpop.permute.xlu0 %1225
        %1227 = vrot.lane.b32.xlu0 %v1206, 108
        %v1228 = vpop.permute.xlu0 %1227
        %1229 = vrot.lane.b32.xlu0 %v1208, 108
        %v1230 = vpop.permute.xlu0 %1229
        %1231 = vrot.lane.b32.xlu0 %v1210, 108
        %v1232 = vpop.permute.xlu0 %1231
        %1233 = vrot.lane.b32.xlu0 %v1213, 108
        %v1234 = vpop.permute.xlu0 %1233
        %1235 = vrot.lane.b32.xlu0 %v1215, 108
        %v1236 = vpop.permute.xlu0 %1235
        %1237 = vrot.lane.b32.xlu0 %v1217, 108
        %v1238 = vpop.permute.xlu0 %1237
        %v1239 = vsel %vm663, %v1220, %v1222
        %v1240 = vsel %vm663, %v1222, %v1224
        %v1241 = vsel %vm663, %v1224, %v1226
        %v1242 = vsel %vm663, %v1226, %v1228
        %v1243 = vsel %vm663, %v1228, %v1230
        %v1244 = vsel %vm663, %v1230, %v1232
        %v1245 = vsel %vm663, %v1232, %v1234
        %v1246 = vsel %vm663, %v1234, %v1236
        %v1247 = vsel %vm663, %v1236, %v1238
        %s1248 = scalar_lea.vmem [#allocation1], 3
        %1249 = vst [vmem:[%s1248] ss:$4 sm:$0xff] %v322
        %s1250 = scalar_lea.vmem [#allocation1], 35
        %1251 = vst [vmem:[%s1250] ss:$4 sm:$0xff] %v323
        %v1252 = vld.sshfl [vmem:[#allocation1 + $0x8] sm:$0xff pattern:$0x73625140]
        %v1254 = vld.sshfl [vmem:[#allocation1 + $0x10] sm:$0xff pattern:$0x73625140]
        %v1256 = vld.sshfl [vmem:[#allocation1 + $0x18] sm:$0xff pattern:$0x73625140]
        %v1258 = vld.sshfl [vmem:[#allocation1 + $0x20] sm:$0xff pattern:$0x73625140]
        %v1260 = vld.sshfl [vmem:[#allocation1 + $0x28] sm:$0xff pattern:$0x73625140]
        %v1262 = vld.sshfl [vmem:[#allocation1 + $0x30] sm:$0xff pattern:$0x73625140]
        %v1264 = vld.sshfl [vmem:[#allocation1 + $0x38] sm:$0xff pattern:$0x73625140]
        %1266 = vst [vmem:[%s1248] ss:$4 sm:$0xff] %v324
        %v1267 = vld.sshfl [vmem:[#allocation1] sm:$0xff pattern:$0x73625140]
        %v1269 = vld.sshfl [vmem:[#allocation1 + $0x8] sm:$0xff pattern:$0x73625140]
        %v1271 = vld.sshfl [vmem:[#allocation1 + $0x10] sm:$0xff pattern:$0x73625140]
        %1273 = vrot.lane.b32.xlu0 %v1252, 107
        %v1274 = vpop.permute.xlu0 %1273
        %1275 = vrot.lane.b32.xlu0 %v1254, 107
        %v1276 = vpop.permute.xlu0 %1275
        %1277 = vrot.lane.b32.xlu0 %v1256, 107
        %v1278 = vpop.permute.xlu0 %1277
        %1279 = vrot.lane.b32.xlu0 %v1258, 107
        %v1280 = vpop.permute.xlu0 %1279
        %1281 = vrot.lane.b32.xlu0 %v1260, 107
        %v1282 = vpop.permute.xlu0 %1281
        %1283 = vrot.lane.b32.xlu0 %v1262, 107
        %v1284 = vpop.permute.xlu0 %1283
        %1285 = vrot.lane.b32.xlu0 %v1264, 107
        %v1286 = vpop.permute.xlu0 %1285
        %1287 = vrot.lane.b32.xlu0 %v1267, 107
        %v1288 = vpop.permute.xlu0 %1287
        %1289 = vrot.lane.b32.xlu0 %v1269, 107
        %v1290 = vpop.permute.xlu0 %1289
        %1291 = vrot.lane.b32.xlu0 %v1271, 107
        %v1292 = vpop.permute.xlu0 %1291
        %v1293 = vsel %vm718, %v1274, %v1276
        %v1294 = vsel %vm718, %v1276, %v1278
        %v1295 = vsel %vm718, %v1278, %v1280
        %v1296 = vsel %vm718, %v1280, %v1282
        %v1297 = vsel %vm718, %v1282, %v1284
        %v1298 = vsel %vm718, %v1284, %v1286
        %v1299 = vsel %vm718, %v1286, %v1288
        %v1300 = vsel %vm718, %v1288, %v1290
        %v1301 = vsel %vm718, %v1290, %v1292
        %1302 = vst [vmem:[#allocation1] ss:$4 sm:$0xff] %v322
        %s1303 = scalar_lea.vmem [#allocation1], 32
        %1304 = vst [vmem:[%s1303] ss:$4 sm:$0xff] %v323
        %v1305 = vld.sshfl [vmem:[#allocation1 + $0x8] sm:$0xff pattern:$0x73625140]
        %v1307 = vld.sshfl [vmem:[#allocation1 + $0x10] sm:$0xff pattern:$0x73625140]
        %v1309 = vld.sshfl [vmem:[#allocation1 + $0x18] sm:$0xff pattern:$0x73625140]
        %v1311 = vld.sshfl [vmem:[#allocation1 + $0x20] sm:$0xff pattern:$0x73625140]
        %v1313 = vld.sshfl [vmem:[#allocation1 + $0x28] sm:$0xff pattern:$0x73625140]
        %v1315 = vld.sshfl [vmem:[#allocation1 + $0x30] sm:$0xff pattern:$0x73625140]
        %v1317 = vld.sshfl [vmem:[#allocation1 + $0x38] sm:$0xff pattern:$0x73625140]
        %1319 = vst [vmem:[#allocation1] ss:$4 sm:$0xff] %v324
        %v1320 = vld.sshfl [vmem:[#allocation1] sm:$0xff pattern:$0x73625140]
        %v1322 = vld.sshfl [vmem:[#allocation1 + $0x8] sm:$0xff pattern:$0x73625140]
        %v1324 = vld.sshfl [vmem:[#allocation1 + $0x10] sm:$0xff pattern:$0x73625140]
        %1326 = vrot.lane.b32.xlu0 %v1305, 106
        %v1327 = vpop.permute.xlu0 %1326
        %1328 = vrot.lane.b32.xlu0 %v1307, 106
        %v1329 = vpop.permute.xlu0 %1328
        %1330 = vrot.lane.b32.xlu0 %v1309, 106
        %v1331 = vpop.permute.xlu0 %1330
        %1332 = vrot.lane.b32.xlu0 %v1311, 106
        %v1333 = vpop.permute.xlu0 %1332
        %1334 = vrot.lane.b32.xlu0 %v1313, 106
        %v1335 = vpop.permute.xlu0 %1334
        %1336 = vrot.lane.b32.xlu0 %v1315, 106
        %v1337 = vpop.permute.xlu0 %1336
        %1338 = vrot.lane.b32.xlu0 %v1317, 106
        %v1339 = vpop.permute.xlu0 %1338
        %1340 = vrot.lane.b32.xlu0 %v1320, 106
        %v1341 = vpop.permute.xlu0 %1340
        %1342 = vrot.lane.b32.xlu0 %v1322, 106
        %v1343 = vpop.permute.xlu0 %1342
        %1344 = vrot.lane.b32.xlu0 %v1324, 106
        %v1345 = vpop.permute.xlu0 %1344
        %v1346 = vsel %vm772, %v1327, %v1329
        %v1347 = vsel %vm772, %v1329, %v1331
        %v1348 = vsel %vm772, %v1331, %v1333
        %v1349 = vsel %vm772, %v1333, %v1335
        %v1350 = vsel %vm772, %v1335, %v1337
        %v1351 = vsel %vm772, %v1337, %v1339
        %v1352 = vsel %vm772, %v1339, %v1341
        %v1353 = vsel %vm772, %v1341, %v1343
        %v1354 = vsel %vm772, %v1343, %v1345
        %v1356 = vsel %vm782, %v919, %v975
        %v1358 = vsel %vm782, %v920, %v976
        %v1360 = vsel %vm782, %v921, %v977
        %v1362 = vsel %vm782, %v922, %v978
        %v1364 = vsel %vm782, %v923, %v979
        %v1366 = vsel %vm782, %v924, %v980
        %v1368 = vsel %vm782, %v925, %v981
        %v1370 = vsel %vm782, %v926, %v982
        %v1372 = vsel %vm782, %v928, %v983
        %v1374 = vsel %vm782, %v929, %v974
        %v1376 = vsel %vm803, %v1356, %v1029
        %v1378 = vsel %vm803, %v1358, %v1030
        %v1380 = vsel %vm803, %v1360, %v1031
        %v1382 = vsel %vm803, %v1362, %v1032
        %v1384 = vsel %vm803, %v1364, %v1033
        %v1386 = vsel %vm803, %v1366, %v1034
        %v1388 = vsel %vm803, %v1368, %v1035
        %v1390 = vsel %vm803, %v1370, %v1036
        %v1392 = vsel %vm803, %v1372, %v1037
        %v1394 = vsel %vm803, %v1374, %v1028
        %v1396 = vsel %vm824, %v1376, %v1083
        %v1398 = vsel %vm824, %v1378, %v1084
        %v1400 = vsel %vm824, %v1380, %v1085
        %v1402 = vsel %vm824, %v1382, %v1086
        %v1404 = vsel %vm824, %v1384, %v1087
        %v1406 = vsel %vm824, %v1386, %v1088
        %v1408 = vsel %vm824, %v1388, %v1089
        %v1410 = vsel %vm824, %v1390, %v1090
        %v1412 = vsel %vm824, %v1392, %v1091
        %v1414 = vsel %vm824, %v1394, %v1082
        %v1417 = vsel %vm782, %v1115, %v1166
        %v1420 = vsel %vm782, %v1132, %v1185
        %v1423 = vsel %vm782, %v1133, %v1186
        %v1426 = vsel %vm782, %v1134, %v1187
        %v1429 = vsel %vm782, %v1135, %v1188
        %v1432 = vsel %vm782, %v1136, %v1189
        %v1435 = vsel %vm782, %v1137, %v1190
        %v1438 = vsel %vm782, %v1138, %v1191
        %v1441 = vsel %vm782, %v1139, %v1192
        %v1444 = vsel %vm782, %v1131, %v1193
        %v1446 = vsel %vm803, %v1417, %v1220
        %v1448 = vsel %vm803, %v1420, %v1239
        %v1450 = vsel %vm803, %v1423, %v1240
        %v1452 = vsel %vm803, %v1426, %v1241
        %v1454 = vsel %vm803, %v1429, %v1242
        %v1456 = vsel %vm803, %v1432, %v1243
        %v1458 = vsel %vm803, %v1435, %v1244
        %v1460 = vsel %vm803, %v1438, %v1245
        %v1462 = vsel %vm803, %v1441, %v1246
        %v1464 = vsel %vm803, %v1444, %v1247
        %v1466 = vsel %vm824, %v1446, %v1274
        %v1468 = vsel %vm824, %v1448, %v1293
        %v1470 = vsel %vm824, %v1450, %v1294
        %v1472 = vsel %vm824, %v1452, %v1295
        %v1474 = vsel %vm824, %v1454, %v1296
        %v1476 = vsel %vm824, %v1456, %v1297
        %v1478 = vsel %vm824, %v1458, %v1298
        %v1480 = vsel %vm824, %v1460, %v1299
        %v1482 = vsel %vm824, %v1462, %v1300
        %v1484 = vsel %vm824, %v1464, %v1301
        %v1485 = vld [vmem:[#allocation6] sm:$0xf]
        %v1487 = vunpack.c.l.b16 %v1485
        %v1488 = vpack.c.b16 %v1487, %v1487
        %1489 = vrot.lane.b32.xlu0 %v1488, 92
        %v1490 = vpop.permute.xlu0 %1489
        %1511 = vrot.lane.b32.xlu0 %v1396, 11
        %v1512 = vpop.permute.xlu0 %1511
        %1513 = vrot.lane.b32.xlu0 %v1398, 11
        %v1514 = vpop.permute.xlu0 %1513
        %1515 = vrot.lane.b32.xlu0 %v1400, 11
        %v1516 = vpop.permute.xlu0 %1515
        %1517 = vrot.lane.b32.xlu0 %v1402, 11
        %v1518 = vpop.permute.xlu0 %1517
        %1519 = vrot.lane.b32.xlu0 %v1404, 11
        %v1520 = vpop.permute.xlu0 %1519
        %1521 = vrot.lane.b32.xlu0 %v1406, 11
        %v1522 = vpop.permute.xlu0 %1521
        %1523 = vrot.lane.b32.xlu0 %v1408, 11
        %v1524 = vpop.permute.xlu0 %1523
        %1525 = vrot.lane.b32.xlu0 %v1410, 11
        %v1526 = vpop.permute.xlu0 %1525
        %1527 = vrot.lane.b32.xlu0 %v1412, 11
        %v1528 = vpop.permute.xlu0 %1527
        %1529 = vrot.lane.b32.xlu0 %v1414, 11
        %v1530 = vpop.permute.xlu0 %1529
        %1531 = vrot.lane.b32.xlu0 %v1466, 11
        %v1532 = vpop.permute.xlu0 %1531
        %1533 = vrot.lane.b32.xlu0 %v1468, 11
        %v1534 = vpop.permute.xlu0 %1533
        %1535 = vrot.lane.b32.xlu0 %v1470, 11
        %v1536 = vpop.permute.xlu0 %1535
        %1537 = vrot.lane.b32.xlu0 %v1472, 11
        %v1538 = vpop.permute.xlu0 %1537
        %1539 = vrot.lane.b32.xlu0 %v1474, 11
        %v1540 = vpop.permute.xlu0 %1539
        %1541 = vrot.lane.b32.xlu0 %v1476, 11
        %v1542 = vpop.permute.xlu0 %1541
        %1543 = vrot.lane.b32.xlu0 %v1478, 11
        %v1544 = vpop.permute.xlu0 %1543
        %1545 = vrot.lane.b32.xlu0 %v1480, 11
        %v1546 = vpop.permute.xlu0 %1545
        %1547 = vrot.lane.b32.xlu0 %v1482, 11
        %v1548 = vpop.permute.xlu0 %1547
        %1549 = vrot.lane.b32.xlu0 %v1484, 11
        %v1550 = vpop.permute.xlu0 %1549
        %1551 = vrot.lane.b32.xlu0 %v1327, 11
        %v1552 = vpop.permute.xlu0 %1551
        %1553 = vrot.lane.b32.xlu0 %v1346, 11
        %v1554 = vpop.permute.xlu0 %1553
        %1555 = vrot.lane.b32.xlu0 %v1347, 11
        %v1556 = vpop.permute.xlu0 %1555
        %1557 = vrot.lane.b32.xlu0 %v1348, 11
        %v1558 = vpop.permute.xlu0 %1557
        %1559 = vrot.lane.b32.xlu0 %v1349, 11
        %v1560 = vpop.permute.xlu0 %1559
        %1561 = vrot.lane.b32.xlu0 %v1350, 11
        %v1562 = vpop.permute.xlu0 %1561
        %1563 = vrot.lane.b32.xlu0 %v1351, 11
        %v1564 = vpop.permute.xlu0 %1563
        %1565 = vrot.lane.b32.xlu0 %v1352, 11
        %v1566 = vpop.permute.xlu0 %1565
        %1567 = vrot.lane.b32.xlu0 %v1353, 11
        %v1568 = vpop.permute.xlu0 %1567
        %1569 = vrot.lane.b32.xlu0 %v1354, 11
        %v1570 = vpop.permute.xlu0 %1569
        %vm1571 = vcmask 89088
        %v1572 = vsel %vm1571, %v1512, %v1514
        %v1573 = vsel %vm1571, %v1514, %v1516
        %v1574 = vsel %vm1571, %v1516, %v1518
        %v1575 = vsel %vm1571, %v1518, %v1520
        %v1576 = vsel %vm1571, %v1520, %v1522
        %v1577 = vsel %vm1571, %v1522, %v1524
        %v1578 = vsel %vm1571, %v1524, %v1526
        %v1579 = vsel %vm1571, %v1526, %v1528
        %v1580 = vsel %vm1571, %v1528, %v1530
        %v1581 = vsel %vm1571, %v1532, %v1534
        %v1582 = vsel %vm1571, %v1534, %v1536
        %v1583 = vsel %vm1571, %v1536, %v1538
        %v1584 = vsel %vm1571, %v1538, %v1540
        %v1585 = vsel %vm1571, %v1540, %v1542
        %v1586 = vsel %vm1571, %v1542, %v1544
        %v1587 = vsel %vm1571, %v1544, %v1546
        %v1588 = vsel %vm1571, %v1546, %v1548
        %v1589 = vsel %vm1571, %v1548, %v1550
        %v1590 = vsel %vm1571, %v1552, %v1554
        %v1591 = vsel %vm1571, %v1554, %v1556
        %v1592 = vsel %vm1571, %v1556, %v1558
        %v1593 = vsel %vm1571, %v1558, %v1560
        %v1594 = vsel %vm1571, %v1560, %v1562
        %v1595 = vsel %vm1571, %v1562, %v1564
        %v1596 = vsel %vm1571, %v1564, %v1566
        %v1597 = vsel %vm1571, %v1566, %v1568
        %v1598 = vsel %vm1571, %v1568, %v1570
        %vm1617 = vcmask 293888
        %v1619 = vsel %vm1617, %v1490, 0
        %v1622 = vsel %vm782, %v1590, 0
        %v1625 = vsel %vm782, %v1591, 0
        %v1628 = vsel %vm782, %v1592, 0
        %v1631 = vsel %vm782, %v1593, 0
        %v1634 = vsel %vm782, %v1594, 0
        %v1637 = vsel %vm782, %v1595, 0
        %v1640 = vsel %vm782, %v1596, 0
        %v1643 = vsel %vm782, %v1597, 0
        %v1646 = vsel %vm782, %v1598, 0
        %1648 = vmatpush.bf16.msra.mxu0 0
        %1649 = vmatpush.bf16.msra.mxu0 0
        %1650 = vmatpush.bf16.msra.mxu0 0
        %1651 = vmatpush.bf16.msra.mxu0 0
        %1652 = vmatpush.bf16.msra.mxu0 0
        %1653 = vmatpush.bf16.msra.mxu0 %v1622
        %1654 = vmatpush.bf16.msra.mxu0 %v1581
        %1655 = vmatpush.bf16.msra.mxu0 %v1572
        %1656 = vmatmul.bf16.gmra.mxu0 %v1619
        %v1657 = vpop.f32.mrf.mxu0
        %v1658 = vadd.f32 0.0, %v1657
        %v1659 = vpop.f32.mrf.mxu0
        %1660 = vdwg.mxu0
        %1661 = vmatpush.bf16.msra.mxu0 0
        %1662 = vmatpush.bf16.msra.mxu0 0
        %1663 = vmatpush.bf16.msra.mxu0 0
        %1664 = vmatpush.bf16.msra.mxu0 0
        %1665 = vmatpush.bf16.msra.mxu0 0
        %1666 = vmatpush.bf16.msra.mxu0 %v1625
        %1667 = vmatpush.bf16.msra.mxu0 %v1582
        %1668 = vmatpush.bf16.msra.mxu0 %v1573
        %1669 = vmatmul.bf16.gmra.mxu0 %v1619
        %v1670 = vpop.f32.mrf.mxu0
        %v1671 = vadd.f32 0.0, %v1670
        %v1672 = vpop.f32.mrf.mxu0
        %1673 = vdwg.mxu0
        %1674 = vmatpush.bf16.msra.mxu0 0
        %1675 = vmatpush.bf16.msra.mxu0 0
        %1676 = vmatpush.bf16.msra.mxu0 0
        %1677 = vmatpush.bf16.msra.mxu0 0
        %1678 = vmatpush.bf16.msra.mxu0 0
        %1679 = vmatpush.bf16.msra.mxu0 %v1628
        %1680 = vmatpush.bf16.msra.mxu0 %v1583
        %1681 = vmatpush.bf16.msra.mxu0 %v1574
        %1682 = vmatmul.bf16.gmra.mxu0 %v1619
        %v1683 = vpop.f32.mrf.mxu0
        %v1684 = vadd.f32 0.0, %v1683
        %v1685 = vpop.f32.mrf.mxu0
        %1686 = vdwg.mxu0
        %1687 = vmatpush.bf16.msra.mxu0 0
        %1688 = vmatpush.bf16.msra.mxu0 0
        %1689 = vmatpush.bf16.msra.mxu0 0
        %1690 = vmatpush.bf16.msra.mxu0 0
        %1691 = vmatpush.bf16.msra.mxu0 0
        %1692 = vmatpush.bf16.msra.mxu0 %v1631
        %1693 = vmatpush.bf16.msra.mxu0 %v1584
        %1694 = vmatpush.bf16.msra.mxu0 %v1575
        %1695 = vmatmul.bf16.gmra.mxu0 %v1619
        %v1696 = vpop.f32.mrf.mxu0
        %v1697 = vadd.f32 0.0, %v1696
        %v1698 = vpop.f32.mrf.mxu0
        %1699 = vdwg.mxu0
        %1700 = vmatpush.bf16.msra.mxu0 0
        %1701 = vmatpush.bf16.msra.mxu0 0
        %1702 = vmatpush.bf16.msra.mxu0 0
        %1703 = vmatpush.bf16.msra.mxu0 0
        %1704 = vmatpush.bf16.msra.mxu0 0
        %1705 = vmatpush.bf16.msra.mxu0 %v1634
        %1706 = vmatpush.bf16.msra.mxu0 %v1585
        %1707 = vmatpush.bf16.msra.mxu0 %v1576
        %1708 = vmatmul.bf16.gmra.mxu0 %v1619
        %v1709 = vpop.f32.mrf.mxu0
        %v1710 = vadd.f32 0.0, %v1709
        %v1711 = vpop.f32.mrf.mxu0
        %1712 = vdwg.mxu0
        %1713 = vmatpush.bf16.msra.mxu0 0
        %1714 = vmatpush.bf16.msra.mxu0 0
        %1715 = vmatpush.bf16.msra.mxu0 0
        %1716 = vmatpush.bf16.msra.mxu0 0
        %1717 = vmatpush.bf16.msra.mxu0 0
        %1718 = vmatpush.bf16.msra.mxu0 %v1637
        %1719 = vmatpush.bf16.msra.mxu0 %v1586
        %1720 = vmatpush.bf16.msra.mxu0 %v1577
        %1721 = vmatmul.bf16.gmra.mxu0 %v1619
        %v1722 = vpop.f32.mrf.mxu0
        %v1723 = vadd.f32 0.0, %v1722
        %v1724 = vpop.f32.mrf.mxu0
        %1725 = vdwg.mxu0
        %1726 = vmatpush.bf16.msra.mxu0 0
        %1727 = vmatpush.bf16.msra.mxu0 0
        %1728 = vmatpush.bf16.msra.mxu0 0
        %1729 = vmatpush.bf16.msra.mxu0 0
        %1730 = vmatpush.bf16.msra.mxu0 0
        %1731 = vmatpush.bf16.msra.mxu0 %v1640
        %1732 = vmatpush.bf16.msra.mxu0 %v1587
        %1733 = vmatpush.bf16.msra.mxu0 %v1578
        %1734 = vmatmul.bf16.gmra.mxu0 %v1619
        %v1735 = vpop.f32.mrf.mxu0
        %v1736 = vadd.f32 0.0, %v1735
        %v1737 = vpop.f32.mrf.mxu0
        %1738 = vdwg.mxu0
        %1739 = vmatpush.bf16.msra.mxu0 0
        %1740 = vmatpush.bf16.msra.mxu0 0
        %1741 = vmatpush.bf16.msra.mxu0 0
        %1742 = vmatpush.bf16.msra.mxu0 0
        %1743 = vmatpush.bf16.msra.mxu0 0
        %1744 = vmatpush.bf16.msra.mxu0 %v1643
        %1745 = vmatpush.bf16.msra.mxu0 %v1588
        %1746 = vmatpush.bf16.msra.mxu0 %v1579
        %1747 = vmatmul.bf16.gmra.mxu0 %v1619
        %v1748 = vpop.f32.mrf.mxu0
        %v1749 = vadd.f32 0.0, %v1748
        %v1750 = vpop.f32.mrf.mxu0
        %1751 = vdwg.mxu0
        %1752 = vmatpush.bf16.msra.mxu0 0
        %1753 = vmatpush.bf16.msra.mxu0 0
        %1754 = vmatpush.bf16.msra.mxu0 0
        %1755 = vmatpush.bf16.msra.mxu0 0
        %1756 = vmatpush.bf16.msra.mxu0 0
        %1757 = vmatpush.bf16.msra.mxu0 %v1646
        %1758 = vmatpush.bf16.msra.mxu0 %v1589
        %1759 = vmatpush.bf16.msra.mxu0 %v1580
        %1760 = vmatmul.bf16.gmra.mxu0 %v1619
        %v1761 = vpop.f32.mrf.mxu0
        %v1762 = vadd.f32 0.0, %v1761
        %v1763 = vpop.f32.mrf.mxu0
        %1764 = vdwg.mxu0
        %1785 = vrot.lane.b32.xlu0 %v826, 111
        %v1786 = vpop.permute.xlu0 %1785
        %1787 = vrot.lane.b32.xlu0 %v828, 111
        %v1788 = vpop.permute.xlu0 %1787
        %1789 = vrot.lane.b32.xlu0 %v830, 111
        %v1790 = vpop.permute.xlu0 %1789
        %1791 = vrot.lane.b32.xlu0 %v832, 111
        %v1792 = vpop.permute.xlu0 %1791
        %1793 = vrot.lane.b32.xlu0 %v834, 111
        %v1794 = vpop.permute.xlu0 %1793
        %1795 = vrot.lane.b32.xlu0 %v836, 111
        %v1796 = vpop.permute.xlu0 %1795
        %1797 = vrot.lane.b32.xlu0 %v838, 111
        %v1798 = vpop.permute.xlu0 %1797
        %1799 = vrot.lane.b32.xlu0 %v840, 111
        %v1800 = vpop.permute.xlu0 %1799
        %1801 = vrot.lane.b32.xlu0 %v842, 111
        %v1802 = vpop.permute.xlu0 %1801
        %1803 = vrot.lane.b32.xlu0 %v844, 111
        %v1804 = vpop.permute.xlu0 %1803
        %1805 = vrot.lane.b32.xlu0 %v896, 111
        %v1806 = vpop.permute.xlu0 %1805
        %1807 = vrot.lane.b32.xlu0 %v898, 111
        %v1808 = vpop.permute.xlu0 %1807
        %1809 = vrot.lane.b32.xlu0 %v900, 111
        %v1810 = vpop.permute.xlu0 %1809
        %1811 = vrot.lane.b32.xlu0 %v902, 111
        %v1812 = vpop.permute.xlu0 %1811
        %1813 = vrot.lane.b32.xlu0 %v904, 111
        %v1814 = vpop.permute.xlu0 %1813
        %1815 = vrot.lane.b32.xlu0 %v906, 111
        %v1816 = vpop.permute.xlu0 %1815
        %1817 = vrot.lane.b32.xlu0 %v908, 111
        %v1818 = vpop.permute.xlu0 %1817
        %1819 = vrot.lane.b32.xlu0 %v910, 111
        %v1820 = vpop.permute.xlu0 %1819
        %1821 = vrot.lane.b32.xlu0 %v912, 111
        %v1822 = vpop.permute.xlu0 %1821
        %1823 = vrot.lane.b32.xlu0 %v914, 111
        %v1824 = vpop.permute.xlu0 %1823
        %1825 = vrot.lane.b32.xlu0 %v773, 111
        %v1826 = vpop.permute.xlu0 %1825
        %1827 = vrot.lane.b32.xlu0 %v774, 111
        %v1828 = vpop.permute.xlu0 %1827
        %1829 = vrot.lane.b32.xlu0 %v775, 111
        %v1830 = vpop.permute.xlu0 %1829
        %1831 = vrot.lane.b32.xlu0 %v776, 111
        %v1832 = vpop.permute.xlu0 %1831
        %1833 = vrot.lane.b32.xlu0 %v777, 111
        %v1834 = vpop.permute.xlu0 %1833
        %1835 = vrot.lane.b32.xlu0 %v778, 111
        %v1836 = vpop.permute.xlu0 %1835
        %1837 = vrot.lane.b32.xlu0 %v779, 111
        %v1838 = vpop.permute.xlu0 %1837
        %1839 = vrot.lane.b32.xlu0 %v780, 111
        %v1840 = vpop.permute.xlu0 %1839
        %1841 = vrot.lane.b32.xlu0 %v781, 111
        %v1842 = vpop.permute.xlu0 %1841
        %1843 = vrot.lane.b32.xlu0 %v771, 111
        %v1844 = vpop.permute.xlu0 %1843
        %vm1845 = vcmask 908288
        %v1846 = vsel %vm1845, %v1786, %v1788
        %v1847 = vsel %vm1845, %v1788, %v1790
        %v1848 = vsel %vm1845, %v1790, %v1792
        %v1849 = vsel %vm1845, %v1792, %v1794
        %v1850 = vsel %vm1845, %v1794, %v1796
        %v1851 = vsel %vm1845, %v1796, %v1798
        %v1852 = vsel %vm1845, %v1798, %v1800
        %v1853 = vsel %vm1845, %v1800, %v1802
        %v1854 = vsel %vm1845, %v1802, %v1804
        %v1855 = vsel %vm1845, %v1806, %v1808
        %v1856 = vsel %vm1845, %v1808, %v1810
        %v1857 = vsel %vm1845, %v1810, %v1812
        %v1858 = vsel %vm1845, %v1812, %v1814
        %v1859 = vsel %vm1845, %v1814, %v1816
        %v1860 = vsel %vm1845, %v1816, %v1818
        %v1861 = vsel %vm1845, %v1818, %v1820
        %v1862 = vsel %vm1845, %v1820, %v1822
        %v1863 = vsel %vm1845, %v1822, %v1824
        %v1864 = vsel %vm1845, %v1826, %v1828
        %v1865 = vsel %vm1845, %v1828, %v1830
        %v1866 = vsel %vm1845, %v1830, %v1832
        %v1867 = vsel %vm1845, %v1832, %v1834
        %v1868 = vsel %vm1845, %v1834, %v1836
        %v1869 = vsel %vm1845, %v1836, %v1838
        %v1870 = vsel %vm1845, %v1838, %v1840
        %v1871 = vsel %vm1845, %v1840, %v1842
        %v1872 = vsel %vm1845, %v1842, %v1844
        %v1892 = vsel %vm1617, %v915, 0
        %v1895 = vsel %vm782, %v1864, 0
        %v1898 = vsel %vm782, %v1865, 0
        %v1901 = vsel %vm782, %v1866, 0
        %v1904 = vsel %vm782, %v1867, 0
        %v1907 = vsel %vm782, %v1868, 0
        %v1910 = vsel %vm782, %v1869, 0
        %v1913 = vsel %vm782, %v1870, 0
        %v1916 = vsel %vm782, %v1871, 0
        %v1919 = vsel %vm782, %v1872, 0
        %1921 = vmatpush.bf16.msra.mxu0 0
        %1922 = vmatpush.bf16.msra.mxu0 0
        %1923 = vmatpush.bf16.msra.mxu0 0
        %1924 = vmatpush.bf16.msra.mxu0 0
        %1925 = vmatpush.bf16.msra.mxu0 0
        %1926 = vmatpush.bf16.msra.mxu0 %v1895
        %1927 = vmatpush.bf16.msra.mxu0 %v1855
        %1928 = vmatpush.bf16.msra.mxu0 %v1846
        %1929 = vmatmul.bf16.gmra.mxu0 %v1892
        %v1930 = vpop.f32.mrf.mxu0
        %v1931 = vadd.f32 %v1658, %v1930
        %v1932 = vpop.f32.mrf.mxu0
        %1933 = vdwg.mxu0
        %1934 = vmatpush.bf16.msra.mxu0 0
        %1935 = vmatpush.bf16.msra.mxu0 0
        %1936 = vmatpush.bf16.msra.mxu0 0
        %1937 = vmatpush.bf16.msra.mxu0 0
        %1938 = vmatpush.bf16.msra.mxu0 0
        %1939 = vmatpush.bf16.msra.mxu0 %v1898
        %1940 = vmatpush.bf16.msra.mxu0 %v1856
        %1941 = vmatpush.bf16.msra.mxu0 %v1847
        %1942 = vmatmul.bf16.gmra.mxu0 %v1892
        %v1943 = vpop.f32.mrf.mxu0
        %v1944 = vadd.f32 %v1671, %v1943
        %v1945 = vpop.f32.mrf.mxu0
        %1946 = vdwg.mxu0
        %1947 = vmatpush.bf16.msra.mxu0 0
        %1948 = vmatpush.bf16.msra.mxu0 0
        %1949 = vmatpush.bf16.msra.mxu0 0
        %1950 = vmatpush.bf16.msra.mxu0 0
        %1951 = vmatpush.bf16.msra.mxu0 0
        %1952 = vmatpush.bf16.msra.mxu0 %v1901
        %1953 = vmatpush.bf16.msra.mxu0 %v1857
        %1954 = vmatpush.bf16.msra.mxu0 %v1848
        %1955 = vmatmul.bf16.gmra.mxu0 %v1892
        %v1956 = vpop.f32.mrf.mxu0
        %v1957 = vadd.f32 %v1684, %v1956
        %v1958 = vpop.f32.mrf.mxu0
        %1959 = vdwg.mxu0
        %1960 = vmatpush.bf16.msra.mxu0 0
        %1961 = vmatpush.bf16.msra.mxu0 0
        %1962 = vmatpush.bf16.msra.mxu0 0
        %1963 = vmatpush.bf16.msra.mxu0 0
        %1964 = vmatpush.bf16.msra.mxu0 0
        %1965 = vmatpush.bf16.msra.mxu0 %v1904
        %1966 = vmatpush.bf16.msra.mxu0 %v1858
        %1967 = vmatpush.bf16.msra.mxu0 %v1849
        %1968 = vmatmul.bf16.gmra.mxu0 %v1892
        %v1969 = vpop.f32.mrf.mxu0
        %v1970 = vadd.f32 %v1697, %v1969
        %v1971 = vpop.f32.mrf.mxu0
        %1972 = vdwg.mxu0
        %1973 = vmatpush.bf16.msra.mxu0 0
        %1974 = vmatpush.bf16.msra.mxu0 0
        %1975 = vmatpush.bf16.msra.mxu0 0
        %1976 = vmatpush.bf16.msra.mxu0 0
        %1977 = vmatpush.bf16.msra.mxu0 0
        %1978 = vmatpush.bf16.msra.mxu0 %v1907
        %1979 = vmatpush.bf16.msra.mxu0 %v1859
        %1980 = vmatpush.bf16.msra.mxu0 %v1850
        %1981 = vmatmul.bf16.gmra.mxu0 %v1892
        %v1982 = vpop.f32.mrf.mxu0
        %v1983 = vadd.f32 %v1710, %v1982
        %v1984 = vpop.f32.mrf.mxu0
        %1985 = vdwg.mxu0
        %1986 = vmatpush.bf16.msra.mxu0 0
        %1987 = vmatpush.bf16.msra.mxu0 0
        %1988 = vmatpush.bf16.msra.mxu0 0
        %1989 = vmatpush.bf16.msra.mxu0 0
        %1990 = vmatpush.bf16.msra.mxu0 0
        %1991 = vmatpush.bf16.msra.mxu0 %v1910
        %1992 = vmatpush.bf16.msra.mxu0 %v1860
        %1993 = vmatpush.bf16.msra.mxu0 %v1851
        %1994 = vmatmul.bf16.gmra.mxu0 %v1892
        %v1995 = vpop.f32.mrf.mxu0
        %v1996 = vadd.f32 %v1723, %v1995
        %v1997 = vpop.f32.mrf.mxu0
        %1998 = vdwg.mxu0
        %1999 = vmatpush.bf16.msra.mxu0 0
        %2000 = vmatpush.bf16.msra.mxu0 0
        %2001 = vmatpush.bf16.msra.mxu0 0
        %2002 = vmatpush.bf16.msra.mxu0 0
        %2003 = vmatpush.bf16.msra.mxu0 0
        %2004 = vmatpush.bf16.msra.mxu0 %v1913
        %2005 = vmatpush.bf16.msra.mxu0 %v1861
        %2006 = vmatpush.bf16.msra.mxu0 %v1852
        %2007 = vmatmul.bf16.gmra.mxu0 %v1892
        %v2008 = vpop.f32.mrf.mxu0
        %v2009 = vadd.f32 %v1736, %v2008
        %v2010 = vpop.f32.mrf.mxu0
        %2011 = vdwg.mxu0
        %2012 = vmatpush.bf16.msra.mxu0 0
        %2013 = vmatpush.bf16.msra.mxu0 0
        %2014 = vmatpush.bf16.msra.mxu0 0
        %2015 = vmatpush.bf16.msra.mxu0 0
        %2016 = vmatpush.bf16.msra.mxu0 0
        %2017 = vmatpush.bf16.msra.mxu0 %v1916
        %2018 = vmatpush.bf16.msra.mxu0 %v1862
        %2019 = vmatpush.bf16.msra.mxu0 %v1853
        %2020 = vmatmul.bf16.gmra.mxu0 %v1892
        %v2021 = vpop.f32.mrf.mxu0
        %v2022 = vadd.f32 %v1749, %v2021
        %v2023 = vpop.f32.mrf.mxu0
        %2024 = vdwg.mxu0
        %2025 = vmatpush.bf16.msra.mxu0 0
        %2026 = vmatpush.bf16.msra.mxu0 0
        %2027 = vmatpush.bf16.msra.mxu0 0
        %2028 = vmatpush.bf16.msra.mxu0 0
        %2029 = vmatpush.bf16.msra.mxu0 0
        %2030 = vmatpush.bf16.msra.mxu0 %v1919
        %2031 = vmatpush.bf16.msra.mxu0 %v1863
        %2032 = vmatpush.bf16.msra.mxu0 %v1854
        %2033 = vmatmul.bf16.gmra.mxu0 %v1892
        %v2034 = vpop.f32.mrf.mxu0
        %v2035 = vadd.f32 %v1762, %v2034
        %v2036 = vpop.f32.mrf.mxu0
        %2037 = vdwg.mxu0
        %2038 = vst [vmem:[#allocation1] ss:$4 sm:$0xff] %v322
        %s2039 = scalar_lea.vmem [#allocation1], 32
        %2040 = vst [vmem:[%s2039] ss:$4 sm:$0xff] %v323
        %v2041 = vld.sshfl [vmem:[#allocation1 + $0x8] sm:$0xff pattern:$0x73625140]
        %v2043 = vld.sshfl [vmem:[#allocation1 + $0x10] sm:$0xff pattern:$0x73625140]
        %v2045 = vld.sshfl [vmem:[#allocation1 + $0x18] sm:$0xff pattern:$0x73625140]
        %v2047 = vld.sshfl [vmem:[#allocation1 + $0x20] sm:$0xff pattern:$0x73625140]
        %v2049 = vld.sshfl [vmem:[#allocation1 + $0x28] sm:$0xff pattern:$0x73625140]
        %v2051 = vld.sshfl [vmem:[#allocation1 + $0x30] sm:$0xff pattern:$0x73625140]
        %v2053 = vld.sshfl [vmem:[#allocation1 + $0x38] sm:$0xff pattern:$0x73625140]
        %2055 = vst [vmem:[#allocation1] ss:$4 sm:$0xff] %v324
        %v2056 = vld.sshfl [vmem:[#allocation1] sm:$0xff pattern:$0x73625140]
        %v2058 = vld.sshfl [vmem:[#allocation1 + $0x8] sm:$0xff pattern:$0x73625140]
        %v2060 = vld.sshfl [vmem:[#allocation1 + $0x10] sm:$0xff pattern:$0x73625140]
        %2062 = vrot.lane.b32.xlu0 %v2041, 39
        %v2063 = vpop.permute.xlu0 %2062
        %2064 = vrot.lane.b32.xlu0 %v2043, 39
        %v2065 = vpop.permute.xlu0 %2064
        %2066 = vrot.lane.b32.xlu0 %v2045, 39
        %v2067 = vpop.permute.xlu0 %2066
        %2068 = vrot.lane.b32.xlu0 %v2047, 39
        %v2069 = vpop.permute.xlu0 %2068
        %2070 = vrot.lane.b32.xlu0 %v2049, 39
        %v2071 = vpop.permute.xlu0 %2070
        %2072 = vrot.lane.b32.xlu0 %v2051, 39
        %v2073 = vpop.permute.xlu0 %2072
        %2074 = vrot.lane.b32.xlu0 %v2053, 39
        %v2075 = vpop.permute.xlu0 %2074
        %2076 = vrot.lane.b32.xlu0 %v2056, 39
        %v2077 = vpop.permute.xlu0 %2076
        %2078 = vrot.lane.b32.xlu0 %v2058, 39
        %v2079 = vpop.permute.xlu0 %2078
        %2080 = vrot.lane.b32.xlu0 %v2060, 39
        %v2081 = vpop.permute.xlu0 %2080
        %vm2082 = vcmask 318464
        %v2083 = vsel %vm2082, %v2063, %v2065
        %v2084 = vsel %vm2082, %v2065, %v2067
        %v2085 = vsel %vm2082, %v2067, %v2069
        %v2086 = vsel %vm2082, %v2069, %v2071
        %v2087 = vsel %vm2082, %v2071, %v2073
        %v2088 = vsel %vm2082, %v2073, %v2075
        %v2089 = vsel %vm2082, %v2075, %v2077
        %v2090 = vsel %vm2082, %v2077, %v2079
        %v2091 = vsel %vm2082, %v2079, %v2081
        %s2092 = scalar_lea.vmem [#allocation1], 1
        %2093 = vst [vmem:[%s2092] ss:$4 sm:$0xff] %v322
        %s2094 = scalar_lea.vmem [#allocation1], 33
        %2095 = vst [vmem:[%s2094] ss:$4 sm:$0xff] %v323
        %v2096 = vld.sshfl [vmem:[#allocation1 + $0x8] sm:$0xff pattern:$0x73625140]
        %v2098 = vld.sshfl [vmem:[#allocation1 + $0x10] sm:$0xff pattern:$0x73625140]
        %v2100 = vld.sshfl [vmem:[#allocation1 + $0x18] sm:$0xff pattern:$0x73625140]
        %v2102 = vld.sshfl [vmem:[#allocation1 + $0x20] sm:$0xff pattern:$0x73625140]
        %v2104 = vld.sshfl [vmem:[#allocation1 + $0x28] sm:$0xff pattern:$0x73625140]
        %v2106 = vld.sshfl [vmem:[#allocation1 + $0x30] sm:$0xff pattern:$0x73625140]
        %v2108 = vld.sshfl [vmem:[#allocation1 + $0x38] sm:$0xff pattern:$0x73625140]
        %2110 = vst [vmem:[%s2092] ss:$4 sm:$0xff] %v324
        %v2111 = vld.sshfl [vmem:[#allocation1] sm:$0xff pattern:$0x73625140]
        %v2113 = vld.sshfl [vmem:[#allocation1 + $0x8] sm:$0xff pattern:$0x73625140]
        %v2115 = vld.sshfl [vmem:[#allocation1 + $0x10] sm:$0xff pattern:$0x73625140]
        %2117 = vrot.lane.b32.xlu0 %v2096, 38
        %v2118 = vpop.permute.xlu0 %2117
        %2119 = vrot.lane.b32.xlu0 %v2098, 38
        %v2120 = vpop.permute.xlu0 %2119
        %2121 = vrot.lane.b32.xlu0 %v2100, 38
        %v2122 = vpop.permute.xlu0 %2121
        %2123 = vrot.lane.b32.xlu0 %v2102, 38
        %v2124 = vpop.permute.xlu0 %2123
        %2125 = vrot.lane.b32.xlu0 %v2104, 38
        %v2126 = vpop.permute.xlu0 %2125
        %2127 = vrot.lane.b32.xlu0 %v2106, 38
        %v2128 = vpop.permute.xlu0 %2127
        %2129 = vrot.lane.b32.xlu0 %v2108, 38
        %v2130 = vpop.permute.xlu0 %2129
        %2131 = vrot.lane.b32.xlu0 %v2111, 38
        %v2132 = vpop.permute.xlu0 %2131
        %2133 = vrot.lane.b32.xlu0 %v2113, 38
        %v2134 = vpop.permute.xlu0 %2133
        %2135 = vrot.lane.b32.xlu0 %v2115, 38
        %v2136 = vpop.permute.xlu0 %2135
        %vm2137 = vcmask 310272
        %v2138 = vsel %vm2137, %v2118, %v2120
        %v2139 = vsel %vm2137, %v2120, %v2122
        %v2140 = vsel %vm2137, %v2122, %v2124
        %v2141 = vsel %vm2137, %v2124, %v2126
        %v2142 = vsel %vm2137, %v2126, %v2128
        %v2143 = vsel %vm2137, %v2128, %v2130
        %v2144 = vsel %vm2137, %v2130, %v2132
        %v2145 = vsel %vm2137, %v2132, %v2134
        %v2146 = vsel %vm2137, %v2134, %v2136
        %s2147 = scalar_lea.vmem [#allocation1], 2
        %2148 = vst [vmem:[%s2147] ss:$4 sm:$0xff] %v322
        %s2149 = scalar_lea.vmem [#allocation1], 34
        %2150 = vst [vmem:[%s2149] ss:$4 sm:$0xff] %v323
        %v2151 = vld.sshfl [vmem:[#allocation1 + $0x8] sm:$0xff pattern:$0x73625140]
        %v2153 = vld.sshfl [vmem:[#allocation1 + $0x10] sm:$0xff pattern:$0x73625140]
        %v2155 = vld.sshfl [vmem:[#allocation1 + $0x18] sm:$0xff pattern:$0x73625140]
        %v2157 = vld.sshfl [vmem:[#allocation1 + $0x20] sm:$0xff pattern:$0x73625140]
        %v2159 = vld.sshfl [vmem:[#allocation1 + $0x28] sm:$0xff pattern:$0x73625140]
        %v2161 = vld.sshfl [vmem:[#allocation1 + $0x30] sm:$0xff pattern:$0x73625140]
        %v2163 = vld.sshfl [vmem:[#allocation1 + $0x38] sm:$0xff pattern:$0x73625140]
        %2165 = vst [vmem:[%s2147] ss:$4 sm:$0xff] %v324
        %v2166 = vld.sshfl [vmem:[#allocation1] sm:$0xff pattern:$0x73625140]
        %v2168 = vld.sshfl [vmem:[#allocation1 + $0x8] sm:$0xff pattern:$0x73625140]
        %v2170 = vld.sshfl [vmem:[#allocation1 + $0x10] sm:$0xff pattern:$0x73625140]
        %2172 = vrot.lane.b32.xlu0 %v2151, 37
        %v2173 = vpop.permute.xlu0 %2172
        %2174 = vrot.lane.b32.xlu0 %v2153, 37
        %v2175 = vpop.permute.xlu0 %2174
        %2176 = vrot.lane.b32.xlu0 %v2155, 37
        %v2177 = vpop.permute.xlu0 %2176
        %2178 = vrot.lane.b32.xlu0 %v2157, 37
        %v2179 = vpop.permute.xlu0 %2178
        %2180 = vrot.lane.b32.xlu0 %v2159, 37
        %v2181 = vpop.permute.xlu0 %2180
        %2182 = vrot.lane.b32.xlu0 %v2161, 37
        %v2183 = vpop.permute.xlu0 %2182
        %2184 = vrot.lane.b32.xlu0 %v2163, 37
        %v2185 = vpop.permute.xlu0 %2184
        %2186 = vrot.lane.b32.xlu0 %v2166, 37
        %v2187 = vpop.permute.xlu0 %2186
        %2188 = vrot.lane.b32.xlu0 %v2168, 37
        %v2189 = vpop.permute.xlu0 %2188
        %2190 = vrot.lane.b32.xlu0 %v2170, 37
        %v2191 = vpop.permute.xlu0 %2190
        %vm2192 = vcmask 302080
        %v2193 = vsel %vm2192, %v2173, %v2175
        %v2194 = vsel %vm2192, %v2175, %v2177
        %v2195 = vsel %vm2192, %v2177, %v2179
        %v2196 = vsel %vm2192, %v2179, %v2181
        %v2197 = vsel %vm2192, %v2181, %v2183
        %v2198 = vsel %vm2192, %v2183, %v2185
        %v2199 = vsel %vm2192, %v2185, %v2187
        %v2200 = vsel %vm2192, %v2187, %v2189
        %v2201 = vsel %vm2192, %v2189, %v2191
        %s2202 = scalar_lea.vmem [#allocation1], 3
        %2203 = vst [vmem:[%s2202] ss:$4 sm:$0xff] %v322
        %s2204 = scalar_lea.vmem [#allocation1], 35
        %2205 = vst [vmem:[%s2204] ss:$4 sm:$0xff] %v323
        %v2206 = vld.sshfl [vmem:[#allocation1 + $0x8] sm:$0xff pattern:$0x73625140]
        %v2208 = vld.sshfl [vmem:[#allocation1 + $0x10] sm:$0xff pattern:$0x73625140]
        %v2210 = vld.sshfl [vmem:[#allocation1 + $0x18] sm:$0xff pattern:$0x73625140]
        %v2212 = vld.sshfl [vmem:[#allocation1 + $0x20] sm:$0xff pattern:$0x73625140]
        %v2214 = vld.sshfl [vmem:[#allocation1 + $0x28] sm:$0xff pattern:$0x73625140]
        %v2216 = vld.sshfl [vmem:[#allocation1 + $0x30] sm:$0xff pattern:$0x73625140]
        %v2218 = vld.sshfl [vmem:[#allocation1 + $0x38] sm:$0xff pattern:$0x73625140]
        %2220 = vst [vmem:[%s2202] ss:$4 sm:$0xff] %v324
        %v2221 = vld.sshfl [vmem:[#allocation1] sm:$0xff pattern:$0x73625140]
        %v2223 = vld.sshfl [vmem:[#allocation1 + $0x8] sm:$0xff pattern:$0x73625140]
        %v2225 = vld.sshfl [vmem:[#allocation1 + $0x10] sm:$0xff pattern:$0x73625140]
        %2227 = vrot.lane.b32.xlu0 %v2206, 29
        %v2228 = vpop.permute.xlu0 %2227
        %2229 = vrot.lane.b32.xlu0 %v2208, 29
        %v2230 = vpop.permute.xlu0 %2229
        %2231 = vrot.lane.b32.xlu0 %v2210, 29
        %v2232 = vpop.permute.xlu0 %2231
        %2233 = vrot.lane.b32.xlu0 %v2212, 29
        %v2234 = vpop.permute.xlu0 %2233
        %2235 = vrot.lane.b32.xlu0 %v2214, 29
        %v2236 = vpop.permute.xlu0 %2235
        %2237 = vrot.lane.b32.xlu0 %v2216, 29
        %v2238 = vpop.permute.xlu0 %2237
        %2239 = vrot.lane.b32.xlu0 %v2218, 29
        %v2240 = vpop.permute.xlu0 %2239
        %2241 = vrot.lane.b32.xlu0 %v2221, 29
        %v2242 = vpop.permute.xlu0 %2241
        %2243 = vrot.lane.b32.xlu0 %v2223, 29
        %v2244 = vpop.permute.xlu0 %2243
        %2245 = vrot.lane.b32.xlu0 %v2225, 29
        %v2246 = vpop.permute.xlu0 %2245
        %vm2247 = vcmask 236544
        %v2248 = vsel %vm2247, %v2228, %v2230
        %v2249 = vsel %vm2247, %v2230, %v2232
        %v2250 = vsel %vm2247, %v2232, %v2234
        %v2251 = vsel %vm2247, %v2234, %v2236
        %v2252 = vsel %vm2247, %v2236, %v2238
        %v2253 = vsel %vm2247, %v2238, %v2240
        %v2254 = vsel %vm2247, %v2240, %v2242
        %v2255 = vsel %vm2247, %v2242, %v2244
        %v2256 = vsel %vm2247, %v2244, %v2246
        %2257 = vst [vmem:[#allocation1] ss:$4 sm:$0xff] %v322
        %s2258 = scalar_lea.vmem [#allocation1], 32
        %2259 = vst [vmem:[%s2258] ss:$4 sm:$0xff] %v323
        %v2260 = vld.sshfl [vmem:[#allocation1 + $0x8] sm:$0xff pattern:$0x73625140]
        %v2262 = vld.sshfl [vmem:[#allocation1 + $0x10] sm:$0xff pattern:$0x73625140]
        %v2264 = vld.sshfl [vmem:[#allocation1 + $0x18] sm:$0xff pattern:$0x73625140]
        %v2266 = vld.sshfl [vmem:[#allocation1 + $0x20] sm:$0xff pattern:$0x73625140]
        %v2268 = vld.sshfl [vmem:[#allocation1 + $0x28] sm:$0xff pattern:$0x73625140]
        %v2270 = vld.sshfl [vmem:[#allocation1 + $0x30] sm:$0xff pattern:$0x73625140]
        %v2272 = vld.sshfl [vmem:[#allocation1 + $0x38] sm:$0xff pattern:$0x73625140]
        %2274 = vst [vmem:[#allocation1] ss:$4 sm:$0xff] %v324
        %v2275 = vld.sshfl [vmem:[#allocation1] sm:$0xff pattern:$0x73625140]
        %v2277 = vld.sshfl [vmem:[#allocation1 + $0x8] sm:$0xff pattern:$0x73625140]
        %v2279 = vld.sshfl [vmem:[#allocation1 + $0x10] sm:$0xff pattern:$0x73625140]
        %2281 = vrot.lane.b32.xlu0 %v2260, 28
        %v2282 = vpop.permute.xlu0 %2281
        %2283 = vrot.lane.b32.xlu0 %v2262, 28
        %v2284 = vpop.permute.xlu0 %2283
        %2285 = vrot.lane.b32.xlu0 %v2264, 28
        %v2286 = vpop.permute.xlu0 %2285
        %2287 = vrot.lane.b32.xlu0 %v2266, 28
        %v2288 = vpop.permute.xlu0 %2287
        %2289 = vrot.lane.b32.xlu0 %v2268, 28
        %v2290 = vpop.permute.xlu0 %2289
        %2291 = vrot.lane.b32.xlu0 %v2270, 28
        %v2292 = vpop.permute.xlu0 %2291
        %2293 = vrot.lane.b32.xlu0 %v2272, 28
        %v2294 = vpop.permute.xlu0 %2293
        %2295 = vrot.lane.b32.xlu0 %v2275, 28
        %v2296 = vpop.permute.xlu0 %2295
        %2297 = vrot.lane.b32.xlu0 %v2277, 28
        %v2298 = vpop.permute.xlu0 %2297
        %2299 = vrot.lane.b32.xlu0 %v2279, 28
        %v2300 = vpop.permute.xlu0 %2299
        %vm2301 = vcmask 228352
        %v2302 = vsel %vm2301, %v2282, %v2284
        %v2303 = vsel %vm2301, %v2284, %v2286
        %v2304 = vsel %vm2301, %v2286, %v2288
        %v2305 = vsel %vm2301, %v2288, %v2290
        %v2306 = vsel %vm2301, %v2290, %v2292
        %v2307 = vsel %vm2301, %v2292, %v2294
        %v2308 = vsel %vm2301, %v2294, %v2296
        %v2309 = vsel %vm2301, %v2296, %v2298
        %v2310 = vsel %vm2301, %v2298, %v2300
        %s2311 = scalar_lea.vmem [#allocation1], 1
        %2312 = vst [vmem:[%s2311] ss:$4 sm:$0xff] %v322
        %s2313 = scalar_lea.vmem [#allocation1], 33
        %2314 = vst [vmem:[%s2313] ss:$4 sm:$0xff] %v323
        %v2315 = vld.sshfl [vmem:[#allocation1 + $0x8] sm:$0xff pattern:$0x73625140]
        %v2317 = vld.sshfl [vmem:[#allocation1 + $0x10] sm:$0xff pattern:$0x73625140]
        %v2319 = vld.sshfl [vmem:[#allocation1 + $0x18] sm:$0xff pattern:$0x73625140]
        %v2321 = vld.sshfl [vmem:[#allocation1 + $0x20] sm:$0xff pattern:$0x73625140]
        %v2323 = vld.sshfl [vmem:[#allocation1 + $0x28] sm:$0xff pattern:$0x73625140]
        %v2325 = vld.sshfl [vmem:[#allocation1 + $0x30] sm:$0xff pattern:$0x73625140]
        %v2327 = vld.sshfl [vmem:[#allocation1 + $0x38] sm:$0xff pattern:$0x73625140]
        %2329 = vst [vmem:[%s2311] ss:$4 sm:$0xff] %v324
        %v2330 = vld.sshfl [vmem:[#allocation1] sm:$0xff pattern:$0x73625140]
        %v2332 = vld.sshfl [vmem:[#allocation1 + $0x8] sm:$0xff pattern:$0x73625140]
        %v2334 = vld.sshfl [vmem:[#allocation1 + $0x10] sm:$0xff pattern:$0x73625140]
        %2336 = vrot.lane.b32.xlu0 %v2315, 27
        %v2337 = vpop.permute.xlu0 %2336
        %2338 = vrot.lane.b32.xlu0 %v2317, 27
        %v2339 = vpop.permute.xlu0 %2338
        %2340 = vrot.lane.b32.xlu0 %v2319, 27
        %v2341 = vpop.permute.xlu0 %2340
        %2342 = vrot.lane.b32.xlu0 %v2321, 27
        %v2343 = vpop.permute.xlu0 %2342
        %2344 = vrot.lane.b32.xlu0 %v2323, 27
        %v2345 = vpop.permute.xlu0 %2344
        %2346 = vrot.lane.b32.xlu0 %v2325, 27
        %v2347 = vpop.permute.xlu0 %2346
        %2348 = vrot.lane.b32.xlu0 %v2327, 27
        %v2349 = vpop.permute.xlu0 %2348
        %2350 = vrot.lane.b32.xlu0 %v2330, 27
        %v2351 = vpop.permute.xlu0 %2350
        %2352 = vrot.lane.b32.xlu0 %v2332, 27
        %v2353 = vpop.permute.xlu0 %2352
        %2354 = vrot.lane.b32.xlu0 %v2334, 27
        %v2355 = vpop.permute.xlu0 %2354
        %vm2356 = vcmask 220160
        %v2357 = vsel %vm2356, %v2337, %v2339
        %v2358 = vsel %vm2356, %v2339, %v2341
        %v2359 = vsel %vm2356, %v2341, %v2343
        %v2360 = vsel %vm2356, %v2343, %v2345
        %v2361 = vsel %vm2356, %v2345, %v2347
        %v2362 = vsel %vm2356, %v2347, %v2349
        %v2363 = vsel %vm2356, %v2349, %v2351
        %v2364 = vsel %vm2356, %v2351, %v2353
        %v2365 = vsel %vm2356, %v2353, %v2355
        %s2366 = scalar_lea.vmem [#allocation1], 2
        %2367 = vst [vmem:[%s2366] ss:$4 sm:$0xff] %v322
        %s2368 = scalar_lea.vmem [#allocation1], 34
        %2369 = vst [vmem:[%s2368] ss:$4 sm:$0xff] %v323
        %v2370 = vld.sshfl [vmem:[#allocation1 + $0x8] sm:$0xff pattern:$0x73625140]
        %v2372 = vld.sshfl [vmem:[#allocation1 + $0x10] sm:$0xff pattern:$0x73625140]
        %v2374 = vld.sshfl [vmem:[#allocation1 + $0x18] sm:$0xff pattern:$0x73625140]
        %v2376 = vld.sshfl [vmem:[#allocation1 + $0x20] sm:$0xff pattern:$0x73625140]
        %v2378 = vld.sshfl [vmem:[#allocation1 + $0x28] sm:$0xff pattern:$0x73625140]
        %v2380 = vld.sshfl [vmem:[#allocation1 + $0x30] sm:$0xff pattern:$0x73625140]
        %v2382 = vld.sshfl [vmem:[#allocation1 + $0x38] sm:$0xff pattern:$0x73625140]
        %2384 = vst [vmem:[%s2366] ss:$4 sm:$0xff] %v324
        %v2385 = vld.sshfl [vmem:[#allocation1] sm:$0xff pattern:$0x73625140]
        %v2387 = vld.sshfl [vmem:[#allocation1 + $0x8] sm:$0xff pattern:$0x73625140]
        %v2389 = vld.sshfl [vmem:[#allocation1 + $0x10] sm:$0xff pattern:$0x73625140]
        %2391 = vrot.lane.b32.xlu0 %v2370, 19
        %v2392 = vpop.permute.xlu0 %2391
        %2393 = vrot.lane.b32.xlu0 %v2372, 19
        %v2394 = vpop.permute.xlu0 %2393
        %2395 = vrot.lane.b32.xlu0 %v2374, 19
        %v2396 = vpop.permute.xlu0 %2395
        %2397 = vrot.lane.b32.xlu0 %v2376, 19
        %v2398 = vpop.permute.xlu0 %2397
        %2399 = vrot.lane.b32.xlu0 %v2378, 19
        %v2400 = vpop.permute.xlu0 %2399
        %2401 = vrot.lane.b32.xlu0 %v2380, 19
        %v2402 = vpop.permute.xlu0 %2401
        %2403 = vrot.lane.b32.xlu0 %v2382, 19
        %v2404 = vpop.permute.xlu0 %2403
        %2405 = vrot.lane.b32.xlu0 %v2385, 19
        %v2406 = vpop.permute.xlu0 %2405
        %2407 = vrot.lane.b32.xlu0 %v2387, 19
        %v2408 = vpop.permute.xlu0 %2407
        %2409 = vrot.lane.b32.xlu0 %v2389, 19
        %v2410 = vpop.permute.xlu0 %2409
        %vm2411 = vcmask 154624
        %v2412 = vsel %vm2411, %v2392, %v2394
        %v2413 = vsel %vm2411, %v2394, %v2396
        %v2414 = vsel %vm2411, %v2396, %v2398
        %v2415 = vsel %vm2411, %v2398, %v2400
        %v2416 = vsel %vm2411, %v2400, %v2402
        %v2417 = vsel %vm2411, %v2402, %v2404
        %v2418 = vsel %vm2411, %v2404, %v2406
        %v2419 = vsel %vm2411, %v2406, %v2408
        %v2420 = vsel %vm2411, %v2408, %v2410
        %s2421 = scalar_lea.vmem [#allocation1], 3
        %2422 = vst [vmem:[%s2421] ss:$4 sm:$0xff] %v322
        %s2423 = scalar_lea.vmem [#allocation1], 35
        %2424 = vst [vmem:[%s2423] ss:$4 sm:$0xff] %v323
        %v2425 = vld.sshfl [vmem:[#allocation1 + $0x8] sm:$0xff pattern:$0x73625140]
        %v2427 = vld.sshfl [vmem:[#allocation1 + $0x10] sm:$0xff pattern:$0x73625140]
        %v2429 = vld.sshfl [vmem:[#allocation1 + $0x18] sm:$0xff pattern:$0x73625140]
        %v2431 = vld.sshfl [vmem:[#allocation1 + $0x20] sm:$0xff pattern:$0x73625140]
        %v2433 = vld.sshfl [vmem:[#allocation1 + $0x28] sm:$0xff pattern:$0x73625140]
        %v2435 = vld.sshfl [vmem:[#allocation1 + $0x30] sm:$0xff pattern:$0x73625140]
        %v2437 = vld.sshfl [vmem:[#allocation1 + $0x38] sm:$0xff pattern:$0x73625140]
        %2439 = vst [vmem:[%s2421] ss:$4 sm:$0xff] %v324
        %v2440 = vld.sshfl [vmem:[#allocation1] sm:$0xff pattern:$0x73625140]
        %v2442 = vld.sshfl [vmem:[#allocation1 + $0x8] sm:$0xff pattern:$0x73625140]
        %v2444 = vld.sshfl [vmem:[#allocation1 + $0x10] sm:$0xff pattern:$0x73625140]
        %2446 = vrot.lane.b32.xlu0 %v2425, 18
        %v2447 = vpop.permute.xlu0 %2446
        %2448 = vrot.lane.b32.xlu0 %v2427, 18
        %v2449 = vpop.permute.xlu0 %2448
        %2450 = vrot.lane.b32.xlu0 %v2429, 18
        %v2451 = vpop.permute.xlu0 %2450
        %2452 = vrot.lane.b32.xlu0 %v2431, 18
        %v2453 = vpop.permute.xlu0 %2452
        %2454 = vrot.lane.b32.xlu0 %v2433, 18
        %v2455 = vpop.permute.xlu0 %2454
        %2456 = vrot.lane.b32.xlu0 %v2435, 18
        %v2457 = vpop.permute.xlu0 %2456
        %2458 = vrot.lane.b32.xlu0 %v2437, 18
        %v2459 = vpop.permute.xlu0 %2458
        %2460 = vrot.lane.b32.xlu0 %v2440, 18
        %v2461 = vpop.permute.xlu0 %2460
        %2462 = vrot.lane.b32.xlu0 %v2442, 18
        %v2463 = vpop.permute.xlu0 %2462
        %2464 = vrot.lane.b32.xlu0 %v2444, 18
        %v2465 = vpop.permute.xlu0 %2464
        %vm2466 = vcmask 146432
        %v2467 = vsel %vm2466, %v2447, %v2449
        %v2468 = vsel %vm2466, %v2449, %v2451
        %v2469 = vsel %vm2466, %v2451, %v2453
        %v2470 = vsel %vm2466, %v2453, %v2455
        %v2471 = vsel %vm2466, %v2455, %v2457
        %v2472 = vsel %vm2466, %v2457, %v2459
        %v2473 = vsel %vm2466, %v2459, %v2461
        %v2474 = vsel %vm2466, %v2461, %v2463
        %v2475 = vsel %vm2466, %v2463, %v2465
        %2476 = vst [vmem:[#allocation1] ss:$4 sm:$0xff] %v322
        %s2477 = scalar_lea.vmem [#allocation1], 32
        %2478 = vst [vmem:[%s2477] ss:$4 sm:$0xff] %v323
        %v2479 = vld.sshfl [vmem:[#allocation1 + $0x8] sm:$0xff pattern:$0x73625140]
        %v2481 = vld.sshfl [vmem:[#allocation1 + $0x10] sm:$0xff pattern:$0x73625140]
        %v2483 = vld.sshfl [vmem:[#allocation1 + $0x18] sm:$0xff pattern:$0x73625140]
        %v2485 = vld.sshfl [vmem:[#allocation1 + $0x20] sm:$0xff pattern:$0x73625140]
        %v2487 = vld.sshfl [vmem:[#allocation1 + $0x28] sm:$0xff pattern:$0x73625140]
        %v2489 = vld.sshfl [vmem:[#allocation1 + $0x30] sm:$0xff pattern:$0x73625140]
        %v2491 = vld.sshfl [vmem:[#allocation1 + $0x38] sm:$0xff pattern:$0x73625140]
        %2493 = vst [vmem:[#allocation1] ss:$4 sm:$0xff] %v324
        %v2494 = vld.sshfl [vmem:[#allocation1] sm:$0xff pattern:$0x73625140]
        %v2496 = vld.sshfl [vmem:[#allocation1 + $0x8] sm:$0xff pattern:$0x73625140]
        %v2498 = vld.sshfl [vmem:[#allocation1 + $0x10] sm:$0xff pattern:$0x73625140]
        %2500 = vrot.lane.b32.xlu0 %v2479, 17
        %v2501 = vpop.permute.xlu0 %2500
        %2502 = vrot.lane.b32.xlu0 %v2481, 17
        %v2503 = vpop.permute.xlu0 %2502
        %2504 = vrot.lane.b32.xlu0 %v2483, 17
        %v2505 = vpop.permute.xlu0 %2504
        %2506 = vrot.lane.b32.xlu0 %v2485, 17
        %v2507 = vpop.permute.xlu0 %2506
        %2508 = vrot.lane.b32.xlu0 %v2487, 17
        %v2509 = vpop.permute.xlu0 %2508
        %2510 = vrot.lane.b32.xlu0 %v2489, 17
        %v2511 = vpop.permute.xlu0 %2510
        %2512 = vrot.lane.b32.xlu0 %v2491, 17
        %v2513 = vpop.permute.xlu0 %2512
        %2514 = vrot.lane.b32.xlu0 %v2494, 17
        %v2515 = vpop.permute.xlu0 %2514
        %2516 = vrot.lane.b32.xlu0 %v2496, 17
        %v2517 = vpop.permute.xlu0 %2516
        %2518 = vrot.lane.b32.xlu0 %v2498, 17
        %v2519 = vpop.permute.xlu0 %2518
        %vm2520 = vcmask 138240
        %v2521 = vsel %vm2520, %v2501, %v2503
        %v2522 = vsel %vm2520, %v2503, %v2505
        %v2523 = vsel %vm2520, %v2505, %v2507
        %v2524 = vsel %vm2520, %v2507, %v2509
        %v2525 = vsel %vm2520, %v2509, %v2511
        %v2526 = vsel %vm2520, %v2511, %v2513
        %v2527 = vsel %vm2520, %v2513, %v2515
        %v2528 = vsel %vm2520, %v2515, %v2517
        %v2529 = vsel %vm2520, %v2517, %v2519
        %v2532 = vsel %vm782, %v2083, %v2138
        %v2535 = vsel %vm782, %v2084, %v2139
        %v2538 = vsel %vm782, %v2085, %v2140
        %v2541 = vsel %vm782, %v2086, %v2141
        %v2544 = vsel %vm782, %v2087, %v2142
        %v2547 = vsel %vm782, %v2088, %v2143
        %v2550 = vsel %vm782, %v2089, %v2144
        %v2553 = vsel %vm782, %v2090, %v2145
        %v2556 = vsel %vm782, %v2091, %v2146
        %v2558 = vsel %vm803, %v2532, %v2193
        %v2560 = vsel %vm803, %v2535, %v2194
        %v2562 = vsel %vm803, %v2538, %v2195
        %v2564 = vsel %vm803, %v2541, %v2196
        %v2566 = vsel %vm803, %v2544, %v2197
        %v2568 = vsel %vm803, %v2547, %v2198
        %v2570 = vsel %vm803, %v2550, %v2199
        %v2572 = vsel %vm803, %v2553, %v2200
        %v2574 = vsel %vm803, %v2556, %v2201
        %v2576 = vsel %vm824, %v2558, %v2248
        %v2579 = vsel %vm824, %v2560, %v2249
        %v2582 = vsel %vm824, %v2562, %v2250
        %v2585 = vsel %vm824, %v2564, %v2251
        %v2588 = vsel %vm824, %v2566, %v2252
        %v2591 = vsel %vm824, %v2568, %v2253
        %v2594 = vsel %vm824, %v2570, %v2254
        %v2597 = vsel %vm824, %v2572, %v2255
        %v2600 = vsel %vm824, %v2574, %v2256
        %v2604 = vsel %vm782, %v2302, %v2357
        %v2607 = vsel %vm782, %v2303, %v2358
        %v2610 = vsel %vm782, %v2304, %v2359
        %v2613 = vsel %vm782, %v2305, %v2360
        %v2616 = vsel %vm782, %v2306, %v2361
        %v2619 = vsel %vm782, %v2307, %v2362
        %v2622 = vsel %vm782, %v2308, %v2363
        %v2625 = vsel %vm782, %v2309, %v2364
        %v2628 = vsel %vm782, %v2310, %v2365
        %v2630 = vsel %vm803, %v2604, %v2412
        %v2632 = vsel %vm803, %v2607, %v2413
        %v2634 = vsel %vm803, %v2610, %v2414
        %v2636 = vsel %vm803, %v2613, %v2415
        %v2638 = vsel %vm803, %v2616, %v2416
        %v2640 = vsel %vm803, %v2619, %v2417
        %v2642 = vsel %vm803, %v2622, %v2418
        %v2644 = vsel %vm803, %v2625, %v2419
        %v2646 = vsel %vm803, %v2628, %v2420
        %v2648 = vsel %vm824, %v2630, %v2467
        %v2651 = vsel %vm824, %v2632, %v2468
        %v2654 = vsel %vm824, %v2634, %v2469
        %v2657 = vsel %vm824, %v2636, %v2470
        %v2660 = vsel %vm824, %v2638, %v2471
        %v2663 = vsel %vm824, %v2640, %v2472
        %v2666 = vsel %vm824, %v2642, %v2473
        %v2669 = vsel %vm824, %v2644, %v2474
        %v2672 = vsel %vm824, %v2646, %v2475
        %v2674 = vld [vmem:[#allocation6] sm:$0xf]
        %v2676 = vunpack.c.l.b16 %v2674
        %v2677 = vpack.c.b16 %v2676, %v2676
        %2678 = vrot.lane.b32.xlu0 %v2677, 56
        %v2679 = vpop.permute.xlu0 %2678
        %v2681 = vsel %vm1617, %v2679, 0
        %v2684 = vsel %vm782, %v2521, 0
        %v2687 = vsel %vm782, %v2522, 0
        %v2690 = vsel %vm782, %v2523, 0
        %v2693 = vsel %vm782, %v2524, 0
        %v2696 = vsel %vm782, %v2525, 0
        %v2699 = vsel %vm782, %v2526, 0
        %v2702 = vsel %vm782, %v2527, 0
        %v2705 = vsel %vm782, %v2528, 0
        %v2708 = vsel %vm782, %v2529, 0
        %2710 = vmatpush.bf16.msra.mxu0 0
        %2711 = vmatpush.bf16.msra.mxu0 0
        %2712 = vmatpush.bf16.msra.mxu0 0
        %2713 = vmatpush.bf16.msra.mxu0 0
        %2714 = vmatpush.bf16.msra.mxu0 0
        %2715 = vmatpush.bf16.msra.mxu0 %v2684
        %2716 = vmatpush.bf16.msra.mxu0 %v2648
        %2717 = vmatpush.bf16.msra.mxu0 %v2576
        %2718 = vmatmul.bf16.gmra.mxu0 %v2681
        %v2719 = vpop.f32.mrf.mxu0
        %v2720 = vadd.f32 0.0, %v2719
        %v2721 = vpop.f32.mrf.mxu0
        %2722 = vdwg.mxu0
        %2723 = vmatpush.bf16.msra.mxu0 0
        %2724 = vmatpush.bf16.msra.mxu0 0
        %2725 = vmatpush.bf16.msra.mxu0 0
        %2726 = vmatpush.bf16.msra.mxu0 0
        %2727 = vmatpush.bf16.msra.mxu0 0
        %2728 = vmatpush.bf16.msra.mxu0 %v2687
        %2729 = vmatpush.bf16.msra.mxu0 %v2651
        %2730 = vmatpush.bf16.msra.mxu0 %v2579
        %2731 = vmatmul.bf16.gmra.mxu0 %v2681
        %v2732 = vpop.f32.mrf.mxu0
        %v2733 = vadd.f32 0.0, %v2732
        %v2734 = vpop.f32.mrf.mxu0
        %2735 = vdwg.mxu0
        %2736 = vmatpush.bf16.msra.mxu0 0
        %2737 = vmatpush.bf16.msra.mxu0 0
        %2738 = vmatpush.bf16.msra.mxu0 0
        %2739 = vmatpush.bf16.msra.mxu0 0
        %2740 = vmatpush.bf16.msra.mxu0 0
        %2741 = vmatpush.bf16.msra.mxu0 %v2690
        %2742 = vmatpush.bf16.msra.mxu0 %v2654
        %2743 = vmatpush.bf16.msra.mxu0 %v2582
        %2744 = vmatmul.bf16.gmra.mxu0 %v2681
        %v2745 = vpop.f32.mrf.mxu0
        %v2746 = vadd.f32 0.0, %v2745
        %v2747 = vpop.f32.mrf.mxu0
        %2748 = vdwg.mxu0
        %2749 = vmatpush.bf16.msra.mxu0 0
        %2750 = vmatpush.bf16.msra.mxu0 0
        %2751 = vmatpush.bf16.msra.mxu0 0
        %2752 = vmatpush.bf16.msra.mxu0 0
        %2753 = vmatpush.bf16.msra.mxu0 0
        %2754 = vmatpush.bf16.msra.mxu0 %v2693
        %2755 = vmatpush.bf16.msra.mxu0 %v2657
        %2756 = vmatpush.bf16.msra.mxu0 %v2585
        %2757 = vmatmul.bf16.gmra.mxu0 %v2681
        %v2758 = vpop.f32.mrf.mxu0
        %v2759 = vadd.f32 0.0, %v2758
        %v2760 = vpop.f32.mrf.mxu0
        %2761 = vdwg.mxu0
        %2762 = vmatpush.bf16.msra.mxu0 0
        %2763 = vmatpush.bf16.msra.mxu0 0
        %2764 = vmatpush.bf16.msra.mxu0 0
        %2765 = vmatpush.bf16.msra.mxu0 0
        %2766 = vmatpush.bf16.msra.mxu0 0
        %2767 = vmatpush.bf16.msra.mxu0 %v2696
        %2768 = vmatpush.bf16.msra.mxu0 %v2660
        %2769 = vmatpush.bf16.msra.mxu0 %v2588
        %2770 = vmatmul.bf16.gmra.mxu0 %v2681
        %v2771 = vpop.f32.mrf.mxu0
        %v2772 = vadd.f32 0.0, %v2771
        %v2773 = vpop.f32.mrf.mxu0
        %2774 = vdwg.mxu0
        %2775 = vmatpush.bf16.msra.mxu0 0
        %2776 = vmatpush.bf16.msra.mxu0 0
        %2777 = vmatpush.bf16.msra.mxu0 0
        %2778 = vmatpush.bf16.msra.mxu0 0
        %2779 = vmatpush.bf16.msra.mxu0 0
        %2780 = vmatpush.bf16.msra.mxu0 %v2699
        %2781 = vmatpush.bf16.msra.mxu0 %v2663
        %2782 = vmatpush.bf16.msra.mxu0 %v2591
        %2783 = vmatmul.bf16.gmra.mxu0 %v2681
        %v2784 = vpop.f32.mrf.mxu0
        %v2785 = vadd.f32 0.0, %v2784
        %v2786 = vpop.f32.mrf.mxu0
        %2787 = vdwg.mxu0
        %2788 = vmatpush.bf16.msra.mxu0 0
        %2789 = vmatpush.bf16.msra.mxu0 0
        %2790 = vmatpush.bf16.msra.mxu0 0
        %2791 = vmatpush.bf16.msra.mxu0 0
        %2792 = vmatpush.bf16.msra.mxu0 0
        %2793 = vmatpush.bf16.msra.mxu0 %v2702
        %2794 = vmatpush.bf16.msra.mxu0 %v2666
        %2795 = vmatpush.bf16.msra.mxu0 %v2594
        %2796 = vmatmul.bf16.gmra.mxu0 %v2681
        %v2797 = vpop.f32.mrf.mxu0
        %v2798 = vadd.f32 0.0, %v2797
        %v2799 = vpop.f32.mrf.mxu0
        %2800 = vdwg.mxu0
        %2801 = vmatpush.bf16.msra.mxu0 0
        %2802 = vmatpush.bf16.msra.mxu0 0
        %2803 = vmatpush.bf16.msra.mxu0 0
        %2804 = vmatpush.bf16.msra.mxu0 0
        %2805 = vmatpush.bf16.msra.mxu0 0
        %2806 = vmatpush.bf16.msra.mxu0 %v2705
        %2807 = vmatpush.bf16.msra.mxu0 %v2669
        %2808 = vmatpush.bf16.msra.mxu0 %v2597
        %2809 = vmatmul.bf16.gmra.mxu0 %v2681
        %v2810 = vpop.f32.mrf.mxu0
        %v2811 = vadd.f32 0.0, %v2810
        %v2812 = vpop.f32.mrf.mxu0
        %2813 = vdwg.mxu0
        %2814 = vmatpush.bf16.msra.mxu0 0
        %2815 = vmatpush.bf16.msra.mxu0 0
        %2816 = vmatpush.bf16.msra.mxu0 0
        %2817 = vmatpush.bf16.msra.mxu0 0
        %2818 = vmatpush.bf16.msra.mxu0 0
        %2819 = vmatpush.bf16.msra.mxu0 %v2708
        %2820 = vmatpush.bf16.msra.mxu0 %v2672
        %2821 = vmatpush.bf16.msra.mxu0 %v2600
        %2822 = vmatmul.bf16.gmra.mxu0 %v2681
        %v2823 = vpop.f32.mrf.mxu0
        %v2824 = vadd.f32 0.0, %v2823
        %v2825 = vpop.f32.mrf.mxu0
        %2826 = vdwg.mxu0
        %v2827 = vadd.f32 %v1931, %v2720
        %v2828 = vadd.f32 %v1944, %v2733
        %v2829 = vadd.f32 %v1957, %v2746
        %v2830 = vadd.f32 %v1970, %v2759
        %v2831 = vadd.f32 %v1983, %v2772
        %v2832 = vadd.f32 %v1996, %v2785
        %v2833 = vadd.f32 %v2009, %v2798
        %v2834 = vadd.f32 %v2022, %v2811
        %v2835 = vadd.f32 %v2035, %v2824
        %v2836 = vld [vmem:[%s3] sm:$0xff]
        %2838 = vset.pattern.permute.xlu0 0
        %2839 = vperm.xlu0 %2838, %v2836
        %v2840 = vpop.permute.xlu0 %2839
        %v2842 = vadd.f32 %v2827, %v2840
        %v2843 = vadd.f32 %v2828, %v2840
        %v2844 = vadd.f32 %v2829, %v2840
        %v2845 = vadd.f32 %v2830, %v2840
        %v2846 = vadd.f32 %v2831, %v2840
        %v2847 = vadd.f32 %v2832, %v2840
        %v2848 = vadd.f32 %v2833, %v2840
        %v2849 = vadd.f32 %v2834, %v2840
        %v2850 = vadd.f32 %v2835, %v2840
        %v2851 = vmax.f32 %v2842, 0.0
        %v2852 = vmax.f32 %v2843, 0.0
        %v2853 = vmax.f32 %v2844, 0.0
        %v2854 = vmax.f32 %v2845, 0.0
        %v2855 = vmax.f32 %v2846, 0.0
        %v2856 = vmax.f32 %v2847, 0.0
        %v2857 = vmax.f32 %v2848, 0.0
        %v2858 = vmax.f32 %v2849, 0.0
        %v2859 = vmax.f32 %v2850, 0.0
        %v2862 = vperm.slane %v325, 0
        %v2863 = vperm.slane %v325, 1
        %v2864 = vperm.slane %v325, 2
        %v2865 = vperm.slane %v325, 3
        %v2866 = vperm.slane %v325, 4
        %v2867 = vperm.slane %v325, 5
        %v2868 = vperm.slane %v325, 6
        %v2869 = vperm.slane %v325, 7
        %v2870 = vperm.slane %v326, 0
        %v2880 = vmul.f32 %v2851, %v2862
        %v2881 = vmul.f32 %v2852, %v2863
        %v2882 = vmul.f32 %v2853, %v2864
        %v2883 = vmul.f32 %v2854, %v2865
        %v2884 = vmul.f32 %v2855, %v2866
        %v2885 = vmul.f32 %v2856, %v2867
        %v2886 = vmul.f32 %v2857, %v2868
        %v2887 = vmul.f32 %v2858, %v2869
        %v2888 = vmul.f32 %v2859, %v2870
        %v2889 = vpack.c.bf16 %v2881, %v2880
        %v2890 = vpack.c.bf16 %v2883, %v2882
        %v2891 = vpack.c.bf16 %v2885, %v2884
        %v2892 = vpack.c.bf16 %v2887, %v2886
        %v2893 = vpack.c.bf16 %v2888, %v2888
        %2894 = vst [vmem:[#allocation2] sm:$0xff] %v2889
        %2895 = vst [vmem:[#allocation2 + $0x8] sm:$0xff] %v2890
        %2896 = vst [vmem:[#allocation2 + $0x10] sm:$0xff] %v2891
        %2897 = vst [vmem:[#allocation2 + $0x18] sm:$0xff] %v2892
        %2898 = vst [vmem:[#allocation2 + $0x20] sm:$0xf] %v2893
        %v2899 = vld [vmem:[#allocation2] sm:$0xff]
        %v2900 = vld [vmem:[#allocation2 + $0x8] sm:$0xff]
        %v2901 = vld [vmem:[#allocation2 + $0x10] sm:$0xff]
        %v2902 = vld [vmem:[#allocation2 + $0x18] sm:$0xff]
        %v2903 = vld [vmem:[#allocation2 + $0x20] sm:$0xf]
        %v2908 = vunpack.c.l.b16 %v2899
        %v2909 = vunpack.c.h.b16 %v2899
        %v2910 = vunpack.c.l.b16 %v2900
        %v2911 = vunpack.c.h.b16 %v2900
        %v2912 = vunpack.c.l.b16 %v2901
        %v2913 = vunpack.c.h.b16 %v2901
        %v2914 = vunpack.c.l.b16 %v2902
        %v2915 = vunpack.c.h.b16 %v2902
        %v2916 = vpack.c.b16 %v2908, %v2908
        %v2917 = vpack.c.b16 %v2909, %v2909
        %v2918 = vpack.c.b16 %v2910, %v2910
        %v2919 = vpack.c.b16 %v2911, %v2911
        %v2920 = vpack.c.b16 %v2912, %v2912
        %v2921 = vpack.c.b16 %v2913, %v2913
        %v2922 = vpack.c.b16 %v2914, %v2914
        %v2923 = vpack.c.b16 %v2915, %v2915
        %2924 = vrot.lane.b32.xlu0 %v2916, 127
        %v2925 = vpop.permute.xlu0 %2924
        %2926 = vrot.lane.b32.xlu0 %v2917, 127
        %v2927 = vpop.permute.xlu0 %2926
        %2928 = vrot.lane.b32.xlu0 %v2918, 127
        %v2929 = vpop.permute.xlu0 %2928
        %2930 = vrot.lane.b32.xlu0 %v2919, 127
        %v2931 = vpop.permute.xlu0 %2930
        %2932 = vrot.lane.b32.xlu0 %v2920, 127
        %v2933 = vpop.permute.xlu0 %2932
        %2934 = vrot.lane.b32.xlu0 %v2921, 127
        %v2935 = vpop.permute.xlu0 %2934
        %2936 = vrot.lane.b32.xlu0 %v2922, 127
        %v2937 = vpop.permute.xlu0 %2936
        %2938 = vrot.lane.b32.xlu0 %v2923, 127
        %v2939 = vpop.permute.xlu0 %2938
        %v2940 = vsel %vm389, %v2925, %v2927
        %v2941 = vsel %vm389, %v2927, %v2929
        %v2942 = vsel %vm389, %v2929, %v2931
        %v2943 = vsel %vm389, %v2931, %v2933
        %v2944 = vsel %vm389, %v2933, %v2935
        %v2945 = vsel %vm389, %v2935, %v2937
        %v2946 = vsel %vm389, %v2937, %v2939
        %2947 = vrot.lane.b32.xlu0 %v2916, 126
        %v2948 = vpop.permute.xlu0 %2947
        %2949 = vrot.lane.b32.xlu0 %v2917, 126
        %v2950 = vpop.permute.xlu0 %2949
        %2951 = vrot.lane.b32.xlu0 %v2918, 126
        %v2952 = vpop.permute.xlu0 %2951
        %2953 = vrot.lane.b32.xlu0 %v2919, 126
        %v2954 = vpop.permute.xlu0 %2953
        %2955 = vrot.lane.b32.xlu0 %v2920, 126
        %v2956 = vpop.permute.xlu0 %2955
        %2957 = vrot.lane.b32.xlu0 %v2921, 126
        %v2958 = vpop.permute.xlu0 %2957
        %2959 = vrot.lane.b32.xlu0 %v2922, 126
        %v2960 = vpop.permute.xlu0 %2959
        %2961 = vrot.lane.b32.xlu0 %v2923, 126
        %v2962 = vpop.permute.xlu0 %2961
        %v2963 = vsel %vm444, %v2948, %v2950
        %v2964 = vsel %vm444, %v2950, %v2952
        %v2965 = vsel %vm444, %v2952, %v2954
        %v2966 = vsel %vm444, %v2954, %v2956
        %v2967 = vsel %vm444, %v2956, %v2958
        %v2968 = vsel %vm444, %v2958, %v2960
        %v2969 = vsel %vm444, %v2960, %v2962
        %2970 = vrot.lane.b32.xlu0 %v2916, 118
        %v2971 = vpop.permute.xlu0 %2970
        %2972 = vrot.lane.b32.xlu0 %v2917, 118
        %v2973 = vpop.permute.xlu0 %2972
        %2974 = vrot.lane.b32.xlu0 %v2918, 118
        %v2975 = vpop.permute.xlu0 %2974
        %2976 = vrot.lane.b32.xlu0 %v2919, 118
        %v2977 = vpop.permute.xlu0 %2976
        %2978 = vrot.lane.b32.xlu0 %v2920, 118
        %v2979 = vpop.permute.xlu0 %2978
        %2980 = vrot.lane.b32.xlu0 %v2921, 118
        %v2981 = vpop.permute.xlu0 %2980
        %2982 = vrot.lane.b32.xlu0 %v2922, 118
        %v2983 = vpop.permute.xlu0 %2982
        %2984 = vrot.lane.b32.xlu0 %v2923, 118
        %v2985 = vpop.permute.xlu0 %2984
        %v2986 = vsel %vm499, %v2971, %v2973
        %v2987 = vsel %vm499, %v2973, %v2975
        %v2988 = vsel %vm499, %v2975, %v2977
        %v2989 = vsel %vm499, %v2977, %v2979
        %v2990 = vsel %vm499, %v2979, %v2981
        %v2991 = vsel %vm499, %v2981, %v2983
        %v2992 = vsel %vm499, %v2983, %v2985
        %2993 = vrot.lane.b32.xlu0 %v2916, 117
        %v2994 = vpop.permute.xlu0 %2993
        %2995 = vrot.lane.b32.xlu0 %v2917, 117
        %v2996 = vpop.permute.xlu0 %2995
        %2997 = vrot.lane.b32.xlu0 %v2918, 117
        %v2998 = vpop.permute.xlu0 %2997
        %2999 = vrot.lane.b32.xlu0 %v2919, 117
        %v3000 = vpop.permute.xlu0 %2999
        %3001 = vrot.lane.b32.xlu0 %v2920, 117
        %v3002 = vpop.permute.xlu0 %3001
        %3003 = vrot.lane.b32.xlu0 %v2921, 117
        %v3004 = vpop.permute.xlu0 %3003
        %3005 = vrot.lane.b32.xlu0 %v2922, 117
        %v3006 = vpop.permute.xlu0 %3005
        %3007 = vrot.lane.b32.xlu0 %v2923, 117
        %v3008 = vpop.permute.xlu0 %3007
        %v3009 = vsel %vm553, %v2994, %v2996
        %v3010 = vsel %vm553, %v2996, %v2998
        %v3011 = vsel %vm553, %v2998, %v3000
        %v3012 = vsel %vm553, %v3000, %v3002
        %v3013 = vsel %vm553, %v3002, %v3004
        %v3014 = vsel %vm553, %v3004, %v3006
        %v3015 = vsel %vm553, %v3006, %v3008
        %3016 = vrot.lane.b32.xlu0 %v2916, 116
        %v3017 = vpop.permute.xlu0 %3016
        %3018 = vrot.lane.b32.xlu0 %v2917, 116
        %v3019 = vpop.permute.xlu0 %3018
        %3020 = vrot.lane.b32.xlu0 %v2918, 116
        %v3021 = vpop.permute.xlu0 %3020
        %3022 = vrot.lane.b32.xlu0 %v2919, 116
        %v3023 = vpop.permute.xlu0 %3022
        %3024 = vrot.lane.b32.xlu0 %v2920, 116
        %v3025 = vpop.permute.xlu0 %3024
        %3026 = vrot.lane.b32.xlu0 %v2921, 116
        %v3027 = vpop.permute.xlu0 %3026
        %3028 = vrot.lane.b32.xlu0 %v2922, 116
        %v3029 = vpop.permute.xlu0 %3028
        %3030 = vrot.lane.b32.xlu0 %v2923, 116
        %v3031 = vpop.permute.xlu0 %3030
        %v3032 = vsel %vm608, %v3017, %v3019
        %v3033 = vsel %vm608, %v3019, %v3021
        %v3034 = vsel %vm608, %v3021, %v3023
        %v3035 = vsel %vm608, %v3023, %v3025
        %v3036 = vsel %vm608, %v3025, %v3027
        %v3037 = vsel %vm608, %v3027, %v3029
        %v3038 = vsel %vm608, %v3029, %v3031
        %3039 = vrot.lane.b32.xlu0 %v2916, 108
        %v3040 = vpop.permute.xlu0 %3039
        %3041 = vrot.lane.b32.xlu0 %v2917, 108
        %v3042 = vpop.permute.xlu0 %3041
        %3043 = vrot.lane.b32.xlu0 %v2918, 108
        %v3044 = vpop.permute.xlu0 %3043
        %3045 = vrot.lane.b32.xlu0 %v2919, 108
        %v3046 = vpop.permute.xlu0 %3045
        %3047 = vrot.lane.b32.xlu0 %v2920, 108
        %v3048 = vpop.permute.xlu0 %3047
        %3049 = vrot.lane.b32.xlu0 %v2921, 108
        %v3050 = vpop.permute.xlu0 %3049
        %3051 = vrot.lane.b32.xlu0 %v2922, 108
        %v3052 = vpop.permute.xlu0 %3051
        %3053 = vrot.lane.b32.xlu0 %v2923, 108
        %v3054 = vpop.permute.xlu0 %3053
        %v3055 = vsel %vm663, %v3040, %v3042
        %v3056 = vsel %vm663, %v3042, %v3044
        %v3057 = vsel %vm663, %v3044, %v3046
        %v3058 = vsel %vm663, %v3046, %v3048
        %v3059 = vsel %vm663, %v3048, %v3050
        %v3060 = vsel %vm663, %v3050, %v3052
        %v3061 = vsel %vm663, %v3052, %v3054
        %3062 = vrot.lane.b32.xlu0 %v2916, 107
        %v3063 = vpop.permute.xlu0 %3062
        %3064 = vrot.lane.b32.xlu0 %v2917, 107
        %v3065 = vpop.permute.xlu0 %3064
        %3066 = vrot.lane.b32.xlu0 %v2918, 107
        %v3067 = vpop.permute.xlu0 %3066
        %3068 = vrot.lane.b32.xlu0 %v2919, 107
        %v3069 = vpop.permute.xlu0 %3068
        %3070 = vrot.lane.b32.xlu0 %v2920, 107
        %v3071 = vpop.permute.xlu0 %3070
        %3072 = vrot.lane.b32.xlu0 %v2921, 107
        %v3073 = vpop.permute.xlu0 %3072
        %3074 = vrot.lane.b32.xlu0 %v2922, 107
        %v3075 = vpop.permute.xlu0 %3074
        %3076 = vrot.lane.b32.xlu0 %v2923, 107
        %v3077 = vpop.permute.xlu0 %3076
        %v3078 = vsel %vm718, %v3063, %v3065
        %v3079 = vsel %vm718, %v3065, %v3067
        %v3080 = vsel %vm718, %v3067, %v3069
        %v3081 = vsel %vm718, %v3069, %v3071
        %v3082 = vsel %vm718, %v3071, %v3073
        %v3083 = vsel %vm718, %v3073, %v3075
        %v3084 = vsel %vm718, %v3075, %v3077
        %3085 = vrot.lane.b32.xlu0 %v2916, 106
        %v3086 = vpop.permute.xlu0 %3085
        %3087 = vrot.lane.b32.xlu0 %v2917, 106
        %v3088 = vpop.permute.xlu0 %3087
        %3089 = vrot.lane.b32.xlu0 %v2918, 106
        %v3090 = vpop.permute.xlu0 %3089
        %3091 = vrot.lane.b32.xlu0 %v2919, 106
        %v3092 = vpop.permute.xlu0 %3091
        %3093 = vrot.lane.b32.xlu0 %v2920, 106
        %v3094 = vpop.permute.xlu0 %3093
        %3095 = vrot.lane.b32.xlu0 %v2921, 106
        %v3096 = vpop.permute.xlu0 %3095
        %3097 = vrot.lane.b32.xlu0 %v2922, 106
        %v3098 = vpop.permute.xlu0 %3097
        %3099 = vrot.lane.b32.xlu0 %v2923, 106
        %v3100 = vpop.permute.xlu0 %3099
        %v3101 = vsel %vm772, %v3086, %v3088
        %v3102 = vsel %vm772, %v3088, %v3090
        %v3103 = vsel %vm772, %v3090, %v3092
        %v3104 = vsel %vm772, %v3092, %v3094
        %v3105 = vsel %vm772, %v3094, %v3096
        %v3106 = vsel %vm772, %v3096, %v3098
        %v3107 = vsel %vm772, %v3098, %v3100
        %v3110 = vsel %vm803, %v2916, %v2940
        %v3113 = vsel %vm803, %v2917, %v2941
        %v3116 = vsel %vm803, %v2918, %v2942
        %v3119 = vsel %vm803, %v2919, %v2943
        %v3122 = vsel %vm803, %v2920, %v2944
        %v3125 = vsel %vm803, %v2921, %v2945
        %v3128 = vsel %vm803, %v2922, %v2946
        %v3131 = vsel %vm803, %v2923, %v2939
        %v3134 = vsel %vm803, %v2963, %v2986
        %v3137 = vsel %vm803, %v2964, %v2987
        %v3140 = vsel %vm803, %v2965, %v2988
        %v3143 = vsel %vm803, %v2966, %v2989
        %v3146 = vsel %vm803, %v2967, %v2990
        %v3149 = vsel %vm803, %v2968, %v2991
        %v3152 = vsel %vm803, %v2969, %v2992
        %v3155 = vsel %vm803, %v2962, %v2985
        %v3158 = vsel %vm803, %v3009, %v3032
        %v3161 = vsel %vm803, %v3010, %v3033
        %v3164 = vsel %vm803, %v3011, %v3034
        %v3167 = vsel %vm803, %v3012, %v3035
        %v3170 = vsel %vm803, %v3013, %v3036
        %v3173 = vsel %vm803, %v3014, %v3037
        %v3176 = vsel %vm803, %v3015, %v3038
        %v3179 = vsel %vm803, %v3008, %v3031
        %v3182 = vsel %vm803, %v3055, %v3078
        %v3185 = vsel %vm803, %v3056, %v3079
        %v3188 = vsel %vm803, %v3057, %v3080
        %v3191 = vsel %vm803, %v3058, %v3081
        %v3194 = vsel %vm803, %v3059, %v3082
        %v3197 = vsel %vm803, %v3060, %v3083
        %v3200 = vsel %vm803, %v3061, %v3084
        %v3203 = vsel %vm803, %v3054, %v3077
        %v3204 = vld [vmem:[%s4] sm:$0xf]
        %v3206 = vunpack.c.l.b16 %v2903
        %v3207 = vpack.c.b16 %v3206, %v3206
        %3208 = vrot.lane.b32.xlu0 %v3207, 116
        %v3209 = vpop.permute.xlu0 %3208
        %v3210 = vsel %vm608, %v3031, %v3209
        %3211 = vrot.lane.b32.xlu0 %v3207, 108
        %v3212 = vpop.permute.xlu0 %3211
        %v3213 = vsel %vm663, %v3054, %v3212
        %3214 = vrot.lane.b32.xlu0 %v3207, 107
        %v3215 = vpop.permute.xlu0 %3214
        %v3216 = vsel %vm718, %v3077, %v3215
        %3217 = vrot.lane.b32.xlu0 %v3207, 106
        %v3218 = vpop.permute.xlu0 %3217
        %v3219 = vsel %vm772, %v3100, %v3218
        %v3222 = vsel %vm803, %v2996, %v3019
        %v3224 = vsel %vm803, %v3008, %v3210
        %v3227 = vsel %vm803, %v3042, %v3065
        %v3230 = vsel %vm803, %v3213, %v3216
        %v3231 = vld [vmem:[%s4] sm:$0xff]
        %v3233 = vunpack.c.l.b16 %v3231
        %v3234 = vunpack.c.h.b16 %v3231
        %v3235 = vpack.c.b16 %v3233, %v3233
        %v3236 = vpack.c.b16 %v3234, %v3234
        %3237 = vrot.lane.b32.xlu0 %v3235, 56
        %v3238 = vpop.permute.xlu0 %3237
        %3239 = vrot.lane.b32.xlu0 %v3236, 56
        %v3240 = vpop.permute.xlu0 %3239
        %vm3241 = vcmask 457728
        %v3242 = vsel %vm3241, %v3238, %v3240
        %3275 = vrot.lane.b32.xlu0 %v3110, 11
        %v3276 = vpop.permute.xlu0 %3275
        %3277 = vrot.lane.b32.xlu0 %v3113, 11
        %v3278 = vpop.permute.xlu0 %3277
        %3279 = vrot.lane.b32.xlu0 %v3116, 11
        %v3280 = vpop.permute.xlu0 %3279
        %3281 = vrot.lane.b32.xlu0 %v3119, 11
        %v3282 = vpop.permute.xlu0 %3281
        %3283 = vrot.lane.b32.xlu0 %v3122, 11
        %v3284 = vpop.permute.xlu0 %3283
        %3285 = vrot.lane.b32.xlu0 %v3125, 11
        %v3286 = vpop.permute.xlu0 %3285
        %3287 = vrot.lane.b32.xlu0 %v3128, 11
        %v3288 = vpop.permute.xlu0 %3287
        %3289 = vrot.lane.b32.xlu0 %v3131, 11
        %v3290 = vpop.permute.xlu0 %3289
        %3291 = vrot.lane.b32.xlu0 %v3134, 11
        %v3292 = vpop.permute.xlu0 %3291
        %3293 = vrot.lane.b32.xlu0 %v3137, 11
        %v3294 = vpop.permute.xlu0 %3293
        %3295 = vrot.lane.b32.xlu0 %v3140, 11
        %v3296 = vpop.permute.xlu0 %3295
        %3297 = vrot.lane.b32.xlu0 %v3143, 11
        %v3298 = vpop.permute.xlu0 %3297
        %3299 = vrot.lane.b32.xlu0 %v3146, 11
        %v3300 = vpop.permute.xlu0 %3299
        %3301 = vrot.lane.b32.xlu0 %v3149, 11
        %v3302 = vpop.permute.xlu0 %3301
        %3303 = vrot.lane.b32.xlu0 %v3152, 11
        %v3304 = vpop.permute.xlu0 %3303
        %3305 = vrot.lane.b32.xlu0 %v3155, 11
        %v3306 = vpop.permute.xlu0 %3305
        %3307 = vrot.lane.b32.xlu0 %v3222, 11
        %v3308 = vpop.permute.xlu0 %3307
        %3309 = vrot.lane.b32.xlu0 %v3161, 11
        %v3310 = vpop.permute.xlu0 %3309
        %3311 = vrot.lane.b32.xlu0 %v3164, 11
        %v3312 = vpop.permute.xlu0 %3311
        %3313 = vrot.lane.b32.xlu0 %v3167, 11
        %v3314 = vpop.permute.xlu0 %3313
        %3315 = vrot.lane.b32.xlu0 %v3170, 11
        %v3316 = vpop.permute.xlu0 %3315
        %3317 = vrot.lane.b32.xlu0 %v3173, 11
        %v3318 = vpop.permute.xlu0 %3317
        %3319 = vrot.lane.b32.xlu0 %v3176, 11
        %v3320 = vpop.permute.xlu0 %3319
        %3321 = vrot.lane.b32.xlu0 %v3224, 11
        %v3322 = vpop.permute.xlu0 %3321
        %3323 = vrot.lane.b32.xlu0 %v3227, 11
        %v3324 = vpop.permute.xlu0 %3323
        %3325 = vrot.lane.b32.xlu0 %v3185, 11
        %v3326 = vpop.permute.xlu0 %3325
        %3327 = vrot.lane.b32.xlu0 %v3188, 11
        %v3328 = vpop.permute.xlu0 %3327
        %3329 = vrot.lane.b32.xlu0 %v3191, 11
        %v3330 = vpop.permute.xlu0 %3329
        %3331 = vrot.lane.b32.xlu0 %v3194, 11
        %v3332 = vpop.permute.xlu0 %3331
        %3333 = vrot.lane.b32.xlu0 %v3197, 11
        %v3334 = vpop.permute.xlu0 %3333
        %3335 = vrot.lane.b32.xlu0 %v3200, 11
        %v3336 = vpop.permute.xlu0 %3335
        %3337 = vrot.lane.b32.xlu0 %v3230, 11
        %v3338 = vpop.permute.xlu0 %3337
        %3339 = vrot.lane.b32.xlu0 %v3088, 11
        %v3340 = vpop.permute.xlu0 %3339
        %3341 = vrot.lane.b32.xlu0 %v3102, 11
        %v3342 = vpop.permute.xlu0 %3341
        %3343 = vrot.lane.b32.xlu0 %v3103, 11
        %v3344 = vpop.permute.xlu0 %3343
        %3345 = vrot.lane.b32.xlu0 %v3104, 11
        %v3346 = vpop.permute.xlu0 %3345
        %3347 = vrot.lane.b32.xlu0 %v3105, 11
        %v3348 = vpop.permute.xlu0 %3347
        %3349 = vrot.lane.b32.xlu0 %v3106, 11
        %v3350 = vpop.permute.xlu0 %3349
        %3351 = vrot.lane.b32.xlu0 %v3107, 11
        %v3352 = vpop.permute.xlu0 %3351
        %3353 = vrot.lane.b32.xlu0 %v3219, 11
        %v3354 = vpop.permute.xlu0 %3353
        %v3355 = vsel %vm1571, %v3276, %v3278
        %v3356 = vsel %vm1571, %v3278, %v3280
        %v3357 = vsel %vm1571, %v3280, %v3282
        %v3358 = vsel %vm1571, %v3282, %v3284
        %v3359 = vsel %vm1571, %v3284, %v3286
        %v3360 = vsel %vm1571, %v3286, %v3288
        %v3361 = vsel %vm1571, %v3288, %v3290
        %v3362 = vsel %vm1571, %v3292, %v3294
        %v3363 = vsel %vm1571, %v3294, %v3296
        %v3364 = vsel %vm1571, %v3296, %v3298
        %v3365 = vsel %vm1571, %v3298, %v3300
        %v3366 = vsel %vm1571, %v3300, %v3302
        %v3367 = vsel %vm1571, %v3302, %v3304
        %v3368 = vsel %vm1571, %v3304, %v3306
        %v3369 = vsel %vm1571, %v3308, %v3310
        %v3370 = vsel %vm1571, %v3310, %v3312
        %v3371 = vsel %vm1571, %v3312, %v3314
        %v3372 = vsel %vm1571, %v3314, %v3316
        %v3373 = vsel %vm1571, %v3316, %v3318
        %v3374 = vsel %vm1571, %v3318, %v3320
        %v3375 = vsel %vm1571, %v3320, %v3322
        %v3376 = vsel %vm1571, %v3324, %v3326
        %v3377 = vsel %vm1571, %v3326, %v3328
        %v3378 = vsel %vm1571, %v3328, %v3330
        %v3379 = vsel %vm1571, %v3330, %v3332
        %v3380 = vsel %vm1571, %v3332, %v3334
        %v3381 = vsel %vm1571, %v3334, %v3336
        %v3382 = vsel %vm1571, %v3336, %v3338
        %v3383 = vsel %vm1571, %v3340, %v3342
        %v3384 = vsel %vm1571, %v3342, %v3344
        %v3385 = vsel %vm1571, %v3344, %v3346
        %v3386 = vsel %vm1571, %v3346, %v3348
        %v3387 = vsel %vm1571, %v3348, %v3350
        %v3388 = vsel %vm1571, %v3350, %v3352
        %v3389 = vsel %vm1571, %v3352, %v3354
        %vm3418 = vcmask 588800
        %v3420 = vsel %vm3418, %v3242, 0
        %v3423 = vsel %vm803, %v3383, 0
        %v3426 = vsel %vm803, %v3384, 0
        %v3429 = vsel %vm803, %v3385, 0
        %v3432 = vsel %vm803, %v3386, 0
        %v3435 = vsel %vm803, %v3387, 0
        %v3438 = vsel %vm803, %v3388, 0
        %v3441 = vsel %vm803, %v3389, 0
        %3443 = vmatpush.bf16.msra.mxu0 0
        %3444 = vmatpush.bf16.msra.mxu0 0
        %3445 = vmatpush.bf16.msra.mxu0 0
        %3446 = vmatpush.bf16.msra.mxu0 %v3423
        %3447 = vmatpush.bf16.msra.mxu0 %v3376
        %3448 = vmatpush.bf16.msra.mxu0 %v3369
        %3449 = vmatpush.bf16.msra.mxu0 %v3362
        %3450 = vmatpush.bf16.msra.mxu0 %v3355
        %3451 = vmatmul.bf16.gmra.mxu0 %v3420
        %v3452 = vpop.f32.mrf.mxu0
        %v3453 = vadd.f32 0.0, %v3452
        %v3454 = vpop.f32.mrf.mxu0
        %3455 = vdwg.mxu0
        %3456 = vmatpush.bf16.msra.mxu0 0
        %3457 = vmatpush.bf16.msra.mxu0 0
        %3458 = vmatpush.bf16.msra.mxu0 0
        %3459 = vmatpush.bf16.msra.mxu0 %v3426
        %3460 = vmatpush.bf16.msra.mxu0 %v3377
        %3461 = vmatpush.bf16.msra.mxu0 %v3370
        %3462 = vmatpush.bf16.msra.mxu0 %v3363
        %3463 = vmatpush.bf16.msra.mxu0 %v3356
        %3464 = vmatmul.bf16.gmra.mxu0 %v3420
        %v3465 = vpop.f32.mrf.mxu0
        %v3466 = vadd.f32 0.0, %v3465
        %v3467 = vpop.f32.mrf.mxu0
        %3468 = vdwg.mxu0
        %3469 = vmatpush.bf16.msra.mxu0 0
        %3470 = vmatpush.bf16.msra.mxu0 0
        %3471 = vmatpush.bf16.msra.mxu0 0
        %3472 = vmatpush.bf16.msra.mxu0 %v3429
        %3473 = vmatpush.bf16.msra.mxu0 %v3378
        %3474 = vmatpush.bf16.msra.mxu0 %v3371
        %3475 = vmatpush.bf16.msra.mxu0 %v3364
        %3476 = vmatpush.bf16.msra.mxu0 %v3357
        %3477 = vmatmul.bf16.gmra.mxu0 %v3420
        %v3478 = vpop.f32.mrf.mxu0
        %v3479 = vadd.f32 0.0, %v3478
        %v3480 = vpop.f32.mrf.mxu0
        %3481 = vdwg.mxu0
        %3482 = vmatpush.bf16.msra.mxu0 0
        %3483 = vmatpush.bf16.msra.mxu0 0
        %3484 = vmatpush.bf16.msra.mxu0 0
        %3485 = vmatpush.bf16.msra.mxu0 %v3432
        %3486 = vmatpush.bf16.msra.mxu0 %v3379
        %3487 = vmatpush.bf16.msra.mxu0 %v3372
        %3488 = vmatpush.bf16.msra.mxu0 %v3365
        %3489 = vmatpush.bf16.msra.mxu0 %v3358
        %3490 = vmatmul.bf16.gmra.mxu0 %v3420
        %v3491 = vpop.f32.mrf.mxu0
        %v3492 = vadd.f32 0.0, %v3491
        %v3493 = vpop.f32.mrf.mxu0
        %3494 = vdwg.mxu0
        %3495 = vmatpush.bf16.msra.mxu0 0
        %3496 = vmatpush.bf16.msra.mxu0 0
        %3497 = vmatpush.bf16.msra.mxu0 0
        %3498 = vmatpush.bf16.msra.mxu0 %v3435
        %3499 = vmatpush.bf16.msra.mxu0 %v3380
        %3500 = vmatpush.bf16.msra.mxu0 %v3373
        %3501 = vmatpush.bf16.msra.mxu0 %v3366
        %3502 = vmatpush.bf16.msra.mxu0 %v3359
        %3503 = vmatmul.bf16.gmra.mxu0 %v3420
        %v3504 = vpop.f32.mrf.mxu0
        %v3505 = vadd.f32 0.0, %v3504
        %v3506 = vpop.f32.mrf.mxu0
        %3507 = vdwg.mxu0
        %3508 = vmatpush.bf16.msra.mxu0 0
        %3509 = vmatpush.bf16.msra.mxu0 0
        %3510 = vmatpush.bf16.msra.mxu0 0
        %3511 = vmatpush.bf16.msra.mxu0 %v3438
        %3512 = vmatpush.bf16.msra.mxu0 %v3381
        %3513 = vmatpush.bf16.msra.mxu0 %v3374
        %3514 = vmatpush.bf16.msra.mxu0 %v3367
        %3515 = vmatpush.bf16.msra.mxu0 %v3360
        %3516 = vmatmul.bf16.gmra.mxu0 %v3420
        %v3517 = vpop.f32.mrf.mxu0
        %v3518 = vadd.f32 0.0, %v3517
        %v3519 = vpop.f32.mrf.mxu0
        %3520 = vdwg.mxu0
        %3521 = vmatpush.bf16.msra.mxu0 0
        %3522 = vmatpush.bf16.msra.mxu0 0
        %3523 = vmatpush.bf16.msra.mxu0 0
        %3524 = vmatpush.bf16.msra.mxu0 %v3441
        %3525 = vmatpush.bf16.msra.mxu0 %v3382
        %3526 = vmatpush.bf16.msra.mxu0 %v3375
        %3527 = vmatpush.bf16.msra.mxu0 %v3368
        %3528 = vmatpush.bf16.msra.mxu0 %v3361
        %3529 = vmatmul.bf16.gmra.mxu0 %v3420
        %v3530 = vpop.f32.mrf.mxu0
        %v3531 = vadd.f32 0.0, %v3530
        %v3532 = vpop.f32.mrf.mxu0
        %3533 = vdwg.mxu0
        %3538 = vrot.lane.b32.xlu0 %v3110, 111
        %v3539 = vpop.permute.xlu0 %3538
        %3540 = vrot.lane.b32.xlu0 %v3113, 111
        %v3541 = vpop.permute.xlu0 %3540
        %3542 = vrot.lane.b32.xlu0 %v3116, 111
        %v3543 = vpop.permute.xlu0 %3542
        %3544 = vrot.lane.b32.xlu0 %v3119, 111
        %v3545 = vpop.permute.xlu0 %3544
        %3546 = vrot.lane.b32.xlu0 %v3122, 111
        %v3547 = vpop.permute.xlu0 %3546
        %3548 = vrot.lane.b32.xlu0 %v3125, 111
        %v3549 = vpop.permute.xlu0 %3548
        %3550 = vrot.lane.b32.xlu0 %v3128, 111
        %v3551 = vpop.permute.xlu0 %3550
        %3552 = vrot.lane.b32.xlu0 %v3131, 111
        %v3553 = vpop.permute.xlu0 %3552
        %3554 = vrot.lane.b32.xlu0 %v3134, 111
        %v3555 = vpop.permute.xlu0 %3554
        %3556 = vrot.lane.b32.xlu0 %v3137, 111
        %v3557 = vpop.permute.xlu0 %3556
        %3558 = vrot.lane.b32.xlu0 %v3140, 111
        %v3559 = vpop.permute.xlu0 %3558
        %3560 = vrot.lane.b32.xlu0 %v3143, 111
        %v3561 = vpop.permute.xlu0 %3560
        %3562 = vrot.lane.b32.xlu0 %v3146, 111
        %v3563 = vpop.permute.xlu0 %3562
        %3564 = vrot.lane.b32.xlu0 %v3149, 111
        %v3565 = vpop.permute.xlu0 %3564
        %3566 = vrot.lane.b32.xlu0 %v3152, 111
        %v3567 = vpop.permute.xlu0 %3566
        %3568 = vrot.lane.b32.xlu0 %v3155, 111
        %v3569 = vpop.permute.xlu0 %3568
        %3570 = vrot.lane.b32.xlu0 %v3158, 111
        %v3571 = vpop.permute.xlu0 %3570
        %3572 = vrot.lane.b32.xlu0 %v3161, 111
        %v3573 = vpop.permute.xlu0 %3572
        %3574 = vrot.lane.b32.xlu0 %v3164, 111
        %v3575 = vpop.permute.xlu0 %3574
        %3576 = vrot.lane.b32.xlu0 %v3167, 111
        %v3577 = vpop.permute.xlu0 %3576
        %3578 = vrot.lane.b32.xlu0 %v3170, 111
        %v3579 = vpop.permute.xlu0 %3578
        %3580 = vrot.lane.b32.xlu0 %v3173, 111
        %v3581 = vpop.permute.xlu0 %3580
        %3582 = vrot.lane.b32.xlu0 %v3176, 111
        %v3583 = vpop.permute.xlu0 %3582
        %3584 = vrot.lane.b32.xlu0 %v3179, 111
        %v3585 = vpop.permute.xlu0 %3584
        %3586 = vrot.lane.b32.xlu0 %v3182, 111
        %v3587 = vpop.permute.xlu0 %3586
        %3588 = vrot.lane.b32.xlu0 %v3185, 111
        %v3589 = vpop.permute.xlu0 %3588
        %3590 = vrot.lane.b32.xlu0 %v3188, 111
        %v3591 = vpop.permute.xlu0 %3590
        %3592 = vrot.lane.b32.xlu0 %v3191, 111
        %v3593 = vpop.permute.xlu0 %3592
        %3594 = vrot.lane.b32.xlu0 %v3194, 111
        %v3595 = vpop.permute.xlu0 %3594
        %3596 = vrot.lane.b32.xlu0 %v3197, 111
        %v3597 = vpop.permute.xlu0 %3596
        %3598 = vrot.lane.b32.xlu0 %v3200, 111
        %v3599 = vpop.permute.xlu0 %3598
        %3600 = vrot.lane.b32.xlu0 %v3203, 111
        %v3601 = vpop.permute.xlu0 %3600
        %3602 = vrot.lane.b32.xlu0 %v3101, 111
        %v3603 = vpop.permute.xlu0 %3602
        %3604 = vrot.lane.b32.xlu0 %v3102, 111
        %v3605 = vpop.permute.xlu0 %3604
        %3606 = vrot.lane.b32.xlu0 %v3103, 111
        %v3607 = vpop.permute.xlu0 %3606
        %3608 = vrot.lane.b32.xlu0 %v3104, 111
        %v3609 = vpop.permute.xlu0 %3608
        %3610 = vrot.lane.b32.xlu0 %v3105, 111
        %v3611 = vpop.permute.xlu0 %3610
        %3612 = vrot.lane.b32.xlu0 %v3106, 111
        %v3613 = vpop.permute.xlu0 %3612
        %3614 = vrot.lane.b32.xlu0 %v3107, 111
        %v3615 = vpop.permute.xlu0 %3614
        %3616 = vrot.lane.b32.xlu0 %v3100, 111
        %v3617 = vpop.permute.xlu0 %3616
        %v3618 = vsel %vm1845, %v3539, %v3541
        %v3619 = vsel %vm1845, %v3541, %v3543
        %v3620 = vsel %vm1845, %v3543, %v3545
        %v3621 = vsel %vm1845, %v3545, %v3547
        %v3622 = vsel %vm1845, %v3547, %v3549
        %v3623 = vsel %vm1845, %v3549, %v3551
        %v3624 = vsel %vm1845, %v3551, %v3553
        %v3625 = vsel %vm1845, %v3555, %v3557
        %v3626 = vsel %vm1845, %v3557, %v3559
        %v3627 = vsel %vm1845, %v3559, %v3561
        %v3628 = vsel %vm1845, %v3561, %v3563
        %v3629 = vsel %vm1845, %v3563, %v3565
        %v3630 = vsel %vm1845, %v3565, %v3567
        %v3631 = vsel %vm1845, %v3567, %v3569
        %v3632 = vsel %vm1845, %v3571, %v3573
        %v3633 = vsel %vm1845, %v3573, %v3575
        %v3634 = vsel %vm1845, %v3575, %v3577
        %v3635 = vsel %vm1845, %v3577, %v3579
        %v3636 = vsel %vm1845, %v3579, %v3581
        %v3637 = vsel %vm1845, %v3581, %v3583
        %v3638 = vsel %vm1845, %v3583, %v3585
        %v3639 = vsel %vm1845, %v3587, %v3589
        %v3640 = vsel %vm1845, %v3589, %v3591
        %v3641 = vsel %vm1845, %v3591, %v3593
        %v3642 = vsel %vm1845, %v3593, %v3595
        %v3643 = vsel %vm1845, %v3595, %v3597
        %v3644 = vsel %vm1845, %v3597, %v3599
        %v3645 = vsel %vm1845, %v3599, %v3601
        %v3646 = vsel %vm1845, %v3603, %v3605
        %v3647 = vsel %vm1845, %v3605, %v3607
        %v3648 = vsel %vm1845, %v3607, %v3609
        %v3649 = vsel %vm1845, %v3609, %v3611
        %v3650 = vsel %vm1845, %v3611, %v3613
        %v3651 = vsel %vm1845, %v3613, %v3615
        %v3652 = vsel %vm1845, %v3615, %v3617
        %v3682 = vsel %vm3418, %v3204, 0
        %v3685 = vsel %vm803, %v3646, 0
        %v3688 = vsel %vm803, %v3647, 0
        %v3691 = vsel %vm803, %v3648, 0
        %v3694 = vsel %vm803, %v3649, 0
        %v3697 = vsel %vm803, %v3650, 0
        %v3700 = vsel %vm803, %v3651, 0
        %v3703 = vsel %vm803, %v3652, 0
        %3705 = vmatpush.bf16.msra.mxu0 0
        %3706 = vmatpush.bf16.msra.mxu0 0
        %3707 = vmatpush.bf16.msra.mxu0 0
        %3708 = vmatpush.bf16.msra.mxu0 %v3685
        %3709 = vmatpush.bf16.msra.mxu0 %v3639
        %3710 = vmatpush.bf16.msra.mxu0 %v3632
        %3711 = vmatpush.bf16.msra.mxu0 %v3625
        %3712 = vmatpush.bf16.msra.mxu0 %v3618
        %3713 = vmatmul.bf16.gmra.mxu0 %v3682
        %v3714 = vpop.f32.mrf.mxu0
        %v3715 = vadd.f32 %v3453, %v3714
        %v3716 = vpop.f32.mrf.mxu0
        %3717 = vdwg.mxu0
        %3718 = vmatpush.bf16.msra.mxu0 0
        %3719 = vmatpush.bf16.msra.mxu0 0
        %3720 = vmatpush.bf16.msra.mxu0 0
        %3721 = vmatpush.bf16.msra.mxu0 %v3688
        %3722 = vmatpush.bf16.msra.mxu0 %v3640
        %3723 = vmatpush.bf16.msra.mxu0 %v3633
        %3724 = vmatpush.bf16.msra.mxu0 %v3626
        %3725 = vmatpush.bf16.msra.mxu0 %v3619
        %3726 = vmatmul.bf16.gmra.mxu0 %v3682
        %v3727 = vpop.f32.mrf.mxu0
        %v3728 = vadd.f32 %v3466, %v3727
        %v3729 = vpop.f32.mrf.mxu0
        %3730 = vdwg.mxu0
        %3731 = vmatpush.bf16.msra.mxu0 0
        %3732 = vmatpush.bf16.msra.mxu0 0
        %3733 = vmatpush.bf16.msra.mxu0 0
        %3734 = vmatpush.bf16.msra.mxu0 %v3691
        %3735 = vmatpush.bf16.msra.mxu0 %v3641
        %3736 = vmatpush.bf16.msra.mxu0 %v3634
        %3737 = vmatpush.bf16.msra.mxu0 %v3627
        %3738 = vmatpush.bf16.msra.mxu0 %v3620
        %3739 = vmatmul.bf16.gmra.mxu0 %v3682
        %v3740 = vpop.f32.mrf.mxu0
        %v3741 = vadd.f32 %v3479, %v3740
        %v3742 = vpop.f32.mrf.mxu0
        %3743 = vdwg.mxu0
        %3744 = vmatpush.bf16.msra.mxu0 0
        %3745 = vmatpush.bf16.msra.mxu0 0
        %3746 = vmatpush.bf16.msra.mxu0 0
        %3747 = vmatpush.bf16.msra.mxu0 %v3694
        %3748 = vmatpush.bf16.msra.mxu0 %v3642
        %3749 = vmatpush.bf16.msra.mxu0 %v3635
        %3750 = vmatpush.bf16.msra.mxu0 %v3628
        %3751 = vmatpush.bf16.msra.mxu0 %v3621
        %3752 = vmatmul.bf16.gmra.mxu0 %v3682
        %v3753 = vpop.f32.mrf.mxu0
        %v3754 = vadd.f32 %v3492, %v3753
        %v3755 = vpop.f32.mrf.mxu0
        %3756 = vdwg.mxu0
        %3757 = vmatpush.bf16.msra.mxu0 0
        %3758 = vmatpush.bf16.msra.mxu0 0
        %3759 = vmatpush.bf16.msra.mxu0 0
        %3760 = vmatpush.bf16.msra.mxu0 %v3697
        %3761 = vmatpush.bf16.msra.mxu0 %v3643
        %3762 = vmatpush.bf16.msra.mxu0 %v3636
        %3763 = vmatpush.bf16.msra.mxu0 %v3629
        %3764 = vmatpush.bf16.msra.mxu0 %v3622
        %3765 = vmatmul.bf16.gmra.mxu0 %v3682
        %v3766 = vpop.f32.mrf.mxu0
        %v3767 = vadd.f32 %v3505, %v3766
        %v3768 = vpop.f32.mrf.mxu0
        %3769 = vdwg.mxu0
        %3770 = vmatpush.bf16.msra.mxu0 0
        %3771 = vmatpush.bf16.msra.mxu0 0
        %3772 = vmatpush.bf16.msra.mxu0 0
        %3773 = vmatpush.bf16.msra.mxu0 %v3700
        %3774 = vmatpush.bf16.msra.mxu0 %v3644
        %3775 = vmatpush.bf16.msra.mxu0 %v3637
        %3776 = vmatpush.bf16.msra.mxu0 %v3630
        %3777 = vmatpush.bf16.msra.mxu0 %v3623
        %3778 = vmatmul.bf16.gmra.mxu0 %v3682
        %v3779 = vpop.f32.mrf.mxu0
        %v3780 = vadd.f32 %v3518, %v3779
        %v3781 = vpop.f32.mrf.mxu0
        %3782 = vdwg.mxu0
        %3783 = vmatpush.bf16.msra.mxu0 0
        %3784 = vmatpush.bf16.msra.mxu0 0
        %3785 = vmatpush.bf16.msra.mxu0 0
        %3786 = vmatpush.bf16.msra.mxu0 %v3703
        %3787 = vmatpush.bf16.msra.mxu0 %v3645
        %3788 = vmatpush.bf16.msra.mxu0 %v3638
        %3789 = vmatpush.bf16.msra.mxu0 %v3631
        %3790 = vmatpush.bf16.msra.mxu0 %v3624
        %3791 = vmatmul.bf16.gmra.mxu0 %v3682
        %v3792 = vpop.f32.mrf.mxu0
        %v3793 = vadd.f32 %v3531, %v3792
        %v3794 = vpop.f32.mrf.mxu0
        %3795 = vdwg.mxu0
        %3796 = vrot.lane.b32.xlu0 %v2917, 39
        %v3797 = vpop.permute.xlu0 %3796
        %3798 = vrot.lane.b32.xlu0 %v2918, 39
        %v3799 = vpop.permute.xlu0 %3798
        %3800 = vrot.lane.b32.xlu0 %v2919, 39
        %v3801 = vpop.permute.xlu0 %3800
        %3802 = vrot.lane.b32.xlu0 %v2920, 39
        %v3803 = vpop.permute.xlu0 %3802
        %3804 = vrot.lane.b32.xlu0 %v2921, 39
        %v3805 = vpop.permute.xlu0 %3804
        %3806 = vrot.lane.b32.xlu0 %v2922, 39
        %v3807 = vpop.permute.xlu0 %3806
        %3808 = vrot.lane.b32.xlu0 %v2923, 39
        %v3809 = vpop.permute.xlu0 %3808
        %3810 = vrot.lane.b32.xlu0 %v3207, 39
        %v3811 = vpop.permute.xlu0 %3810
        %v3812 = vsel %vm2082, %v3797, %v3799
        %v3813 = vsel %vm2082, %v3799, %v3801
        %v3814 = vsel %vm2082, %v3801, %v3803
        %v3815 = vsel %vm2082, %v3803, %v3805
        %v3816 = vsel %vm2082, %v3805, %v3807
        %v3817 = vsel %vm2082, %v3807, %v3809
        %v3818 = vsel %vm2082, %v3809, %v3811
        %3819 = vrot.lane.b32.xlu0 %v2917, 38
        %v3820 = vpop.permute.xlu0 %3819
        %3821 = vrot.lane.b32.xlu0 %v2918, 38
        %v3822 = vpop.permute.xlu0 %3821
        %3823 = vrot.lane.b32.xlu0 %v2919, 38
        %v3824 = vpop.permute.xlu0 %3823
        %3825 = vrot.lane.b32.xlu0 %v2920, 38
        %v3826 = vpop.permute.xlu0 %3825
        %3827 = vrot.lane.b32.xlu0 %v2921, 38
        %v3828 = vpop.permute.xlu0 %3827
        %3829 = vrot.lane.b32.xlu0 %v2922, 38
        %v3830 = vpop.permute.xlu0 %3829
        %3831 = vrot.lane.b32.xlu0 %v2923, 38
        %v3832 = vpop.permute.xlu0 %3831
        %3833 = vrot.lane.b32.xlu0 %v3207, 38
        %v3834 = vpop.permute.xlu0 %3833
        %v3835 = vsel %vm2137, %v3820, %v3822
        %v3836 = vsel %vm2137, %v3822, %v3824
        %v3837 = vsel %vm2137, %v3824, %v3826
        %v3838 = vsel %vm2137, %v3826, %v3828
        %v3839 = vsel %vm2137, %v3828, %v3830
        %v3840 = vsel %vm2137, %v3830, %v3832
        %v3841 = vsel %vm2137, %v3832, %v3834
        %3842 = vrot.lane.b32.xlu0 %v2917, 37
        %v3843 = vpop.permute.xlu0 %3842
        %3844 = vrot.lane.b32.xlu0 %v2918, 37
        %v3845 = vpop.permute.xlu0 %3844
        %3846 = vrot.lane.b32.xlu0 %v2919, 37
        %v3847 = vpop.permute.xlu0 %3846
        %3848 = vrot.lane.b32.xlu0 %v2920, 37
        %v3849 = vpop.permute.xlu0 %3848
        %3850 = vrot.lane.b32.xlu0 %v2921, 37
        %v3851 = vpop.permute.xlu0 %3850
        %3852 = vrot.lane.b32.xlu0 %v2922, 37
        %v3853 = vpop.permute.xlu0 %3852
        %3854 = vrot.lane.b32.xlu0 %v2923, 37
        %v3855 = vpop.permute.xlu0 %3854
        %3856 = vrot.lane.b32.xlu0 %v3207, 37
        %v3857 = vpop.permute.xlu0 %3856
        %v3858 = vsel %vm2192, %v3843, %v3845
        %v3859 = vsel %vm2192, %v3845, %v3847
        %v3860 = vsel %vm2192, %v3847, %v3849
        %v3861 = vsel %vm2192, %v3849, %v3851
        %v3862 = vsel %vm2192, %v3851, %v3853
        %v3863 = vsel %vm2192, %v3853, %v3855
        %v3864 = vsel %vm2192, %v3855, %v3857
        %3865 = vrot.lane.b32.xlu0 %v2917, 29
        %v3866 = vpop.permute.xlu0 %3865
        %3867 = vrot.lane.b32.xlu0 %v2918, 29
        %v3868 = vpop.permute.xlu0 %3867
        %3869 = vrot.lane.b32.xlu0 %v2919, 29
        %v3870 = vpop.permute.xlu0 %3869
        %3871 = vrot.lane.b32.xlu0 %v2920, 29
        %v3872 = vpop.permute.xlu0 %3871
        %3873 = vrot.lane.b32.xlu0 %v2921, 29
        %v3874 = vpop.permute.xlu0 %3873
        %3875 = vrot.lane.b32.xlu0 %v2922, 29
        %v3876 = vpop.permute.xlu0 %3875
        %3877 = vrot.lane.b32.xlu0 %v2923, 29
        %v3878 = vpop.permute.xlu0 %3877
        %3879 = vrot.lane.b32.xlu0 %v3207, 29
        %v3880 = vpop.permute.xlu0 %3879
        %v3881 = vsel %vm2247, %v3866, %v3868
        %v3882 = vsel %vm2247, %v3868, %v3870
        %v3883 = vsel %vm2247, %v3870, %v3872
        %v3884 = vsel %vm2247, %v3872, %v3874
        %v3885 = vsel %vm2247, %v3874, %v3876
        %v3886 = vsel %vm2247, %v3876, %v3878
        %v3887 = vsel %vm2247, %v3878, %v3880
        %3888 = vrot.lane.b32.xlu0 %v2917, 28
        %v3889 = vpop.permute.xlu0 %3888
        %3890 = vrot.lane.b32.xlu0 %v2918, 28
        %v3891 = vpop.permute.xlu0 %3890
        %3892 = vrot.lane.b32.xlu0 %v2919, 28
        %v3893 = vpop.permute.xlu0 %3892
        %3894 = vrot.lane.b32.xlu0 %v2920, 28
        %v3895 = vpop.permute.xlu0 %3894
        %3896 = vrot.lane.b32.xlu0 %v2921, 28
        %v3897 = vpop.permute.xlu0 %3896
        %3898 = vrot.lane.b32.xlu0 %v2922, 28
        %v3899 = vpop.permute.xlu0 %3898
        %3900 = vrot.lane.b32.xlu0 %v2923, 28
        %v3901 = vpop.permute.xlu0 %3900
        %3902 = vrot.lane.b32.xlu0 %v3207, 28
        %v3903 = vpop.permute.xlu0 %3902
        %v3904 = vsel %vm2301, %v3889, %v3891
        %v3905 = vsel %vm2301, %v3891, %v3893
        %v3906 = vsel %vm2301, %v3893, %v3895
        %v3907 = vsel %vm2301, %v3895, %v3897
        %v3908 = vsel %vm2301, %v3897, %v3899
        %v3909 = vsel %vm2301, %v3899, %v3901
        %v3910 = vsel %vm2301, %v3901, %v3903
        %3911 = vrot.lane.b32.xlu0 %v2917, 27
        %v3912 = vpop.permute.xlu0 %3911
        %3913 = vrot.lane.b32.xlu0 %v2918, 27
        %v3914 = vpop.permute.xlu0 %3913
        %3915 = vrot.lane.b32.xlu0 %v2919, 27
        %v3916 = vpop.permute.xlu0 %3915
        %3917 = vrot.lane.b32.xlu0 %v2920, 27
        %v3918 = vpop.permute.xlu0 %3917
        %3919 = vrot.lane.b32.xlu0 %v2921, 27
        %v3920 = vpop.permute.xlu0 %3919
        %3921 = vrot.lane.b32.xlu0 %v2922, 27
        %v3922 = vpop.permute.xlu0 %3921
        %3923 = vrot.lane.b32.xlu0 %v2923, 27
        %v3924 = vpop.permute.xlu0 %3923
        %3925 = vrot.lane.b32.xlu0 %v3207, 27
        %v3926 = vpop.permute.xlu0 %3925
        %v3927 = vsel %vm2356, %v3912, %v3914
        %v3928 = vsel %vm2356, %v3914, %v3916
        %v3929 = vsel %vm2356, %v3916, %v3918
        %v3930 = vsel %vm2356, %v3918, %v3920
        %v3931 = vsel %vm2356, %v3920, %v3922
        %v3932 = vsel %vm2356, %v3922, %v3924
        %v3933 = vsel %vm2356, %v3924, %v3926
        %3934 = vrot.lane.b32.xlu0 %v2917, 19
        %v3935 = vpop.permute.xlu0 %3934
        %3936 = vrot.lane.b32.xlu0 %v2918, 19
        %v3937 = vpop.permute.xlu0 %3936
        %3938 = vrot.lane.b32.xlu0 %v2919, 19
        %v3939 = vpop.permute.xlu0 %3938
        %3940 = vrot.lane.b32.xlu0 %v2920, 19
        %v3941 = vpop.permute.xlu0 %3940
        %3942 = vrot.lane.b32.xlu0 %v2921, 19
        %v3943 = vpop.permute.xlu0 %3942
        %3944 = vrot.lane.b32.xlu0 %v2922, 19
        %v3945 = vpop.permute.xlu0 %3944
        %3946 = vrot.lane.b32.xlu0 %v2923, 19
        %v3947 = vpop.permute.xlu0 %3946
        %3948 = vrot.lane.b32.xlu0 %v3207, 19
        %v3949 = vpop.permute.xlu0 %3948
        %v3950 = vsel %vm2411, %v3935, %v3937
        %v3951 = vsel %vm2411, %v3937, %v3939
        %v3952 = vsel %vm2411, %v3939, %v3941
        %v3953 = vsel %vm2411, %v3941, %v3943
        %v3954 = vsel %vm2411, %v3943, %v3945
        %v3955 = vsel %vm2411, %v3945, %v3947
        %v3956 = vsel %vm2411, %v3947, %v3949
        %3957 = vrot.lane.b32.xlu0 %v2917, 18
        %v3958 = vpop.permute.xlu0 %3957
        %3959 = vrot.lane.b32.xlu0 %v2918, 18
        %v3960 = vpop.permute.xlu0 %3959
        %3961 = vrot.lane.b32.xlu0 %v2919, 18
        %v3962 = vpop.permute.xlu0 %3961
        %3963 = vrot.lane.b32.xlu0 %v2920, 18
        %v3964 = vpop.permute.xlu0 %3963
        %3965 = vrot.lane.b32.xlu0 %v2921, 18
        %v3966 = vpop.permute.xlu0 %3965
        %3967 = vrot.lane.b32.xlu0 %v2922, 18
        %v3968 = vpop.permute.xlu0 %3967
        %3969 = vrot.lane.b32.xlu0 %v2923, 18
        %v3970 = vpop.permute.xlu0 %3969
        %3971 = vrot.lane.b32.xlu0 %v3207, 18
        %v3972 = vpop.permute.xlu0 %3971
        %v3973 = vsel %vm2466, %v3958, %v3960
        %v3974 = vsel %vm2466, %v3960, %v3962
        %v3975 = vsel %vm2466, %v3962, %v3964
        %v3976 = vsel %vm2466, %v3964, %v3966
        %v3977 = vsel %vm2466, %v3966, %v3968
        %v3978 = vsel %vm2466, %v3968, %v3970
        %v3979 = vsel %vm2466, %v3970, %v3972
        %3980 = vrot.lane.b32.xlu0 %v2917, 17
        %v3981 = vpop.permute.xlu0 %3980
        %3982 = vrot.lane.b32.xlu0 %v2918, 17
        %v3983 = vpop.permute.xlu0 %3982
        %3984 = vrot.lane.b32.xlu0 %v2919, 17
        %v3985 = vpop.permute.xlu0 %3984
        %3986 = vrot.lane.b32.xlu0 %v2920, 17
        %v3987 = vpop.permute.xlu0 %3986
        %3988 = vrot.lane.b32.xlu0 %v2921, 17
        %v3989 = vpop.permute.xlu0 %3988
        %3990 = vrot.lane.b32.xlu0 %v2922, 17
        %v3991 = vpop.permute.xlu0 %3990
        %3992 = vrot.lane.b32.xlu0 %v2923, 17
        %v3993 = vpop.permute.xlu0 %3992
        %3994 = vrot.lane.b32.xlu0 %v3207, 17
        %v3995 = vpop.permute.xlu0 %3994
        %v3996 = vsel %vm2520, %v3981, %v3983
        %v3997 = vsel %vm2520, %v3983, %v3985
        %v3998 = vsel %vm2520, %v3985, %v3987
        %v3999 = vsel %vm2520, %v3987, %v3989
        %v4000 = vsel %vm2520, %v3989, %v3991
        %v4001 = vsel %vm2520, %v3991, %v3993
        %v4002 = vsel %vm2520, %v3993, %v3995
        %v4005 = vsel %vm803, %v3812, %v3835
        %v4009 = vsel %vm803, %v3813, %v3836
        %v4013 = vsel %vm803, %v3814, %v3837
        %v4017 = vsel %vm803, %v3815, %v3838
        %v4021 = vsel %vm803, %v3816, %v3839
        %v4025 = vsel %vm803, %v3817, %v3840
        %v4029 = vsel %vm803, %v3818, %v3841
        %v4033 = vsel %vm803, %v3858, %v3881
        %v4037 = vsel %vm803, %v3859, %v3882
        %v4041 = vsel %vm803, %v3860, %v3883
        %v4045 = vsel %vm803, %v3861, %v3884
        %v4049 = vsel %vm803, %v3862, %v3885
        %v4053 = vsel %vm803, %v3863, %v3886
        %v4057 = vsel %vm803, %v3864, %v3887
        %v4061 = vsel %vm803, %v3904, %v3927
        %v4065 = vsel %vm803, %v3905, %v3928
        %v4069 = vsel %vm803, %v3906, %v3929
        %v4073 = vsel %vm803, %v3907, %v3930
        %v4077 = vsel %vm803, %v3908, %v3931
        %v4081 = vsel %vm803, %v3909, %v3932
        %v4085 = vsel %vm803, %v3910, %v3933
        %v4089 = vsel %vm803, %v3950, %v3973
        %v4093 = vsel %vm803, %v3951, %v3974
        %v4097 = vsel %vm803, %v3952, %v3975
        %v4101 = vsel %vm803, %v3953, %v3976
        %v4105 = vsel %vm803, %v3954, %v3977
        %v4109 = vsel %vm803, %v3955, %v3978
        %v4113 = vsel %vm803, %v3956, %v3979
        %v4115 = vld [vmem:[%s4 + $0x4] sm:$0xf]
        %v4117 = vunpack.c.l.b16 %v4115
        %v4118 = vpack.c.b16 %v4117, %v4117
        %4119 = vrot.lane.b32.xlu0 %v4118, 112
        %v4120 = vpop.permute.xlu0 %4119
        %v4122 = vsel %vm3418, %v4120, 0
        %v4125 = vsel %vm803, %v3996, 0
        %v4128 = vsel %vm803, %v3997, 0
        %v4131 = vsel %vm803, %v3998, 0
        %v4134 = vsel %vm803, %v3999, 0
        %v4137 = vsel %vm803, %v4000, 0
        %v4140 = vsel %vm803, %v4001, 0
        %v4143 = vsel %vm803, %v4002, 0
        %4145 = vmatpush.bf16.msra.mxu0 0
        %4146 = vmatpush.bf16.msra.mxu0 0
        %4147 = vmatpush.bf16.msra.mxu0 0
        %4148 = vmatpush.bf16.msra.mxu0 %v4125
        %4149 = vmatpush.bf16.msra.mxu0 %v4089
        %4150 = vmatpush.bf16.msra.mxu0 %v4061
        %4151 = vmatpush.bf16.msra.mxu0 %v4033
        %4152 = vmatpush.bf16.msra.mxu0 %v4005
        %4153 = vmatmul.bf16.gmra.mxu0 %v4122
        %v4154 = vpop.f32.mrf.mxu0
        %v4155 = vadd.f32 0.0, %v4154
        %v4156 = vpop.f32.mrf.mxu0
        %4157 = vdwg.mxu0
        %4158 = vmatpush.bf16.msra.mxu0 0
        %4159 = vmatpush.bf16.msra.mxu0 0
        %4160 = vmatpush.bf16.msra.mxu0 0
        %4161 = vmatpush.bf16.msra.mxu0 %v4128
        %4162 = vmatpush.bf16.msra.mxu0 %v4093
        %4163 = vmatpush.bf16.msra.mxu0 %v4065
        %4164 = vmatpush.bf16.msra.mxu0 %v4037
        %4165 = vmatpush.bf16.msra.mxu0 %v4009
        %4166 = vmatmul.bf16.gmra.mxu0 %v4122
        %v4167 = vpop.f32.mrf.mxu0
        %v4168 = vadd.f32 0.0, %v4167
        %v4169 = vpop.f32.mrf.mxu0
        %4170 = vdwg.mxu0
        %4171 = vmatpush.bf16.msra.mxu0 0
        %4172 = vmatpush.bf16.msra.mxu0 0
        %4173 = vmatpush.bf16.msra.mxu0 0
        %4174 = vmatpush.bf16.msra.mxu0 %v4131
        %4175 = vmatpush.bf16.msra.mxu0 %v4097
        %4176 = vmatpush.bf16.msra.mxu0 %v4069
        %4177 = vmatpush.bf16.msra.mxu0 %v4041
        %4178 = vmatpush.bf16.msra.mxu0 %v4013
        %4179 = vmatmul.bf16.gmra.mxu0 %v4122
        %v4180 = vpop.f32.mrf.mxu0
        %v4181 = vadd.f32 0.0, %v4180
        %v4182 = vpop.f32.mrf.mxu0
        %4183 = vdwg.mxu0
        %4184 = vmatpush.bf16.msra.mxu0 0
        %4185 = vmatpush.bf16.msra.mxu0 0
        %4186 = vmatpush.bf16.msra.mxu0 0
        %4187 = vmatpush.bf16.msra.mxu0 %v4134
        %4188 = vmatpush.bf16.msra.mxu0 %v4101
        %4189 = vmatpush.bf16.msra.mxu0 %v4073
        %4190 = vmatpush.bf16.msra.mxu0 %v4045
        %4191 = vmatpush.bf16.msra.mxu0 %v4017
        %4192 = vmatmul.bf16.gmra.mxu0 %v4122
        %v4193 = vpop.f32.mrf.mxu0
        %v4194 = vadd.f32 0.0, %v4193
        %v4195 = vpop.f32.mrf.mxu0
        %4196 = vdwg.mxu0
        %4197 = vmatpush.bf16.msra.mxu0 0
        %4198 = vmatpush.bf16.msra.mxu0 0
        %4199 = vmatpush.bf16.msra.mxu0 0
        %4200 = vmatpush.bf16.msra.mxu0 %v4137
        %4201 = vmatpush.bf16.msra.mxu0 %v4105
        %4202 = vmatpush.bf16.msra.mxu0 %v4077
        %4203 = vmatpush.bf16.msra.mxu0 %v4049
        %4204 = vmatpush.bf16.msra.mxu0 %v4021
        %4205 = vmatmul.bf16.gmra.mxu0 %v4122
        %v4206 = vpop.f32.mrf.mxu0
        %v4207 = vadd.f32 0.0, %v4206
        %v4208 = vpop.f32.mrf.mxu0
        %4209 = vdwg.mxu0
        %4210 = vmatpush.bf16.msra.mxu0 0
        %4211 = vmatpush.bf16.msra.mxu0 0
        %4212 = vmatpush.bf16.msra.mxu0 0
        %4213 = vmatpush.bf16.msra.mxu0 %v4140
        %4214 = vmatpush.bf16.msra.mxu0 %v4109
        %4215 = vmatpush.bf16.msra.mxu0 %v4081
        %4216 = vmatpush.bf16.msra.mxu0 %v4053
        %4217 = vmatpush.bf16.msra.mxu0 %v4025
        %4218 = vmatmul.bf16.gmra.mxu0 %v4122
        %v4219 = vpop.f32.mrf.mxu0
        %v4220 = vadd.f32 0.0, %v4219
        %v4221 = vpop.f32.mrf.mxu0
        %4222 = vdwg.mxu0
        %4223 = vmatpush.bf16.msra.mxu0 0
        %4224 = vmatpush.bf16.msra.mxu0 0
        %4225 = vmatpush.bf16.msra.mxu0 0
        %4226 = vmatpush.bf16.msra.mxu0 %v4143
        %4227 = vmatpush.bf16.msra.mxu0 %v4113
        %4228 = vmatpush.bf16.msra.mxu0 %v4085
        %4229 = vmatpush.bf16.msra.mxu0 %v4057
        %4230 = vmatpush.bf16.msra.mxu0 %v4029
        %4231 = vmatmul.bf16.gmra.mxu0 %v4122
        %v4232 = vpop.f32.mrf.mxu0
        %v4233 = vadd.f32 0.0, %v4232
        %v4234 = vpop.f32.mrf.mxu0
        %4235 = vdwg.mxu0
        %v4236 = vadd.f32 %v3715, %v4155
        %v4237 = vadd.f32 %v3728, %v4168
        %v4238 = vadd.f32 %v3741, %v4181
        %v4239 = vadd.f32 %v3754, %v4194
        %v4240 = vadd.f32 %v3767, %v4207
        %v4241 = vadd.f32 %v3780, %v4220
        %v4242 = vadd.f32 %v3793, %v4233
        %v4243 = vld [vmem:[%s5] sm:$0xff]
        %4245 = vset.pattern.permute.xlu0 0
        %4246 = vperm.xlu0 %4245, %v4243
        %v4247 = vpop.permute.xlu0 %4246
        %v4249 = vadd.f32 %v4236, %v4247
        %v4250 = vadd.f32 %v4237, %v4247
        %v4251 = vadd.f32 %v4238, %v4247
        %v4252 = vadd.f32 %v4239, %v4247
        %v4253 = vadd.f32 %v4240, %v4247
        %v4254 = vadd.f32 %v4241, %v4247
        %v4255 = vadd.f32 %v4242, %v4247
        %4256 = vst [vmem:[%s315] sm:$0xff] %v4249
        %4257 = vst [vmem:[%s315 + $0x8] sm:$0xff] %v4250
        %4258 = vst [vmem:[%s315 + $0x10] sm:$0xff] %v4251
        %4259 = vst [vmem:[%s315 + $0x18] sm:$0xff] %v4252
        %4260 = vst [vmem:[%s315 + $0x20] sm:$0xff] %v4253
        %4261 = vst [vmem:[%s315 + $0x28] sm:$0xff] %v4254
        %4262 = vst [vmem:[%s315 + $0x30] sm:$0xff] %v4255
        %s4263 = sand.u32 %s184, 1
        %s4264 = scalar_lea.sflag [#allocation5], %s4263
        %s4265 = sand.u32 %s184, 1
        %s4266 = smul.addr %s4265, 56
        %s4267 = scalar_lea.vmem [#allocation8], %s4266
        // Predicated region
        $region53: #{tpu_custom_call.1} parent=43 // pred_check
          %p4268 = pneg %p194
        $region54: #{tpu_custom_call.1} parent=43 // pred_check_branch
          %4270 = sbr.rel (%p4268) target = $region56
        $region55: #{tpu_custom_call.1} parent=43 // pred_region
          %s4271 = smul.u32 7, %s29
          %4273 = vsyncadd %s4264, 0
          %s4274 = smul.addr %s28, 7
          %s4275 = sadd.s32 %s4271, %s4274
          %s4276 = smul.addr %s4275, 8
          %s4277 = scalar_lea.hbm %s6, %s4276
          %s4279 = sshll.u32 %s4267, 4
          %s4280 = int_to_ptr.vmem [resolvable:$true] %s4279
          %s4281 = sshll.u32 %s4277, 4
          %s4282 = int_to_ptr.hbm [resolvable:$true] %s4281
          %4284 = dma.vmem_to_hbm [thread:$0]  %s4280, 896, %s4282, %s4264
        $region56: #{tpu_custom_call.1} parent=43 // pred_fallthru
          _
      $region44: #{tpu_custom_call.1} parent=5 // pred_fallthru
        _
      %p4285 = scmp.le.s32.totalorder 2, %s19
      // Predicated region
      $region57: #{tpu_custom_call.1} parent=5 // pred_check
        %p4286 = pneg %p4285
      $region58: #{tpu_custom_call.1} parent=5 // pred_check_branch
        %4288 = sbr.rel (%p4286) target = $region60
      $region59: #{tpu_custom_call.1} parent=5 // pred_region
        %s4289 = ssub.s32 %s19, 2
        // Predicated region
        $region61: #{tpu_custom_call.1} parent=59 // pred_check
          %p4290 = pneg %p200
        $region62: #{tpu_custom_call.1} parent=59 // pred_check_branch
          %4292 = sbr.rel (%p4290) target = $region64
        $region63: #{tpu_custom_call.1} parent=59 // pred_region
          %s4293 = sand.u32 %s185, 1
          %s4294 = scalar_lea.sflag [#allocation5], %s4293
          %s4295 = sand.u32 %s185, 1
          %s4296 = smul.addr %s4295, 56
          %s4297 = scalar_lea.vmem [#allocation8], %s4296
          %4299 = dma.done %s4294, 896
        $region64: #{tpu_custom_call.1} parent=59 // pred_fallthru
          _
      $region60: #{tpu_custom_call.1} parent=5 // pred_fallthru
        _
    $region6: #{tpu_custom_call.1} parent=1 // loop_footer
      %s23 = sadd.s32 1, %s19
    $region7: #{tpu_custom_call.1} parent=1 // loop_footer_branch
      %18 = sbr.rel target = $region3
    $region8: #{tpu_custom_call.1} parent=1 // loop_exit
      _
    %4300 = vsyncpa [#allocation4], 1
    %s4301 = scalar_lea.sflag [#allocation4], 1
    %4302 = vsyncpa %s4301, 1
    %4303 = vsyncpa [#allocation7], 1
    %4304 = vsyncpa [#allocation5], 1
    %s4305 = scalar_lea.sflag [#allocation5], 1
    %4306 = vsyncpa %s4305, 1

</llo_original>
